<compile_context>
chip_gen: v5e
topology: v5e:2x2
jax: 0.10.0
libtpu: 0.0.40
codegen_flags: <defaults>
</compile_context>

<pallas_src>
import functools

import numpy as np
import jax
import jax.numpy as jnp
from jax import lax
from jax.experimental import pallas as pl
from jax.experimental.pallas import tpu as pltpu
from jax.scipy.linalg import lu as jax_lu

KW = 3
HI = jax.lax.Precision.HIGHEST   # kept only on tiny-K matmuls (K <= 32); no global config


# ----------------------------------------------------------------------------- kernel
def flow_kernel(h_ref, embt_ref, mixw_ref, ws_ref,
                ww_ref, bw_ref, wb_ref, bb_ref,
                w1_ref, b1_ref, w2_ref, b2_ref,
                out_ref, ld_ref):
    NSQ, BL = h_ref.shape
    B = embt_ref.shape[1]
    L = BL // B
    NCHA = w1_ref.shape[0]
    nh = NSQ // 2
    r = NCHA // nh
    f32 = jnp.float32

    # ---- lane helpers: per-batch temporal shifts on the (C, B*L) slab --------
    lane = lax.broadcasted_iota(jnp.int32, (1, BL), 1)
    first_lane = functools.reduce(jnp.logical_or,
                                  [lane == b * L for b in range(B)])
    last_lane = functools.reduce(jnp.logical_or,
                                 [lane == (b + 1) * L - 1 for b in range(B)])

    def shift_prev(x):   # x[t-1] within each batch block, zero at block start
        return jnp.where(first_lane, 0.0, pltpu.roll(x, 1, 1))

    def shift_next(x):   # x[t+1] within each batch block, zero at block end
        return jnp.where(last_lane, 0.0, pltpu.roll(x, BL - 1, 1))

    # per-batch -> per-lane broadcast matrix R (B, B*L): lane j belongs to batch j // L
    brow = lax.broadcasted_iota(jnp.int32, (B, BL), 0)
    bcol = lax.broadcasted_iota(jnp.int32, (B, BL), 1)
    R = jnp.logical_and(bcol >= brow * L, bcol < (brow + 1) * L).astype(f32)

    # ---- conditioning (CouplingNet.adapt_w / adapt_b), hoisted once ----------
    embt = embt_ref[...]                                                # (semb, B)
    w_ad = [jnp.dot(jnp.dot(ww_ref[k], embt, precision=HI) + bw_ref[k],
                    R, precision=HI) for k in range(KW)]                # (NCHA, B*L)
    b_ad = jnp.dot(jnp.dot(wb_ref[...], embt, precision=HI) + bb_ref[...],
                   R, precision=HI)                                     # (NCHA, B*L)

    # ---- 1) InvConv: 1x1 conv == one channel-mixing matmul over the slab -----
    h_mix = jnp.dot(mixw_ref[...], h_ref[...], precision=HI)            # (NSQ, B*L)
    ld_mix = jnp.sum(ws_ref[...], keepdims=True) * L                    # (1, 1)

    # ---- 2) ActNorm with data-dependent init (mean / unbiased std, f32 VPU) --
    n = BL
    mean = jnp.sum(h_mix, axis=1, keepdims=True) / n                    # (NSQ, 1)
    diff = h_mix - mean
    var = jnp.sum(diff * diff, axis=1, keepdims=True) / (n - 1)
    logs = -jnp.log(jnp.sqrt(var) + 1e-7)                               # (NSQ, 1)
    h_norm = diff * jnp.exp(logs)
    ld_norm = jnp.sum(logs, keepdims=True) * L                          # (1, 1)
    ld_base = ld_mix + ld_norm

    # ---- 3) AffineCoupling (CouplingNet) --------------------------------------
    h1 = h_norm[:nh, :]                                                 # (nh, B*L)
    h2 = h_norm[nh:, :]
    # grouped-conv channel expansion: adapt/conv1 params were permuted host-side
    # so kernel channel c reads input channel c % nh -> plain sublane tiling.
    x = jnp.concatenate([h1] * r, axis=0)                               # (NCHA, B*L)
    acc = (b_ad + w_ad[0] * shift_prev(x) + w_ad[1] * x
           + w_ad[2] * shift_next(x))
    y = jnp.maximum(acc, 0.0)                                           # ReLU
    z = jnp.maximum(jnp.dot(w1_ref[...], y, precision=HI) + b1_ref[...], 0.0)
    # kw conv: the temporal shift commutes with the channel matmul,
    # so matmul first (2*nh rows) and roll the smaller result.
    u_prev = jnp.dot(w2_ref[0], z, precision=HI)
    u_mid = jnp.dot(w2_ref[1], z, precision=HI)
    u_next = jnp.dot(w2_ref[2], z, precision=HI)
    o2 = b2_ref[...] + shift_prev(u_prev) + u_mid + shift_next(u_next)  # (2nh, B*L)
    s = jax.nn.sigmoid(o2[:nh, :] + 2.0) + 1e-7
    m = o2[nh:, :]
    h2n = s * (h2 + m)

    # direct lane-dense stores (no sublane concat of the output halves)
    out_ref[0:nh, :] = h1
    out_ref[nh:NSQ, :] = h2n

    # ---- logdet per batch: lane-dense (B, L) output, wrapper takes [:, 0] ----
    log_s = jnp.log(s)                                                  # (nh, B*L)
    rows = []
    for b in range(B):
        ld_b = ld_base + jnp.sum(log_s[:, b * L:(b + 1) * L], keepdims=True)
        rows.append(jnp.broadcast_to(ld_b, (1, L)))
    ld_ref[...] = jnp.concatenate(rows, axis=0)


# ----------------------------------------------------------------------------- wrapper
def flow_forward(h, emb, params):
    B, nsq, L = h.shape
    # layout plumbing: one lane-dense (NSQ, B*L) slab for the kernel
    h_slab = jnp.transpose(h, (1, 0, 2)).reshape(nsq, B * L)
    kernel_inputs = (
        h_slab, emb.T, params["mix_w"], params["w_s"].reshape(1, nsq),
        params["ww"], params["bw"], params["wb"], params["bb"],
        params["w1"], params["b1"], params["w2"], params["b2"],
    )
    vmem = pl.BlockSpec(memory_space=pltpu.MemorySpace.VMEM)
    out_slab, ld_slab = pl.pallas_call(
        flow_kernel,
        out_shape=(jax.ShapeDtypeStruct((nsq, B * L), jnp.float32),
                   jax.ShapeDtypeStruct((B, L), jnp.float32)),
        in_specs=[vmem] * len(kernel_inputs),
        out_specs=(vmem, vmem),
    )(*kernel_inputs)
    out = jnp.transpose(out_slab.reshape(nsq, B, L), (1, 0, 2))
    return out, ld_slab[:, 0]


# ----------------------------------------------------------------------------- params
def init_flow_params(nsq, ncha, semb, kw=KW, seed=0):
    assert kw == 3 and ncha % (nsq // 2) == 0
    nh = nsq // 2
    r = ncha // nh
    rng = np.random.RandomState(seed)

    # InvConv: LU-parameterized orthogonal 1x1 conv (InvConv.__init__/calc_weight)
    q, _ = np.linalg.qr(rng.randn(nsq, nsq))
    q = jnp.asarray(q.astype(np.float32))
    p_mat, l_mat, u_mat = jax_lu(q)
    d = jnp.diag(u_mat)
    s_sign = jnp.sign(d)
    w_s = jnp.log(1e-7 + jnp.abs(d))
    l_mask = jnp.tril(jnp.ones((nsq, nsq), jnp.float32), -1)
    mix_w = p_mat @ (l_mat * l_mask + jnp.eye(nsq, dtype=jnp.float32)) @ (
        jnp.triu(u_mat, 1) + jnp.diag(s_sign * jnp.exp(w_s)))

    # CouplingNet params (torch default uniform init; last conv zero-initialized)
    key = jax.random.PRNGKey(seed)
    ks = jax.random.split(key, 6)

    def unif(kk, shape, fan_in):
        b = 1.0 / np.sqrt(fan_in)
        return jax.random.uniform(kk, shape, jnp.float32, -b, b)

    aw_W = unif(ks[0], (ncha * kw, semb), semb)   # adapt_w: Linear(semb, ncha*kw)
    aw_b = unif(ks[1], (ncha * kw,), semb)
    ab_W = unif(ks[2], (ncha, semb), semb)        # adapt_b: Linear(semb, ncha)
    ab_b = unif(ks[3], (ncha,), semb)
    c1_W = unif(ks[4], (ncha, ncha), ncha)        # Conv1d(ncha, ncha, 1) (kernel squeezed)
    c1_b = unif(ks[5], (ncha,), ncha)
    c2_W = jnp.zeros((2 * nh, ncha, kw), jnp.float32)   # zero-init last conv
    c2_b = jnp.zeros((2 * nh,), jnp.float32)

    # channel permutation so the kernel's grouped-conv expansion is a sublane
    # tile: kernel channel c' corresponds to torch channel perm[c'] and
    # perm[c'] // r == c' % nh.  conv1 input columns permuted to match.
    perm = np.array([(c % nh) * r + c // nh for c in range(ncha)])

    return dict(
        mix_w=jnp.asarray(mix_w, jnp.float32),
        w_s=jnp.asarray(w_s, jnp.float32),
        # kernel-layout rearrangements (host-side glue)
        ww=jnp.transpose(aw_W.reshape(ncha, kw, semb), (1, 0, 2))[:, perm, :],
        bw=jnp.transpose(aw_b.reshape(ncha, kw), (1, 0))[:, perm][:, :, None],
        wb=ab_W[perm], bb=ab_b[perm][:, None],
        w1=c1_W[:, perm], b1=c1_b[:, None],
        w2=jnp.transpose(c2_W, (2, 0, 1)), b2=c2_b[:, None],
        # torch-layout copies for the pure-JAX reference
        aw_W=aw_W, aw_b=aw_b, ab_W=ab_W, ab_b=ab_b,
        c1_W=c1_W, c1_b=c1_b, c2_W=c2_W, c2_b=c2_b,
    )


# ----------------------------------------------------------------------------- reference
def flow_reference(h, emb, params):
    B, nsq, L = h.shape
    nh = nsq // 2
    ncha = params["c1_W"].shape[0]
    kw = params["c2_W"].shape[2]
    r = ncha // nh
    hm = jnp.einsum("ij,bjl->bil", params["mix_w"], h, precision=HI)
    ld = jnp.sum(params["w_s"]) * L
    flat = jnp.transpose(hm, (1, 0, 2)).reshape(nsq, -1)
    mean = flat.mean(axis=1)
    std = jnp.std(flat, axis=1, ddof=1)
    logs = jnp.log(1.0 / (std + 1e-7))
    hn = jnp.exp(logs)[None, :, None] * (hm - mean[None, :, None])
    ld = ld + logs.sum() * L
    h1, h2 = hn[:, :nh], hn[:, nh:]
    w_ad = (jnp.dot(emb, params["aw_W"].T, precision=HI)
            + params["aw_b"]).reshape(B, ncha, kw)
    b_ad = jnp.dot(emb, params["ab_W"].T, precision=HI) + params["ab_b"]
    h1p = jnp.pad(jnp.repeat(h1, r, axis=1), ((0, 0), (0, 0), (1, 1)))
    out0 = b_ad[:, :, None]
    for k in range(kw):
        out0 = out0 + w_ad[:, :, k:k + 1] * h1p[:, :, k:k + L]
    y = jnp.maximum(out0, 0.0)
    z = jnp.einsum("oc,bcl->bol", params["c1_W"], y,
                   precision=HI) + params["c1_b"][None, :, None]
    z = jnp.maximum(z, 0.0)
    zp = jnp.pad(z, ((0, 0), (0, 0), (1, 1)))
    o2 = params["c2_b"][None, :, None] + jnp.zeros((B, 2 * nh, L), jnp.float32)
    for k in range(kw):
        o2 = o2 + jnp.einsum("oc,bcl->bol", params["c2_W"][:, :, k],
                             zp[:, :, k:k + L], precision=HI)
    s = jax.nn.sigmoid(o2[:, :nh] + 2.0) + 1e-7
    m = o2[:, nh:]
    hout = jnp.concatenate([h1, s * (h2 + m)], axis=1)
    return hout, ld + jnp.log(s).sum(axis=(1, 2))


# ----------------------------------------------------------------------------- main
if __name__ == "__main__":
    B, NSQ, NCHA, SEMB, L = 2, 8, 16, 32, 128
    params = init_flow_params(NSQ, NCHA, SEMB, KW, seed=0)

    key = jax.random.PRNGKey(0)
    kh, ke = jax.random.split(key)
    h = jax.random.normal(kh, (B, NSQ, L), jnp.float32)
    emb = jax.random.normal(ke, (B, SEMB), jnp.float32)

    out, logdet = flow_forward(h, emb, params)
    jax.block_until_ready((out, logdet))

    ref_out, ref_ld = flow_reference(h, emb, params)
    np.testing.assert_allclose(np.asarray(out), np.asarray(ref_out), rtol=1e-3, atol=1e-3)
    np.testing.assert_allclose(np.asarray(logdet), np.asarray(ref_ld), rtol=1e-3, atol=1e-3)

    print("KERNEL_OK")
</pallas_src>

<mosaic_0001>
module attributes {stable_mosaic.version = 11 : i64} {
  func.func @flow_kernel(%arg0: memref<8x256xf32, #tpu.memory_space<vmem>>, %arg1: memref<32x2xf32, #tpu.memory_space<vmem>>, %arg2: memref<8x8xf32, #tpu.memory_space<vmem>>, %arg3: memref<1x8xf32, #tpu.memory_space<vmem>>, %arg4: memref<3x16x32xf32, #tpu.memory_space<vmem>>, %arg5: memref<3x16x1xf32, #tpu.memory_space<vmem>>, %arg6: memref<16x32xf32, #tpu.memory_space<vmem>>, %arg7: memref<16x1xf32, #tpu.memory_space<vmem>>, %arg8: memref<16x16xf32, #tpu.memory_space<vmem>>, %arg9: memref<16x1xf32, #tpu.memory_space<vmem>>, %arg10: memref<3x8x16xf32, #tpu.memory_space<vmem>>, %arg11: memref<8x1xf32, #tpu.memory_space<vmem>>, %arg12: memref<8x256xf32, #tpu.memory_space<vmem>>, %arg13: memref<2x128xf32, #tpu.memory_space<vmem>>) attributes {dimension_semantics = [], scalar_prefetch = 0 : i64, scratch_operands = 0 : i64, tpu.core_type = #tpu.core_type<tc>} {
    %0 = tpu.iota {dimensions = array<i32: 1>} : vector<1x256xi32>
    %c0_i32 = arith.constant 0 : i32
    %1 = vector.broadcast %c0_i32 : i32 to vector<1x256xi32>
    %2 = arith.cmpi eq, %0, %1 : vector<1x256xi32>
    %c128_i32 = arith.constant 128 : i32
    %3 = vector.broadcast %c128_i32 : i32 to vector<1x256xi32>
    %4 = arith.cmpi eq, %0, %3 : vector<1x256xi32>
    %5 = arith.ori %2, %4 : vector<1x256xi1>
    %c127_i32 = arith.constant 127 : i32
    %6 = vector.broadcast %c127_i32 : i32 to vector<1x256xi32>
    %7 = arith.cmpi eq, %0, %6 : vector<1x256xi32>
    %c255_i32 = arith.constant 255 : i32
    %8 = vector.broadcast %c255_i32 : i32 to vector<1x256xi32>
    %9 = arith.cmpi eq, %0, %8 : vector<1x256xi32>
    %10 = arith.ori %7, %9 : vector<1x256xi1>
    %11 = tpu.iota {dimensions = array<i32: 0>} : vector<2x256xi32>
    %12 = tpu.iota {dimensions = array<i32: 1>} : vector<2x256xi32>
    %c128_i32_0 = arith.constant 128 : i32
    %13 = vector.broadcast %c128_i32_0 : i32 to vector<2x256xi32>
    %14 = arith.muli %11, %13 : vector<2x256xi32>
    %15 = arith.cmpi sge, %12, %14 : vector<2x256xi32>
    %c1_i32 = arith.constant 1 : i32
    %16 = vector.broadcast %c1_i32 : i32 to vector<2x256xi32>
    %17 = arith.addi %11, %16 : vector<2x256xi32>
    %c128_i32_1 = arith.constant 128 : i32
    %18 = vector.broadcast %c128_i32_1 : i32 to vector<2x256xi32>
    %19 = arith.muli %17, %18 : vector<2x256xi32>
    %20 = arith.cmpi slt, %12, %19 : vector<2x256xi32>
    %21 = arith.andi %15, %20 : vector<2x256xi1>
    %22 = arith.extui %21 : vector<2x256xi1> to vector<2x256xi32>
    %23 = arith.sitofp %22 : vector<2x256xi32> to vector<2x256xf32>
    %c0 = arith.constant 0 : index
    %c0_2 = arith.constant 0 : index
    %24 = vector.load %arg1[%c0, %c0_2] : memref<32x2xf32, #tpu.memory_space<vmem>>, vector<32x2xf32>
    %c0_3 = arith.constant 0 : index
    %c0_4 = arith.constant 0 : index
    %c0_5 = arith.constant 0 : index
    %25 = vector.load %arg4[%c0_3, %c0_4, %c0_5] : memref<3x16x32xf32, #tpu.memory_space<vmem>>, vector<1x16x32xf32>
    %26 = vector.shape_cast %25 : vector<1x16x32xf32> to vector<16x32xf32>
    %cst = arith.constant dense<0.000000e+00> : vector<16x2xf32>
    %27 = tpu.matmul %26, %24, %cst {dimension_numbers = #tpu.dot_dimension_numbers<[1], [0], [0], [1], [0, 0, 1, 1], [], []>, precision = #tpu.contract_precision<fp32>} : vector<16x32xf32>, vector<32x2xf32>, vector<16x2xf32> -> vector<16x2xf32>
    %c0_6 = arith.constant 0 : index
    %c0_7 = arith.constant 0 : index
    %c0_8 = arith.constant 0 : index
    %28 = vector.load %arg5[%c0_6, %c0_7, %c0_8] : memref<3x16x1xf32, #tpu.memory_space<vmem>>, vector<1x16x1xf32>
    %29 = vector.shape_cast %28 : vector<1x16x1xf32> to vector<16x1xf32>
    %30 = vector.broadcast %29 : vector<16x1xf32> to vector<16x2xf32>
    %31 = arith.addf %27, %30 : vector<16x2xf32>
    %cst_9 = arith.constant dense<0.000000e+00> : vector<16x256xf32>
    %32 = tpu.matmul %31, %23, %cst_9 {dimension_numbers = #tpu.dot_dimension_numbers<[1], [0], [0], [1], [0, 0, 1, 1], [], []>, precision = #tpu.contract_precision<fp32>} : vector<16x2xf32>, vector<2x256xf32>, vector<16x256xf32> -> vector<16x256xf32>
    %c1 = arith.constant 1 : index
    %c0_10 = arith.constant 0 : index
    %c0_11 = arith.constant 0 : index
    %33 = vector.load %arg4[%c1, %c0_10, %c0_11] : memref<3x16x32xf32, #tpu.memory_space<vmem>>, vector<1x16x32xf32>
    %34 = vector.shape_cast %33 : vector<1x16x32xf32> to vector<16x32xf32>
    %cst_12 = arith.constant dense<0.000000e+00> : vector<16x2xf32>
    %35 = tpu.matmul %34, %24, %cst_12 {dimension_numbers = #tpu.dot_dimension_numbers<[1], [0], [0], [1], [0, 0, 1, 1], [], []>, precision = #tpu.contract_precision<fp32>} : vector<16x32xf32>, vector<32x2xf32>, vector<16x2xf32> -> vector<16x2xf32>
    %c1_13 = arith.constant 1 : index
    %c0_14 = arith.constant 0 : index
    %c0_15 = arith.constant 0 : index
    %36 = vector.load %arg5[%c1_13, %c0_14, %c0_15] : memref<3x16x1xf32, #tpu.memory_space<vmem>>, vector<1x16x1xf32>
    %37 = vector.shape_cast %36 : vector<1x16x1xf32> to vector<16x1xf32>
    %38 = vector.broadcast %37 : vector<16x1xf32> to vector<16x2xf32>
    %39 = arith.addf %35, %38 : vector<16x2xf32>
    %cst_16 = arith.constant dense<0.000000e+00> : vector<16x256xf32>
    %40 = tpu.matmul %39, %23, %cst_16 {dimension_numbers = #tpu.dot_dimension_numbers<[1], [0], [0], [1], [0, 0, 1, 1], [], []>, precision = #tpu.contract_precision<fp32>} : vector<16x2xf32>, vector<2x256xf32>, vector<16x256xf32> -> vector<16x256xf32>
    %c2 = arith.constant 2 : index
    %c0_17 = arith.constant 0 : index
    %c0_18 = arith.constant 0 : index
    %41 = vector.load %arg4[%c2, %c0_17, %c0_18] : memref<3x16x32xf32, #tpu.memory_space<vmem>>, vector<1x16x32xf32>
    %42 = vector.shape_cast %41 : vector<1x16x32xf32> to vector<16x32xf32>
    %cst_19 = arith.constant dense<0.000000e+00> : vector<16x2xf32>
    %43 = tpu.matmul %42, %24, %cst_19 {dimension_numbers = #tpu.dot_dimension_numbers<[1], [0], [0], [1], [0, 0, 1, 1], [], []>, precision = #tpu.contract_precision<fp32>} : vector<16x32xf32>, vector<32x2xf32>, vector<16x2xf32> -> vector<16x2xf32>
    %c2_20 = arith.constant 2 : index
    %c0_21 = arith.constant 0 : index
    %c0_22 = arith.constant 0 : index
    %44 = vector.load %arg5[%c2_20, %c0_21, %c0_22] : memref<3x16x1xf32, #tpu.memory_space<vmem>>, vector<1x16x1xf32>
    %45 = vector.shape_cast %44 : vector<1x16x1xf32> to vector<16x1xf32>
    %46 = vector.broadcast %45 : vector<16x1xf32> to vector<16x2xf32>
    %47 = arith.addf %43, %46 : vector<16x2xf32>
    %cst_23 = arith.constant dense<0.000000e+00> : vector<16x256xf32>
    %48 = tpu.matmul %47, %23, %cst_23 {dimension_numbers = #tpu.dot_dimension_numbers<[1], [0], [0], [1], [0, 0, 1, 1], [], []>, precision = #tpu.contract_precision<fp32>} : vector<16x2xf32>, vector<2x256xf32>, vector<16x256xf32> -> vector<16x256xf32>
    %c0_24 = arith.constant 0 : index
    %c0_25 = arith.constant 0 : index
    %49 = vector.load %arg6[%c0_24, %c0_25] : memref<16x32xf32, #tpu.memory_space<vmem>>, vector<16x32xf32>
    %cst_26 = arith.constant dense<0.000000e+00> : vector<16x2xf32>
    %50 = tpu.matmul %49, %24, %cst_26 {dimension_numbers = #tpu.dot_dimension_numbers<[1], [0], [0], [1], [0, 0, 1, 1], [], []>, precision = #tpu.contract_precision<fp32>} : vector<16x32xf32>, vector<32x2xf32>, vector<16x2xf32> -> vector<16x2xf32>
    %c0_27 = arith.constant 0 : index
    %c0_28 = arith.constant 0 : index
    %51 = vector.load %arg7[%c0_27, %c0_28] : memref<16x1xf32, #tpu.memory_space<vmem>>, vector<16x1xf32>
    %52 = vector.broadcast %51 : vector<16x1xf32> to vector<16x2xf32>
    %53 = arith.addf %50, %52 : vector<16x2xf32>
    %cst_29 = arith.constant dense<0.000000e+00> : vector<16x256xf32>
    %54 = tpu.matmul %53, %23, %cst_29 {dimension_numbers = #tpu.dot_dimension_numbers<[1], [0], [0], [1], [0, 0, 1, 1], [], []>, precision = #tpu.contract_precision<fp32>} : vector<16x2xf32>, vector<2x256xf32>, vector<16x256xf32> -> vector<16x256xf32>
    %c0_30 = arith.constant 0 : index
    %c0_31 = arith.constant 0 : index
    %55 = vector.load %arg2[%c0_30, %c0_31] : memref<8x8xf32, #tpu.memory_space<vmem>>, vector<8x8xf32>
    %c0_32 = arith.constant 0 : index
    %c0_33 = arith.constant 0 : index
    %56 = vector.load %arg0[%c0_32, %c0_33] : memref<8x256xf32, #tpu.memory_space<vmem>>, vector<8x256xf32>
    %cst_34 = arith.constant dense<0.000000e+00> : vector<8x256xf32>
    %57 = tpu.matmul %55, %56, %cst_34 {dimension_numbers = #tpu.dot_dimension_numbers<[1], [0], [0], [1], [0, 0, 1, 1], [], []>, precision = #tpu.contract_precision<fp32>} : vector<8x8xf32>, vector<8x256xf32>, vector<8x256xf32> -> vector<8x256xf32>
    %c0_35 = arith.constant 0 : index
    %c0_36 = arith.constant 0 : index
    %58 = vector.load %arg3[%c0_35, %c0_36] : memref<1x8xf32, #tpu.memory_space<vmem>>, vector<1x8xf32>
    %59 = vector.shape_cast %58 : vector<1x8xf32> to vector<1x1x8xf32>
    %cst_37 = arith.constant dense<0.000000e+00> : vector<1xf32>
    %60 = vector.multi_reduction <add>, %59, %cst_37 [1, 2] : vector<1x1x8xf32> to vector<1xf32>
    %61 = vector.shape_cast %60 : vector<1xf32> to vector<1x1x1xf32>
    %62 = vector.extract %61[0, 0, 0] : f32 from vector<1x1x1xf32>
    %63 = vector.broadcast %62 : f32 to vector<1x1xf32>
    %cst_38 = arith.constant 1.280000e+02 : f32
    %64 = vector.broadcast %cst_38 : f32 to vector<1x1xf32>
    %65 = arith.mulf %63, %64 : vector<1x1xf32>
    %cst_39 = arith.constant dense<0.000000e+00> : vector<8xf32>
    %66 = vector.multi_reduction <add>, %57, %cst_39 [1] : vector<8x256xf32> to vector<8xf32>
    %67 = vector.shape_cast %66 : vector<8xf32> to vector<8x1xf32>
    %cst_40 = arith.constant 2.560000e+02 : f32
    %68 = vector.broadcast %cst_40 : f32 to vector<8x1xf32>
    %69 = arith.divf %67, %68 : vector<8x1xf32>
    %70 = vector.broadcast %69 : vector<8x1xf32> to vector<8x256xf32>
    %71 = arith.subf %57, %70 : vector<8x256xf32>
    %72 = arith.mulf %71, %71 : vector<8x256xf32>
    %cst_41 = arith.constant dense<0.000000e+00> : vector<8xf32>
    %73 = vector.multi_reduction <add>, %72, %cst_41 [1] : vector<8x256xf32> to vector<8xf32>
    %74 = vector.shape_cast %73 : vector<8xf32> to vector<8x1xf32>
    %cst_42 = arith.constant 2.550000e+02 : f32
    %75 = vector.broadcast %cst_42 : f32 to vector<8x1xf32>
    %76 = arith.divf %74, %75 : vector<8x1xf32>
    %77 = math.sqrt %76 : vector<8x1xf32>
    %cst_43 = arith.constant 1.000000e-07 : f32
    %78 = vector.broadcast %cst_43 : f32 to vector<8x1xf32>
    %79 = arith.addf %77, %78 : vector<8x1xf32>
    %80 = math.log %79 : vector<8x1xf32>
    %cst_44 = arith.constant 0.000000e+00 : f32
    %81 = vector.broadcast %cst_44 : f32 to vector<8x1xf32>
    %82 = arith.subf %81, %80 : vector<8x1xf32>
    %83 = math.exp %82 : vector<8x1xf32>
    %84 = vector.broadcast %83 : vector<8x1xf32> to vector<8x256xf32>
    %85 = arith.mulf %71, %84 : vector<8x256xf32>
    %86 = vector.shape_cast %82 : vector<8x1xf32> to vector<1x8x1xf32>
    %cst_45 = arith.constant dense<0.000000e+00> : vector<1xf32>
    %87 = vector.multi_reduction <add>, %86, %cst_45 [1, 2] : vector<1x8x1xf32> to vector<1xf32>
    %88 = vector.shape_cast %87 : vector<1xf32> to vector<1x1x1xf32>
    %89 = vector.extract %88[0, 0, 0] : f32 from vector<1x1x1xf32>
    %90 = vector.broadcast %89 : f32 to vector<1x1xf32>
    %cst_46 = arith.constant 1.280000e+02 : f32
    %91 = vector.broadcast %cst_46 : f32 to vector<1x1xf32>
    %92 = arith.mulf %90, %91 : vector<1x1xf32>
    %93 = arith.addf %65, %92 : vector<1x1xf32>
    %94 = vector.extract_strided_slice %85 {offsets = [0, 0], sizes = [4, 256], strides = [1, 1]} : vector<8x256xf32> to vector<4x256xf32>
    %95 = vector.extract_strided_slice %85 {offsets = [4, 0], sizes = [4, 256], strides = [1, 1]} : vector<8x256xf32> to vector<4x256xf32>
    %96 = tpu.concatenate %94, %94, %94, %94 in 0 : vector<4x256xf32>, vector<4x256xf32>, vector<4x256xf32>, vector<4x256xf32> -> vector<16x256xf32>
    %c1_i32_47 = arith.constant 1 : i32
    %97 = tpu.dynamic_rotate %96 by %c1_i32_47 dim 1 : vector<16x256xf32>, i32 -> vector<16x256xf32>
    %cst_48 = arith.constant 0.000000e+00 : f32
    %98 = vector.shape_cast %5 : vector<1x256xi1> to vector<1x256xi1>
    %99 = vector.broadcast %98 : vector<1x256xi1> to vector<16x256xi1>
    %100 = vector.broadcast %cst_48 : f32 to vector<16x256xf32>
    %101 = arith.select %99, %100, %97 : vector<16x256xi1>, vector<16x256xf32>
    %102 = arith.mulf %32, %101 : vector<16x256xf32>
    %103 = arith.addf %54, %102 : vector<16x256xf32>
    %104 = arith.mulf %40, %96 : vector<16x256xf32>
    %105 = arith.addf %103, %104 : vector<16x256xf32>
    %c255_i32_49 = arith.constant 255 : i32
    %106 = tpu.dynamic_rotate %96 by %c255_i32_49 dim 1 : vector<16x256xf32>, i32 -> vector<16x256xf32>
    %cst_50 = arith.constant 0.000000e+00 : f32
    %107 = vector.shape_cast %10 : vector<1x256xi1> to vector<1x256xi1>
    %108 = vector.broadcast %107 : vector<1x256xi1> to vector<16x256xi1>
    %109 = vector.broadcast %cst_50 : f32 to vector<16x256xf32>
    %110 = arith.select %108, %109, %106 : vector<16x256xi1>, vector<16x256xf32>
    %111 = arith.mulf %48, %110 : vector<16x256xf32>
    %112 = arith.addf %105, %111 : vector<16x256xf32>
    %cst_51 = arith.constant 0.000000e+00 : f32
    %113 = vector.broadcast %cst_51 : f32 to vector<16x256xf32>
    %114 = arith.maximumf %112, %113 : vector<16x256xf32>
    %c0_52 = arith.constant 0 : index
    %c0_53 = arith.constant 0 : index
    %115 = vector.load %arg8[%c0_52, %c0_53] : memref<16x16xf32, #tpu.memory_space<vmem>>, vector<16x16xf32>
    %cst_54 = arith.constant dense<0.000000e+00> : vector<16x256xf32>
    %116 = tpu.matmul %115, %114, %cst_54 {dimension_numbers = #tpu.dot_dimension_numbers<[1], [0], [0], [1], [0, 0, 1, 1], [], []>, precision = #tpu.contract_precision<fp32>} : vector<16x16xf32>, vector<16x256xf32>, vector<16x256xf32> -> vector<16x256xf32>
    %c0_55 = arith.constant 0 : index
    %c0_56 = arith.constant 0 : index
    %117 = vector.load %arg9[%c0_55, %c0_56] : memref<16x1xf32, #tpu.memory_space<vmem>>, vector<16x1xf32>
    %118 = vector.broadcast %117 : vector<16x1xf32> to vector<16x256xf32>
    %119 = arith.addf %116, %118 : vector<16x256xf32>
    %cst_57 = arith.constant 0.000000e+00 : f32
    %120 = vector.broadcast %cst_57 : f32 to vector<16x256xf32>
    %121 = arith.maximumf %119, %120 : vector<16x256xf32>
    %c0_58 = arith.constant 0 : index
    %c0_59 = arith.constant 0 : index
    %c0_60 = arith.constant 0 : index
    %122 = vector.load %arg10[%c0_58, %c0_59, %c0_60] : memref<3x8x16xf32, #tpu.memory_space<vmem>>, vector<1x8x16xf32>
    %123 = vector.shape_cast %122 : vector<1x8x16xf32> to vector<8x16xf32>
    %cst_61 = arith.constant dense<0.000000e+00> : vector<8x256xf32>
    %124 = tpu.matmul %123, %121, %cst_61 {dimension_numbers = #tpu.dot_dimension_numbers<[1], [0], [0], [1], [0, 0, 1, 1], [], []>, precision = #tpu.contract_precision<fp32>} : vector<8x16xf32>, vector<16x256xf32>, vector<8x256xf32> -> vector<8x256xf32>
    %c1_62 = arith.constant 1 : index
    %c0_63 = arith.constant 0 : index
    %c0_64 = arith.constant 0 : index
    %125 = vector.load %arg10[%c1_62, %c0_63, %c0_64] : memref<3x8x16xf32, #tpu.memory_space<vmem>>, vector<1x8x16xf32>
    %126 = vector.shape_cast %125 : vector<1x8x16xf32> to vector<8x16xf32>
    %cst_65 = arith.constant dense<0.000000e+00> : vector<8x256xf32>
    %127 = tpu.matmul %126, %121, %cst_65 {dimension_numbers = #tpu.dot_dimension_numbers<[1], [0], [0], [1], [0, 0, 1, 1], [], []>, precision = #tpu.contract_precision<fp32>} : vector<8x16xf32>, vector<16x256xf32>, vector<8x256xf32> -> vector<8x256xf32>
    %c2_66 = arith.constant 2 : index
    %c0_67 = arith.constant 0 : index
    %c0_68 = arith.constant 0 : index
    %128 = vector.load %arg10[%c2_66, %c0_67, %c0_68] : memref<3x8x16xf32, #tpu.memory_space<vmem>>, vector<1x8x16xf32>
    %129 = vector.shape_cast %128 : vector<1x8x16xf32> to vector<8x16xf32>
    %cst_69 = arith.constant dense<0.000000e+00> : vector<8x256xf32>
    %130 = tpu.matmul %129, %121, %cst_69 {dimension_numbers = #tpu.dot_dimension_numbers<[1], [0], [0], [1], [0, 0, 1, 1], [], []>, precision = #tpu.contract_precision<fp32>} : vector<8x16xf32>, vector<16x256xf32>, vector<8x256xf32> -> vector<8x256xf32>
    %c0_70 = arith.constant 0 : index
    %c0_71 = arith.constant 0 : index
    %131 = vector.load %arg11[%c0_70, %c0_71] : memref<8x1xf32, #tpu.memory_space<vmem>>, vector<8x1xf32>
    %c1_i32_72 = arith.constant 1 : i32
    %132 = tpu.dynamic_rotate %124 by %c1_i32_72 dim 1 : vector<8x256xf32>, i32 -> vector<8x256xf32>
    %cst_73 = arith.constant 0.000000e+00 : f32
    %133 = vector.shape_cast %5 : vector<1x256xi1> to vector<1x256xi1>
    %134 = vector.broadcast %133 : vector<1x256xi1> to vector<8x256xi1>
    %135 = vector.broadcast %cst_73 : f32 to vector<8x256xf32>
    %136 = arith.select %134, %135, %132 : vector<8x256xi1>, vector<8x256xf32>
    %137 = vector.broadcast %131 : vector<8x1xf32> to vector<8x256xf32>
    %138 = arith.addf %137, %136 : vector<8x256xf32>
    %139 = arith.addf %138, %127 : vector<8x256xf32>
    %c255_i32_74 = arith.constant 255 : i32
    %140 = tpu.dynamic_rotate %130 by %c255_i32_74 dim 1 : vector<8x256xf32>, i32 -> vector<8x256xf32>
    %cst_75 = arith.constant 0.000000e+00 : f32
    %141 = vector.shape_cast %10 : vector<1x256xi1> to vector<1x256xi1>
    %142 = vector.broadcast %141 : vector<1x256xi1> to vector<8x256xi1>
    %143 = vector.broadcast %cst_75 : f32 to vector<8x256xf32>
    %144 = arith.select %142, %143, %140 : vector<8x256xi1>, vector<8x256xf32>
    %145 = arith.addf %139, %144 : vector<8x256xf32>
    %146 = vector.extract_strided_slice %145 {offsets = [0, 0], sizes = [4, 256], strides = [1, 1]} : vector<8x256xf32> to vector<4x256xf32>
    %cst_76 = arith.constant 2.000000e+00 : f32
    %147 = vector.broadcast %cst_76 : f32 to vector<4x256xf32>
    %148 = arith.addf %146, %147 : vector<4x256xf32>
    %149 = arith.negf %148 : vector<4x256xf32>
    %150 = math.exp %149 : vector<4x256xf32>
    %cst_77 = arith.constant 1.000000e+00 : f32
    %151 = vector.broadcast %cst_77 : f32 to vector<4x256xf32>
    %152 = arith.addf %151, %150 : vector<4x256xf32>
    %153 = arith.divf %151, %152 : vector<4x256xf32>
    %cst_78 = arith.constant 1.000000e-07 : f32
    %154 = vector.broadcast %cst_78 : f32 to vector<4x256xf32>
    %155 = arith.addf %153, %154 : vector<4x256xf32>
    %156 = vector.extract_strided_slice %145 {offsets = [4, 0], sizes = [4, 256], strides = [1, 1]} : vector<8x256xf32> to vector<4x256xf32>
    %157 = arith.addf %95, %156 : vector<4x256xf32>
    %158 = arith.mulf %155, %157 : vector<4x256xf32>
    %c0_79 = arith.constant 0 : index
    %c0_80 = arith.constant 0 : index
    %159 = vector.load %arg12[%c0_79, %c0_80] : memref<8x256xf32, #tpu.memory_space<vmem>>, vector<4x256xf32>
    tpu.vector_store %arg12[%c0_79, %c0_80], %94 {strides = array<i32>} : memref<8x256xf32, #tpu.memory_space<vmem>>, vector<4x256xf32>,
    %c4 = arith.constant 4 : index
    %c0_81 = arith.constant 0 : index
    %160 = vector.load %arg12[%c4, %c0_81] : memref<8x256xf32, #tpu.memory_space<vmem>>, vector<4x256xf32>
    tpu.vector_store %arg12[%c4, %c0_81], %158 {strides = array<i32>} : memref<8x256xf32, #tpu.memory_space<vmem>>, vector<4x256xf32>,
    %161 = math.log %155 : vector<4x256xf32>
    %162 = vector.extract_strided_slice %161 {offsets = [0, 0], sizes = [4, 128], strides = [1, 1]} : vector<4x256xf32> to vector<4x128xf32>
    %163 = vector.shape_cast %162 : vector<4x128xf32> to vector<1x4x128xf32>
    %cst_82 = arith.constant dense<0.000000e+00> : vector<1xf32>
    %164 = vector.multi_reduction <add>, %163, %cst_82 [1, 2] : vector<1x4x128xf32> to vector<1xf32>
    %165 = vector.shape_cast %164 : vector<1xf32> to vector<1x1x1xf32>
    %166 = vector.extract %165[0, 0, 0] : f32 from vector<1x1x1xf32>
    %167 = vector.broadcast %166 : f32 to vector<1x1xf32>
    %168 = arith.addf %93, %167 : vector<1x1xf32>
    %169 = vector.shape_cast %168 : vector<1x1xf32> to vector<1x1xf32>
    %170 = vector.broadcast %169 : vector<1x1xf32> to vector<1x128xf32>
    %171 = vector.extract_strided_slice %161 {offsets = [0, 128], sizes = [4, 128], strides = [1, 1]} : vector<4x256xf32> to vector<4x128xf32>
    %172 = vector.shape_cast %171 : vector<4x128xf32> to vector<1x4x128xf32>
    %cst_83 = arith.constant dense<0.000000e+00> : vector<1xf32>
    %173 = vector.multi_reduction <add>, %172, %cst_83 [1, 2] : vector<1x4x128xf32> to vector<1xf32>
    %174 = vector.shape_cast %173 : vector<1xf32> to vector<1x1x1xf32>
    %175 = vector.extract %174[0, 0, 0] : f32 from vector<1x1x1xf32>
    %176 = vector.broadcast %175 : f32 to vector<1x1xf32>
    %177 = arith.addf %93, %176 : vector<1x1xf32>
    %178 = vector.shape_cast %177 : vector<1x1xf32> to vector<1x1xf32>
    %179 = vector.broadcast %178 : vector<1x1xf32> to vector<1x128xf32>
    %180 = tpu.concatenate %170, %179 in 0 : vector<1x128xf32>, vector<1x128xf32> -> vector<2x128xf32>
    %c0_84 = arith.constant 0 : index
    %c0_85 = arith.constant 0 : index
    %181 = vector.load %arg13[%c0_84, %c0_85] : memref<2x128xf32, #tpu.memory_space<vmem>>, vector<2x128xf32>
    tpu.vector_store %arg13[%c0_84, %c0_85], %180 {strides = array<i32>} : memref<2x128xf32, #tpu.memory_space<vmem>>, vector<2x128xf32>,
    return
  }
}

</mosaic_0001>

<llo_original>
// kernel: tpu_custom_call.1
$region0: #{tpu_custom_call.1}
  #allocation0 [shape = 'u32[]', space=smem, size = 0x4, offset = 0x4, fixed_abs, tag = 'smem constant byte address 0x4 - core index']
  #allocation1 [shape = 'u32[72,128]{1,0:T(1,128)}', space=vmem, size = 0x9000, scoped, tag = 'internal scratch']
  %s0 = inlined_call_operand.vmem [shape: f32[8,256], index: 0, kind: input, shape index: {}]
  %s1 = inlined_call_operand.vmem [shape: f32[32,2], index: 1, kind: input, shape index: {}]
  %s2 = inlined_call_operand.hbm [shape: f32[8,8], index: 2, kind: input, shape index: {}]
  %s3 = inlined_call_operand.vmem [shape: f32[1,8], index: 3, kind: input, shape index: {}]
  %s4 = inlined_call_operand.vmem [shape: f32[3,16,32], index: 4, kind: input, shape index: {}]
  %s5 = inlined_call_operand.vmem [shape: f32[3,16,1], index: 5, kind: input, shape index: {}]
  %s6 = inlined_call_operand.vmem [shape: f32[16,32], index: 6, kind: input, shape index: {}]
  %s7 = inlined_call_operand.vmem [shape: f32[16,1], index: 7, kind: input, shape index: {}]
  %s8 = inlined_call_operand.vmem [shape: f32[16,16], index: 8, kind: input, shape index: {}]
  %s9 = inlined_call_operand.vmem [shape: f32[16,1], index: 9, kind: input, shape index: {}]
  %s10 = inlined_call_operand.vmem [shape: f32[3,8,16], index: 10, kind: input, shape index: {}]
  %s11 = inlined_call_operand.vmem [shape: f32[8,1], index: 11, kind: input, shape index: {}]
  %s12 = inlined_call_operand.hbm [shape: f32[8,256], index: 12, kind: output, shape index: {0}]
  %s13 = inlined_call_operand.hbm [shape: f32[2,128], index: 13, kind: output, shape index: {1}]
  %14 = xla_tuple %s12, %s13
  %s15 = sld [smem:[#allocation0]]
  $region70: #{tpu_custom_call.1} parent=0
    _
  %s17 = ssub.s32 1, %s15
  %s18 = scalar_select 0, %s17, %s15
  $region1: #{tpu_custom_call.1} parent=0
    #allocation2 [shape = 'u8[4096]{0}', space=vmem, size = 0x1000, scoped, tag = 'input window, operand 2, single buffered']
    #allocation3 [shape = 's32[1]{0}', space=sflag, size = 0x4, scoped, tag = 'scoped memory for tpu_custom_call.1']
    #allocation4 [shape = 's32[1]{0}', space=sflag, size = 0x4, scoped, tag = 'scoped memory for tpu_custom_call.1']
    #allocation5 [shape = 'u8[8192]{0}', space=vmem, size = 0x2000, scoped, tag = 'output window, operand 0, single buffered']
    #allocation6 [shape = 'u8[1024]{0}', space=vmem, size = 0x400, scoped, tag = 'output window, operand 1, single buffered']
    #allocation7 [shape = 's32[1]{0}', space=sflag, size = 0x4, scoped, tag = 'scoped memory for tpu_custom_call.1']
    %19 = vsyncpa [#allocation3], 0
    %20 = vsyncpa [#allocation4], 0
    %21 = vsyncpa [#allocation7], 0
    // Predicated region
    $region2: #{tpu_custom_call.1} parent=1 // pred_check
      _
    $region3: #{tpu_custom_call.1} parent=1 // pred_check_branch
      %23 = sbr.rel (0) target = $region5
    $region4: #{tpu_custom_call.1} parent=1 // pred_region
      _
    $region5: #{tpu_custom_call.1} parent=1 // pred_fallthru
      _
    // Predicated region
    $region6: #{tpu_custom_call.1} parent=1 // pred_check
      _
    $region7: #{tpu_custom_call.1} parent=1 // pred_check_branch
      %25 = sbr.rel (0) target = $region9
    $region8: #{tpu_custom_call.1} parent=1 // pred_region
      _
    $region9: #{tpu_custom_call.1} parent=1 // pred_fallthru
      _
    // Predicated region
    $region10: #{tpu_custom_call.1} parent=1 // pred_check
      _
    $region11: #{tpu_custom_call.1} parent=1 // pred_check_branch
      %27 = sbr.rel (0) target = $region13
    $region12: #{tpu_custom_call.1} parent=1 // pred_region
      %29 = vsyncadd [#allocation3], 0
      %s31 = sshll.u32 %s2, 4
      %s32 = int_to_ptr.hbm [resolvable:$true] %s31
      %s33 = sshll.u32 [#allocation2], 4
      %s34 = int_to_ptr.vmem [resolvable:$true] %s33
      %36 = dma.hbm_to_vmem [thread:$0]  %s32, 128, %s34, [#allocation3]
    $region13: #{tpu_custom_call.1} parent=1 // pred_fallthru
      _
    // Predicated region
    $region14: #{tpu_custom_call.1} parent=1 // pred_check
      _
    $region15: #{tpu_custom_call.1} parent=1 // pred_check_branch
      %38 = sbr.rel (0) target = $region17
    $region16: #{tpu_custom_call.1} parent=1 // pred_region
      _
    $region17: #{tpu_custom_call.1} parent=1 // pred_fallthru
      _
    // Predicated region
    $region18: #{tpu_custom_call.1} parent=1 // pred_check
      _
    $region19: #{tpu_custom_call.1} parent=1 // pred_check_branch
      %40 = sbr.rel (0) target = $region21
    $region20: #{tpu_custom_call.1} parent=1 // pred_region
      _
    $region21: #{tpu_custom_call.1} parent=1 // pred_fallthru
      _
    // Predicated region
    $region22: #{tpu_custom_call.1} parent=1 // pred_check
      _
    $region23: #{tpu_custom_call.1} parent=1 // pred_check_branch
      %42 = sbr.rel (0) target = $region25
    $region24: #{tpu_custom_call.1} parent=1 // pred_region
      _
    $region25: #{tpu_custom_call.1} parent=1 // pred_fallthru
      _
    // Predicated region
    $region26: #{tpu_custom_call.1} parent=1 // pred_check
      _
    $region27: #{tpu_custom_call.1} parent=1 // pred_check_branch
      %44 = sbr.rel (0) target = $region29
    $region28: #{tpu_custom_call.1} parent=1 // pred_region
      _
    $region29: #{tpu_custom_call.1} parent=1 // pred_fallthru
      _
    // Predicated region
    $region30: #{tpu_custom_call.1} parent=1 // pred_check
      _
    $region31: #{tpu_custom_call.1} parent=1 // pred_check_branch
      %46 = sbr.rel (0) target = $region33
    $region32: #{tpu_custom_call.1} parent=1 // pred_region
      _
    $region33: #{tpu_custom_call.1} parent=1 // pred_fallthru
      _
    // Predicated region
    $region34: #{tpu_custom_call.1} parent=1 // pred_check
      _
    $region35: #{tpu_custom_call.1} parent=1 // pred_check_branch
      %48 = sbr.rel (0) target = $region37
    $region36: #{tpu_custom_call.1} parent=1 // pred_region
      _
    $region37: #{tpu_custom_call.1} parent=1 // pred_fallthru
      _
    // Predicated region
    $region38: #{tpu_custom_call.1} parent=1 // pred_check
      _
    $region39: #{tpu_custom_call.1} parent=1 // pred_check_branch
      %50 = sbr.rel (0) target = $region41
    $region40: #{tpu_custom_call.1} parent=1 // pred_region
      _
    $region41: #{tpu_custom_call.1} parent=1 // pred_fallthru
      _
    // Predicated region
    $region42: #{tpu_custom_call.1} parent=1 // pred_check
      _
    $region43: #{tpu_custom_call.1} parent=1 // pred_check_branch
      %52 = sbr.rel (0) target = $region45
    $region44: #{tpu_custom_call.1} parent=1 // pred_region
      _
    $region45: #{tpu_custom_call.1} parent=1 // pred_fallthru
      _
    // Predicated region
    $region46: #{tpu_custom_call.1} parent=1 // pred_check
      _
    $region47: #{tpu_custom_call.1} parent=1 // pred_check_branch
      %54 = sbr.rel (0) target = $region49
    $region48: #{tpu_custom_call.1} parent=1 // pred_region
      _
    $region49: #{tpu_custom_call.1} parent=1 // pred_fallthru
      _
    // Predicated region
    $region50: #{tpu_custom_call.1} parent=1 // pred_check
      _
    $region51: #{tpu_custom_call.1} parent=1 // pred_check_branch
      %56 = sbr.rel (0) target = $region53
    $region52: #{tpu_custom_call.1} parent=1 // pred_region
      %58 = dma.done [#allocation3], 128
    $region53: #{tpu_custom_call.1} parent=1 // pred_fallthru
      _
    %v59 = vlaneseq
    %v60 = vand.u32 %v59, 127
    %v61 = vadd.s32 %v60, 128
    %vm62 = vcmp.eq.s32.totalorder %v60, 0
    %vm63 = vcmp.eq.s32.totalorder %v61, 0
    %vm64 = vcmp.eq.s32.totalorder %v60, 128
    %vm65 = vcmp.eq.s32.totalorder %v61, 128
    %vm66 = vmor %vm62, %vm64
    %vm67 = vmor %vm63, %vm65
    %vm68 = vcmp.eq.s32.totalorder %v60, 127
    %vm69 = vcmp.eq.s32.totalorder %v61, 127
    %vm70 = vcmp.eq.s32.totalorder %v60, 255
    %vm71 = vcmp.eq.s32.totalorder %v61, 255
    %vm72 = vmor %vm68, %vm70
    %vm73 = vmor %vm69, %vm71
    %v74 = vlaneseq
    %v75 = vshrl.u32 %v74, 7
    %v76 = vmul.u32 %v75, 128
    %vm77 = vcmp.ge.s32.totalorder %v60, %v76
    %vm78 = vcmp.ge.s32.totalorder %v61, %v76
    %v79 = vadd.s32 %v75, 1
    %v80 = vmul.u32 %v79, 128
    %vm81 = vcmp.lt.s32.totalorder %v60, %v80
    %vm82 = vcmp.lt.s32.totalorder %v61, %v80
    %vm83 = vmand %vm77, %vm81
    %vm84 = vmand %vm78, %vm82
    %v85 = vsel %vm83, 1, 0
    %v86 = vsel %vm84, 1, 0
    %v87 = vcvt.s32.f32 %v85
    %v88 = vcvt.s32.f32 %v86
    %v89 = vld [vmem:[%s1] sm:$0xff]
    %v90 = vld [vmem:[%s1 + $0x8] sm:$0xff]
    %v91 = vld [vmem:[%s1 + $0x10] sm:$0xff]
    %v92 = vld [vmem:[%s1 + $0x18] sm:$0xff]
    %v93 = vld [vmem:[%s4] sm:$0xff]
    %v94 = vld [vmem:[%s4 + $0x8] sm:$0xff]
    %v95 = vld [vmem:[%s5] sm:$0xff]
    %v96 = vld [vmem:[%s5 + $0x8] sm:$0xff]
    %98 = vset.pattern.permute.xlu0 0
    %99 = vperm.xlu0 %98, %v95
    %v100 = vpop.permute.xlu0 %99
    %103 = vset.pattern.permute.xlu0 0
    %104 = vperm.xlu0 %103, %v96
    %v105 = vpop.permute.xlu0 %104
    %vm107 = vcmask 261120
    %v109 = vsel %vm107, %v93, 0
    %v112 = vsel %vm107, %v94, 0
    %114 = vmatpush.msra.mxu0 0.0
    %115 = vmatpush.msra.mxu0 0.0
    %116 = vmatpush.msra.mxu0 0.0
    %117 = vmatpush.msra.mxu0 0.0
    %118 = vmatpush.msra.mxu0 0.0
    %119 = vmatpush.msra.mxu0 0.0
    %120 = vmatpush.msra.mxu0 0.0
    %121 = vmatpush.msra.mxu0 0.0
    %122 = vmatpush.msra.mxu0 0.0
    %123 = vmatpush.msra.mxu0 0.0
    %124 = vmatpush.msra.mxu0 0.0
    %125 = vmatpush.msra.mxu0 0.0
    %v126 = vand.u32 %v92, 4294901760
    %127 = vmatpush.msra.mxu0 %v126
    %v128 = vand.u32 %v91, 4294901760
    %129 = vmatpush.msra.mxu0 %v128
    %v130 = vand.u32 %v90, 4294901760
    %131 = vmatpush.msra.mxu0 %v130
    %v132 = vand.u32 %v89, 4294901760
    %133 = vmatpush.msra.mxu0 %v132
    %v134 = vand.u32 %v109, 4294901760
    %v135 = vsub.f32 %v109, %v134
    %v136 = vand.u32 %v135, 4294901760
    %v137 = vsub.f32 %v135, %v136
    %v138 = vand.u32 %v137, 4294901760
    %139 = vmatmul.f32.gmra.mxu0 %v138
    %v140 = vpop.f32.mrf.mxu0
    %v141 = vadd.f32 %v100, %v140
    %v142 = vand.u32 %v112, 4294901760
    %v143 = vsub.f32 %v112, %v142
    %v144 = vand.u32 %v143, 4294901760
    %v145 = vsub.f32 %v143, %v144
    %v146 = vand.u32 %v145, 4294901760
    %147 = vmatmul.f32.gmra.mxu0 %v146
    %v148 = vpop.f32.mrf.mxu0
    %v149 = vadd.f32 %v105, %v148
    %150 = vdwg.mxu0
    %151 = vmatpush.msra.mxu0 0.0
    %152 = vmatpush.msra.mxu0 0.0
    %153 = vmatpush.msra.mxu0 0.0
    %154 = vmatpush.msra.mxu0 0.0
    %155 = vmatpush.msra.mxu0 0.0
    %156 = vmatpush.msra.mxu0 0.0
    %157 = vmatpush.msra.mxu0 0.0
    %158 = vmatpush.msra.mxu0 0.0
    %159 = vmatpush.msra.mxu0 0.0
    %160 = vmatpush.msra.mxu0 0.0
    %161 = vmatpush.msra.mxu0 0.0
    %162 = vmatpush.msra.mxu0 0.0
    %v163 = vand.u32 %v92, 4294901760
    %v164 = vsub.f32 %v92, %v163
    %v165 = vand.u32 %v164, 4294901760
    %v166 = vsub.f32 %v164, %v165
    %v167 = vand.u32 %v166, 4294901760
    %168 = vmatpush.msra.mxu0 %v167
    %v169 = vand.u32 %v91, 4294901760
    %v170 = vsub.f32 %v91, %v169
    %v171 = vand.u32 %v170, 4294901760
    %v172 = vsub.f32 %v170, %v171
    %v173 = vand.u32 %v172, 4294901760
    %174 = vmatpush.msra.mxu0 %v173
    %v175 = vand.u32 %v90, 4294901760
    %v176 = vsub.f32 %v90, %v175
    %v177 = vand.u32 %v176, 4294901760
    %v178 = vsub.f32 %v176, %v177
    %v179 = vand.u32 %v178, 4294901760
    %180 = vmatpush.msra.mxu0 %v179
    %v181 = vand.u32 %v89, 4294901760
    %v182 = vsub.f32 %v89, %v181
    %v183 = vand.u32 %v182, 4294901760
    %v184 = vsub.f32 %v182, %v183
    %v185 = vand.u32 %v184, 4294901760
    %186 = vmatpush.msra.mxu0 %v185
    %v187 = vand.u32 %v109, 4294901760
    %188 = vmatmul.f32.gmra.mxu0 %v187
    %v189 = vpop.f32.mrf.mxu0
    %v190 = vadd.f32 %v141, %v189
    %v191 = vand.u32 %v112, 4294901760
    %192 = vmatmul.f32.gmra.mxu0 %v191
    %v193 = vpop.f32.mrf.mxu0
    %v194 = vadd.f32 %v149, %v193
    %195 = vdwg.mxu0
    %196 = vmatpush.msra.mxu0 0.0
    %197 = vmatpush.msra.mxu0 0.0
    %198 = vmatpush.msra.mxu0 0.0
    %199 = vmatpush.msra.mxu0 0.0
    %200 = vmatpush.msra.mxu0 0.0
    %201 = vmatpush.msra.mxu0 0.0
    %202 = vmatpush.msra.mxu0 0.0
    %203 = vmatpush.msra.mxu0 0.0
    %204 = vmatpush.msra.mxu0 0.0
    %205 = vmatpush.msra.mxu0 0.0
    %206 = vmatpush.msra.mxu0 0.0
    %207 = vmatpush.msra.mxu0 0.0
    %v208 = vand.u32 %v92, 4294901760
    %v209 = vsub.f32 %v92, %v208
    %210 = vmatpush.msra.mxu0 %v209
    %v211 = vand.u32 %v91, 4294901760
    %v212 = vsub.f32 %v91, %v211
    %213 = vmatpush.msra.mxu0 %v212
    %v214 = vand.u32 %v90, 4294901760
    %v215 = vsub.f32 %v90, %v214
    %216 = vmatpush.msra.mxu0 %v215
    %v217 = vand.u32 %v89, 4294901760
    %v218 = vsub.f32 %v89, %v217
    %219 = vmatpush.msra.mxu0 %v218
    %v220 = vand.u32 %v109, 4294901760
    %v221 = vsub.f32 %v109, %v220
    %222 = vmatmul.f32.gmra.mxu0 %v221
    %v223 = vpop.f32.mrf.mxu0
    %v224 = vadd.f32 %v190, %v223
    %v225 = vand.u32 %v112, 4294901760
    %v226 = vsub.f32 %v112, %v225
    %227 = vmatmul.f32.gmra.mxu0 %v226
    %v228 = vpop.f32.mrf.mxu0
    %v229 = vadd.f32 %v194, %v228
    %230 = vdwg.mxu0
    %231 = vmatpush.msra.mxu0 0.0
    %232 = vmatpush.msra.mxu0 0.0
    %233 = vmatpush.msra.mxu0 0.0
    %234 = vmatpush.msra.mxu0 0.0
    %235 = vmatpush.msra.mxu0 0.0
    %236 = vmatpush.msra.mxu0 0.0
    %237 = vmatpush.msra.mxu0 0.0
    %238 = vmatpush.msra.mxu0 0.0
    %239 = vmatpush.msra.mxu0 0.0
    %240 = vmatpush.msra.mxu0 0.0
    %241 = vmatpush.msra.mxu0 0.0
    %242 = vmatpush.msra.mxu0 0.0
    %v243 = vand.u32 %v92, 4294901760
    %244 = vmatpush.msra.mxu0 %v243
    %v245 = vand.u32 %v91, 4294901760
    %246 = vmatpush.msra.mxu0 %v245
    %v247 = vand.u32 %v90, 4294901760
    %248 = vmatpush.msra.mxu0 %v247
    %v249 = vand.u32 %v89, 4294901760
    %250 = vmatpush.msra.mxu0 %v249
    %v251 = vand.u32 %v109, 4294901760
    %v252 = vsub.f32 %v109, %v251
    %v253 = vand.u32 %v252, 4294901760
    %254 = vmatmul.f32.gmra.mxu0 %v253
    %v255 = vpop.f32.mrf.mxu0
    %v256 = vadd.f32 %v224, %v255
    %v257 = vand.u32 %v112, 4294901760
    %v258 = vsub.f32 %v112, %v257
    %v259 = vand.u32 %v258, 4294901760
    %260 = vmatmul.f32.gmra.mxu0 %v259
    %v261 = vpop.f32.mrf.mxu0
    %v262 = vadd.f32 %v229, %v261
    %263 = vdwg.mxu0
    %264 = vmatpush.msra.mxu0 0.0
    %265 = vmatpush.msra.mxu0 0.0
    %266 = vmatpush.msra.mxu0 0.0
    %267 = vmatpush.msra.mxu0 0.0
    %268 = vmatpush.msra.mxu0 0.0
    %269 = vmatpush.msra.mxu0 0.0
    %270 = vmatpush.msra.mxu0 0.0
    %271 = vmatpush.msra.mxu0 0.0
    %272 = vmatpush.msra.mxu0 0.0
    %273 = vmatpush.msra.mxu0 0.0
    %274 = vmatpush.msra.mxu0 0.0
    %275 = vmatpush.msra.mxu0 0.0
    %v276 = vand.u32 %v92, 4294901760
    %v277 = vsub.f32 %v92, %v276
    %v278 = vand.u32 %v277, 4294901760
    %279 = vmatpush.msra.mxu0 %v278
    %v280 = vand.u32 %v91, 4294901760
    %v281 = vsub.f32 %v91, %v280
    %v282 = vand.u32 %v281, 4294901760
    %283 = vmatpush.msra.mxu0 %v282
    %v284 = vand.u32 %v90, 4294901760
    %v285 = vsub.f32 %v90, %v284
    %v286 = vand.u32 %v285, 4294901760
    %287 = vmatpush.msra.mxu0 %v286
    %v288 = vand.u32 %v89, 4294901760
    %v289 = vsub.f32 %v89, %v288
    %v290 = vand.u32 %v289, 4294901760
    %291 = vmatpush.msra.mxu0 %v290
    %v292 = vand.u32 %v109, 4294901760
    %293 = vmatmul.f32.gmra.mxu0 %v292
    %v294 = vpop.f32.mrf.mxu0
    %v295 = vadd.f32 %v256, %v294
    %v296 = vand.u32 %v112, 4294901760
    %297 = vmatmul.f32.gmra.mxu0 %v296
    %v298 = vpop.f32.mrf.mxu0
    %v299 = vadd.f32 %v262, %v298
    %300 = vdwg.mxu0
    %301 = vmatpush.msra.mxu0 0.0
    %302 = vmatpush.msra.mxu0 0.0
    %303 = vmatpush.msra.mxu0 0.0
    %304 = vmatpush.msra.mxu0 0.0
    %305 = vmatpush.msra.mxu0 0.0
    %306 = vmatpush.msra.mxu0 0.0
    %307 = vmatpush.msra.mxu0 0.0
    %308 = vmatpush.msra.mxu0 0.0
    %309 = vmatpush.msra.mxu0 0.0
    %310 = vmatpush.msra.mxu0 0.0
    %311 = vmatpush.msra.mxu0 0.0
    %312 = vmatpush.msra.mxu0 0.0
    %v313 = vand.u32 %v92, 4294901760
    %314 = vmatpush.msra.mxu0 %v313
    %v315 = vand.u32 %v91, 4294901760
    %316 = vmatpush.msra.mxu0 %v315
    %v317 = vand.u32 %v90, 4294901760
    %318 = vmatpush.msra.mxu0 %v317
    %v319 = vand.u32 %v89, 4294901760
    %320 = vmatpush.msra.mxu0 %v319
    %v321 = vand.u32 %v109, 4294901760
    %322 = vmatmul.f32.gmra.mxu0 %v321
    %v323 = vpop.f32.mrf.mxu0
    %v324 = vadd.f32 %v295, %v323
    %v325 = vand.u32 %v112, 4294901760
    %326 = vmatmul.f32.gmra.mxu0 %v325
    %v327 = vpop.f32.mrf.mxu0
    %v328 = vadd.f32 %v299, %v327
    %329 = vdwg.mxu0
    %vm330 = vcmask 15360
    %v332 = vsel %vm330, %v324, 0
    %v335 = vsel %vm330, %v328, 0
    %vm337 = vcmask 1041408
    %v339 = vsel %vm337, %v87, 0
    %v342 = vsel %vm337, %v88, 0
    %344 = vmatpush.msra.mxu0 0.0
    %345 = vmatpush.msra.mxu0 0.0
    %346 = vmatpush.msra.mxu0 0.0
    %347 = vmatpush.msra.mxu0 0.0
    %348 = vmatpush.msra.mxu0 0.0
    %349 = vmatpush.msra.mxu0 0.0
    %350 = vmatpush.msra.mxu0 0.0
    %351 = vmatpush.msra.mxu0 0.0
    %352 = vmatpush.msra.mxu0 0.0
    %353 = vmatpush.msra.mxu0 0.0
    %354 = vmatpush.msra.mxu0 0.0
    %355 = vmatpush.msra.mxu0 0.0
    %356 = vmatpush.msra.mxu0 0.0
    %357 = vmatpush.msra.mxu0 0.0
    %358 = vmatpush.msra.mxu0 0.0
    %v359 = vand.u32 %v339, 4294901760
    %360 = vmatpush.msra.mxu0 %v359
    %v361 = vand.u32 %v332, 4294901760
    %v362 = vsub.f32 %v332, %v361
    %v363 = vand.u32 %v362, 4294901760
    %v364 = vsub.f32 %v362, %v363
    %v365 = vand.u32 %v364, 4294901760
    %366 = vmatmul.f32.gmra.mxu0 %v365
    %v367 = vpop.f32.mrf.mxu0
    %v368 = vadd.f32 0.0, %v367
    %v369 = vand.u32 %v335, 4294901760
    %v370 = vsub.f32 %v335, %v369
    %v371 = vand.u32 %v370, 4294901760
    %v372 = vsub.f32 %v370, %v371
    %v373 = vand.u32 %v372, 4294901760
    %374 = vmatmul.f32.gmra.mxu0 %v373
    %v375 = vpop.f32.mrf.mxu0
    %v376 = vadd.f32 0.0, %v375
    %377 = vdwg.mxu0
    %378 = vmatpush.msra.mxu0 0.0
    %379 = vmatpush.msra.mxu0 0.0
    %380 = vmatpush.msra.mxu0 0.0
    %381 = vmatpush.msra.mxu0 0.0
    %382 = vmatpush.msra.mxu0 0.0
    %383 = vmatpush.msra.mxu0 0.0
    %384 = vmatpush.msra.mxu0 0.0
    %385 = vmatpush.msra.mxu0 0.0
    %386 = vmatpush.msra.mxu0 0.0
    %387 = vmatpush.msra.mxu0 0.0
    %388 = vmatpush.msra.mxu0 0.0
    %389 = vmatpush.msra.mxu0 0.0
    %390 = vmatpush.msra.mxu0 0.0
    %391 = vmatpush.msra.mxu0 0.0
    %392 = vmatpush.msra.mxu0 0.0
    %v393 = vand.u32 %v339, 4294901760
    %v394 = vsub.f32 %v339, %v393
    %v395 = vand.u32 %v394, 4294901760
    %v396 = vsub.f32 %v394, %v395
    %v397 = vand.u32 %v396, 4294901760
    %398 = vmatpush.msra.mxu0 %v397
    %v399 = vand.u32 %v332, 4294901760
    %400 = vmatmul.f32.gmra.mxu0 %v399
    %v401 = vpop.f32.mrf.mxu0
    %v402 = vadd.f32 %v368, %v401
    %v403 = vand.u32 %v335, 4294901760
    %404 = vmatmul.f32.gmra.mxu0 %v403
    %v405 = vpop.f32.mrf.mxu0
    %v406 = vadd.f32 %v376, %v405
    %407 = vdwg.mxu0
    %408 = vmatpush.msra.mxu0 0.0
    %409 = vmatpush.msra.mxu0 0.0
    %410 = vmatpush.msra.mxu0 0.0
    %411 = vmatpush.msra.mxu0 0.0
    %412 = vmatpush.msra.mxu0 0.0
    %413 = vmatpush.msra.mxu0 0.0
    %414 = vmatpush.msra.mxu0 0.0
    %415 = vmatpush.msra.mxu0 0.0
    %416 = vmatpush.msra.mxu0 0.0
    %417 = vmatpush.msra.mxu0 0.0
    %418 = vmatpush.msra.mxu0 0.0
    %419 = vmatpush.msra.mxu0 0.0
    %420 = vmatpush.msra.mxu0 0.0
    %421 = vmatpush.msra.mxu0 0.0
    %422 = vmatpush.msra.mxu0 0.0
    %v423 = vand.u32 %v339, 4294901760
    %v424 = vsub.f32 %v339, %v423
    %425 = vmatpush.msra.mxu0 %v424
    %v426 = vand.u32 %v332, 4294901760
    %v427 = vsub.f32 %v332, %v426
    %428 = vmatmul.f32.gmra.mxu0 %v427
    %v429 = vpop.f32.mrf.mxu0
    %v430 = vadd.f32 %v402, %v429
    %v431 = vand.u32 %v335, 4294901760
    %v432 = vsub.f32 %v335, %v431
    %433 = vmatmul.f32.gmra.mxu0 %v432
    %v434 = vpop.f32.mrf.mxu0
    %v435 = vadd.f32 %v406, %v434
    %436 = vdwg.mxu0
    %437 = vmatpush.msra.mxu0 0.0
    %438 = vmatpush.msra.mxu0 0.0
    %439 = vmatpush.msra.mxu0 0.0
    %440 = vmatpush.msra.mxu0 0.0
    %441 = vmatpush.msra.mxu0 0.0
    %442 = vmatpush.msra.mxu0 0.0
    %443 = vmatpush.msra.mxu0 0.0
    %444 = vmatpush.msra.mxu0 0.0
    %445 = vmatpush.msra.mxu0 0.0
    %446 = vmatpush.msra.mxu0 0.0
    %447 = vmatpush.msra.mxu0 0.0
    %448 = vmatpush.msra.mxu0 0.0
    %449 = vmatpush.msra.mxu0 0.0
    %450 = vmatpush.msra.mxu0 0.0
    %451 = vmatpush.msra.mxu0 0.0
    %v452 = vand.u32 %v339, 4294901760
    %453 = vmatpush.msra.mxu0 %v452
    %v454 = vand.u32 %v332, 4294901760
    %v455 = vsub.f32 %v332, %v454
    %v456 = vand.u32 %v455, 4294901760
    %457 = vmatmul.f32.gmra.mxu0 %v456
    %v458 = vpop.f32.mrf.mxu0
    %v459 = vadd.f32 %v430, %v458
    %v460 = vand.u32 %v335, 4294901760
    %v461 = vsub.f32 %v335, %v460
    %v462 = vand.u32 %v461, 4294901760
    %463 = vmatmul.f32.gmra.mxu0 %v462
    %v464 = vpop.f32.mrf.mxu0
    %v465 = vadd.f32 %v435, %v464
    %466 = vdwg.mxu0
    %467 = vmatpush.msra.mxu0 0.0
    %468 = vmatpush.msra.mxu0 0.0
    %469 = vmatpush.msra.mxu0 0.0
    %470 = vmatpush.msra.mxu0 0.0
    %471 = vmatpush.msra.mxu0 0.0
    %472 = vmatpush.msra.mxu0 0.0
    %473 = vmatpush.msra.mxu0 0.0
    %474 = vmatpush.msra.mxu0 0.0
    %475 = vmatpush.msra.mxu0 0.0
    %476 = vmatpush.msra.mxu0 0.0
    %477 = vmatpush.msra.mxu0 0.0
    %478 = vmatpush.msra.mxu0 0.0
    %479 = vmatpush.msra.mxu0 0.0
    %480 = vmatpush.msra.mxu0 0.0
    %481 = vmatpush.msra.mxu0 0.0
    %v482 = vand.u32 %v339, 4294901760
    %v483 = vsub.f32 %v339, %v482
    %v484 = vand.u32 %v483, 4294901760
    %485 = vmatpush.msra.mxu0 %v484
    %v486 = vand.u32 %v332, 4294901760
    %487 = vmatmul.f32.gmra.mxu0 %v486
    %v488 = vpop.f32.mrf.mxu0
    %v489 = vadd.f32 %v459, %v488
    %v490 = vand.u32 %v335, 4294901760
    %491 = vmatmul.f32.gmra.mxu0 %v490
    %v492 = vpop.f32.mrf.mxu0
    %v493 = vadd.f32 %v465, %v492
    %494 = vdwg.mxu0
    %495 = vmatpush.msra.mxu0 0.0
    %496 = vmatpush.msra.mxu0 0.0
    %497 = vmatpush.msra.mxu0 0.0
    %498 = vmatpush.msra.mxu0 0.0
    %499 = vmatpush.msra.mxu0 0.0
    %500 = vmatpush.msra.mxu0 0.0
    %501 = vmatpush.msra.mxu0 0.0
    %502 = vmatpush.msra.mxu0 0.0
    %503 = vmatpush.msra.mxu0 0.0
    %504 = vmatpush.msra.mxu0 0.0
    %505 = vmatpush.msra.mxu0 0.0
    %506 = vmatpush.msra.mxu0 0.0
    %507 = vmatpush.msra.mxu0 0.0
    %508 = vmatpush.msra.mxu0 0.0
    %509 = vmatpush.msra.mxu0 0.0
    %v510 = vand.u32 %v339, 4294901760
    %511 = vmatpush.msra.mxu0 %v510
    %v512 = vand.u32 %v332, 4294901760
    %513 = vmatmul.f32.gmra.mxu0 %v512
    %v514 = vpop.f32.mrf.mxu0
    %v515 = vadd.f32 %v489, %v514
    %v516 = vand.u32 %v335, 4294901760
    %517 = vmatmul.f32.gmra.mxu0 %v516
    %v518 = vpop.f32.mrf.mxu0
    %v519 = vadd.f32 %v493, %v518
    %520 = vdwg.mxu0
    %521 = vmatpush.msra.mxu0 0.0
    %522 = vmatpush.msra.mxu0 0.0
    %523 = vmatpush.msra.mxu0 0.0
    %524 = vmatpush.msra.mxu0 0.0
    %525 = vmatpush.msra.mxu0 0.0
    %526 = vmatpush.msra.mxu0 0.0
    %527 = vmatpush.msra.mxu0 0.0
    %528 = vmatpush.msra.mxu0 0.0
    %529 = vmatpush.msra.mxu0 0.0
    %530 = vmatpush.msra.mxu0 0.0
    %531 = vmatpush.msra.mxu0 0.0
    %532 = vmatpush.msra.mxu0 0.0
    %533 = vmatpush.msra.mxu0 0.0
    %534 = vmatpush.msra.mxu0 0.0
    %535 = vmatpush.msra.mxu0 0.0
    %v536 = vand.u32 %v342, 4294901760
    %537 = vmatpush.msra.mxu0 %v536
    %v538 = vand.u32 %v332, 4294901760
    %v539 = vsub.f32 %v332, %v538
    %v540 = vand.u32 %v539, 4294901760
    %v541 = vsub.f32 %v539, %v540
    %v542 = vand.u32 %v541, 4294901760
    %543 = vmatmul.f32.gmra.mxu0 %v542
    %v544 = vpop.f32.mrf.mxu0
    %v545 = vadd.f32 0.0, %v544
    %v546 = vand.u32 %v335, 4294901760
    %v547 = vsub.f32 %v335, %v546
    %v548 = vand.u32 %v547, 4294901760
    %v549 = vsub.f32 %v547, %v548
    %v550 = vand.u32 %v549, 4294901760
    %551 = vmatmul.f32.gmra.mxu0 %v550
    %v552 = vpop.f32.mrf.mxu0
    %v553 = vadd.f32 0.0, %v552
    %554 = vdwg.mxu0
    %555 = vmatpush.msra.mxu0 0.0
    %556 = vmatpush.msra.mxu0 0.0
    %557 = vmatpush.msra.mxu0 0.0
    %558 = vmatpush.msra.mxu0 0.0
    %559 = vmatpush.msra.mxu0 0.0
    %560 = vmatpush.msra.mxu0 0.0
    %561 = vmatpush.msra.mxu0 0.0
    %562 = vmatpush.msra.mxu0 0.0
    %563 = vmatpush.msra.mxu0 0.0
    %564 = vmatpush.msra.mxu0 0.0
    %565 = vmatpush.msra.mxu0 0.0
    %566 = vmatpush.msra.mxu0 0.0
    %567 = vmatpush.msra.mxu0 0.0
    %568 = vmatpush.msra.mxu0 0.0
    %569 = vmatpush.msra.mxu0 0.0
    %v570 = vand.u32 %v342, 4294901760
    %v571 = vsub.f32 %v342, %v570
    %v572 = vand.u32 %v571, 4294901760
    %v573 = vsub.f32 %v571, %v572
    %v574 = vand.u32 %v573, 4294901760
    %575 = vmatpush.msra.mxu0 %v574
    %v576 = vand.u32 %v332, 4294901760
    %577 = vmatmul.f32.gmra.mxu0 %v576
    %v578 = vpop.f32.mrf.mxu0
    %v579 = vadd.f32 %v545, %v578
    %v580 = vand.u32 %v335, 4294901760
    %581 = vmatmul.f32.gmra.mxu0 %v580
    %v582 = vpop.f32.mrf.mxu0
    %v583 = vadd.f32 %v553, %v582
    %584 = vdwg.mxu0
    %585 = vmatpush.msra.mxu0 0.0
    %586 = vmatpush.msra.mxu0 0.0
    %587 = vmatpush.msra.mxu0 0.0
    %588 = vmatpush.msra.mxu0 0.0
    %589 = vmatpush.msra.mxu0 0.0
    %590 = vmatpush.msra.mxu0 0.0
    %591 = vmatpush.msra.mxu0 0.0
    %592 = vmatpush.msra.mxu0 0.0
    %593 = vmatpush.msra.mxu0 0.0
    %594 = vmatpush.msra.mxu0 0.0
    %595 = vmatpush.msra.mxu0 0.0
    %596 = vmatpush.msra.mxu0 0.0
    %597 = vmatpush.msra.mxu0 0.0
    %598 = vmatpush.msra.mxu0 0.0
    %599 = vmatpush.msra.mxu0 0.0
    %v600 = vand.u32 %v342, 4294901760
    %v601 = vsub.f32 %v342, %v600
    %602 = vmatpush.msra.mxu0 %v601
    %v603 = vand.u32 %v332, 4294901760
    %v604 = vsub.f32 %v332, %v603
    %605 = vmatmul.f32.gmra.mxu0 %v604
    %v606 = vpop.f32.mrf.mxu0
    %v607 = vadd.f32 %v579, %v606
    %v608 = vand.u32 %v335, 4294901760
    %v609 = vsub.f32 %v335, %v608
    %610 = vmatmul.f32.gmra.mxu0 %v609
    %v611 = vpop.f32.mrf.mxu0
    %v612 = vadd.f32 %v583, %v611
    %613 = vdwg.mxu0
    %614 = vmatpush.msra.mxu0 0.0
    %615 = vmatpush.msra.mxu0 0.0
    %616 = vmatpush.msra.mxu0 0.0
    %617 = vmatpush.msra.mxu0 0.0
    %618 = vmatpush.msra.mxu0 0.0
    %619 = vmatpush.msra.mxu0 0.0
    %620 = vmatpush.msra.mxu0 0.0
    %621 = vmatpush.msra.mxu0 0.0
    %622 = vmatpush.msra.mxu0 0.0
    %623 = vmatpush.msra.mxu0 0.0
    %624 = vmatpush.msra.mxu0 0.0
    %625 = vmatpush.msra.mxu0 0.0
    %626 = vmatpush.msra.mxu0 0.0
    %627 = vmatpush.msra.mxu0 0.0
    %628 = vmatpush.msra.mxu0 0.0
    %v629 = vand.u32 %v342, 4294901760
    %630 = vmatpush.msra.mxu0 %v629
    %v631 = vand.u32 %v332, 4294901760
    %v632 = vsub.f32 %v332, %v631
    %v633 = vand.u32 %v632, 4294901760
    %634 = vmatmul.f32.gmra.mxu0 %v633
    %v635 = vpop.f32.mrf.mxu0
    %v636 = vadd.f32 %v607, %v635
    %v637 = vand.u32 %v335, 4294901760
    %v638 = vsub.f32 %v335, %v637
    %v639 = vand.u32 %v638, 4294901760
    %640 = vmatmul.f32.gmra.mxu0 %v639
    %v641 = vpop.f32.mrf.mxu0
    %v642 = vadd.f32 %v612, %v641
    %643 = vdwg.mxu0
    %644 = vmatpush.msra.mxu0 0.0
    %645 = vmatpush.msra.mxu0 0.0
    %646 = vmatpush.msra.mxu0 0.0
    %647 = vmatpush.msra.mxu0 0.0
    %648 = vmatpush.msra.mxu0 0.0
    %649 = vmatpush.msra.mxu0 0.0
    %650 = vmatpush.msra.mxu0 0.0
    %651 = vmatpush.msra.mxu0 0.0
    %652 = vmatpush.msra.mxu0 0.0
    %653 = vmatpush.msra.mxu0 0.0
    %654 = vmatpush.msra.mxu0 0.0
    %655 = vmatpush.msra.mxu0 0.0
    %656 = vmatpush.msra.mxu0 0.0
    %657 = vmatpush.msra.mxu0 0.0
    %658 = vmatpush.msra.mxu0 0.0
    %v659 = vand.u32 %v342, 4294901760
    %v660 = vsub.f32 %v342, %v659
    %v661 = vand.u32 %v660, 4294901760
    %662 = vmatpush.msra.mxu0 %v661
    %v663 = vand.u32 %v332, 4294901760
    %664 = vmatmul.f32.gmra.mxu0 %v663
    %v665 = vpop.f32.mrf.mxu0
    %v666 = vadd.f32 %v636, %v665
    %v667 = vand.u32 %v335, 4294901760
    %668 = vmatmul.f32.gmra.mxu0 %v667
    %v669 = vpop.f32.mrf.mxu0
    %v670 = vadd.f32 %v642, %v669
    %671 = vdwg.mxu0
    %672 = vmatpush.msra.mxu0 0.0
    %673 = vmatpush.msra.mxu0 0.0
    %674 = vmatpush.msra.mxu0 0.0
    %675 = vmatpush.msra.mxu0 0.0
    %676 = vmatpush.msra.mxu0 0.0
    %677 = vmatpush.msra.mxu0 0.0
    %678 = vmatpush.msra.mxu0 0.0
    %679 = vmatpush.msra.mxu0 0.0
    %680 = vmatpush.msra.mxu0 0.0
    %681 = vmatpush.msra.mxu0 0.0
    %682 = vmatpush.msra.mxu0 0.0
    %683 = vmatpush.msra.mxu0 0.0
    %684 = vmatpush.msra.mxu0 0.0
    %685 = vmatpush.msra.mxu0 0.0
    %686 = vmatpush.msra.mxu0 0.0
    %v687 = vand.u32 %v342, 4294901760
    %688 = vmatpush.msra.mxu0 %v687
    %v689 = vand.u32 %v332, 4294901760
    %690 = vmatmul.f32.gmra.mxu0 %v689
    %v691 = vpop.f32.mrf.mxu0
    %v692 = vadd.f32 %v666, %v691
    %v693 = vand.u32 %v335, 4294901760
    %694 = vmatmul.f32.gmra.mxu0 %v693
    %v695 = vpop.f32.mrf.mxu0
    %v696 = vadd.f32 %v670, %v695
    %697 = vdwg.mxu0
    %s698 = scalar_lea.vmem %s4, 16
    %v699 = vld [vmem:[%s698] sm:$0xff]
    %v700 = vld [vmem:[%s698 + $0x8] sm:$0xff]
    %s701 = scalar_lea.vmem %s5, 16
    %v702 = vld [vmem:[%s701] sm:$0xff]
    %v703 = vld [vmem:[%s701 + $0x8] sm:$0xff]
    %705 = vset.pattern.permute.xlu0 0
    %706 = vperm.xlu0 %705, %v702
    %v707 = vpop.permute.xlu0 %706
    %710 = vset.pattern.permute.xlu0 0
    %711 = vperm.xlu0 %710, %v703
    %v712 = vpop.permute.xlu0 %711
    %v715 = vsel %vm107, %v699, 0
    %v718 = vsel %vm107, %v700, 0
    %720 = vmatpush.msra.mxu0 0.0
    %721 = vmatpush.msra.mxu0 0.0
    %722 = vmatpush.msra.mxu0 0.0
    %723 = vmatpush.msra.mxu0 0.0
    %724 = vmatpush.msra.mxu0 0.0
    %725 = vmatpush.msra.mxu0 0.0
    %726 = vmatpush.msra.mxu0 0.0
    %727 = vmatpush.msra.mxu0 0.0
    %728 = vmatpush.msra.mxu0 0.0
    %729 = vmatpush.msra.mxu0 0.0
    %730 = vmatpush.msra.mxu0 0.0
    %731 = vmatpush.msra.mxu0 0.0
    %v732 = vand.u32 %v92, 4294901760
    %733 = vmatpush.msra.mxu0 %v732
    %v734 = vand.u32 %v91, 4294901760
    %735 = vmatpush.msra.mxu0 %v734
    %v736 = vand.u32 %v90, 4294901760
    %737 = vmatpush.msra.mxu0 %v736
    %v738 = vand.u32 %v89, 4294901760
    %739 = vmatpush.msra.mxu0 %v738
    %v740 = vand.u32 %v715, 4294901760
    %v741 = vsub.f32 %v715, %v740
    %v742 = vand.u32 %v741, 4294901760
    %v743 = vsub.f32 %v741, %v742
    %v744 = vand.u32 %v743, 4294901760
    %745 = vmatmul.f32.gmra.mxu0 %v744
    %v746 = vpop.f32.mrf.mxu0
    %v747 = vadd.f32 %v707, %v746
    %v748 = vand.u32 %v718, 4294901760
    %v749 = vsub.f32 %v718, %v748
    %v750 = vand.u32 %v749, 4294901760
    %v751 = vsub.f32 %v749, %v750
    %v752 = vand.u32 %v751, 4294901760
    %753 = vmatmul.f32.gmra.mxu0 %v752
    %v754 = vpop.f32.mrf.mxu0
    %v755 = vadd.f32 %v712, %v754
    %756 = vdwg.mxu0
    %757 = vmatpush.msra.mxu0 0.0
    %758 = vmatpush.msra.mxu0 0.0
    %759 = vmatpush.msra.mxu0 0.0
    %760 = vmatpush.msra.mxu0 0.0
    %761 = vmatpush.msra.mxu0 0.0
    %762 = vmatpush.msra.mxu0 0.0
    %763 = vmatpush.msra.mxu0 0.0
    %764 = vmatpush.msra.mxu0 0.0
    %765 = vmatpush.msra.mxu0 0.0
    %766 = vmatpush.msra.mxu0 0.0
    %767 = vmatpush.msra.mxu0 0.0
    %768 = vmatpush.msra.mxu0 0.0
    %v769 = vand.u32 %v92, 4294901760
    %v770 = vsub.f32 %v92, %v769
    %v771 = vand.u32 %v770, 4294901760
    %v772 = vsub.f32 %v770, %v771
    %v773 = vand.u32 %v772, 4294901760
    %774 = vmatpush.msra.mxu0 %v773
    %v775 = vand.u32 %v91, 4294901760
    %v776 = vsub.f32 %v91, %v775
    %v777 = vand.u32 %v776, 4294901760
    %v778 = vsub.f32 %v776, %v777
    %v779 = vand.u32 %v778, 4294901760
    %780 = vmatpush.msra.mxu0 %v779
    %v781 = vand.u32 %v90, 4294901760
    %v782 = vsub.f32 %v90, %v781
    %v783 = vand.u32 %v782, 4294901760
    %v784 = vsub.f32 %v782, %v783
    %v785 = vand.u32 %v784, 4294901760
    %786 = vmatpush.msra.mxu0 %v785
    %v787 = vand.u32 %v89, 4294901760
    %v788 = vsub.f32 %v89, %v787
    %v789 = vand.u32 %v788, 4294901760
    %v790 = vsub.f32 %v788, %v789
    %v791 = vand.u32 %v790, 4294901760
    %792 = vmatpush.msra.mxu0 %v791
    %v793 = vand.u32 %v715, 4294901760
    %794 = vmatmul.f32.gmra.mxu0 %v793
    %v795 = vpop.f32.mrf.mxu0
    %v796 = vadd.f32 %v747, %v795
    %v797 = vand.u32 %v718, 4294901760
    %798 = vmatmul.f32.gmra.mxu0 %v797
    %v799 = vpop.f32.mrf.mxu0
    %v800 = vadd.f32 %v755, %v799
    %801 = vdwg.mxu0
    %802 = vmatpush.msra.mxu0 0.0
    %803 = vmatpush.msra.mxu0 0.0
    %804 = vmatpush.msra.mxu0 0.0
    %805 = vmatpush.msra.mxu0 0.0
    %806 = vmatpush.msra.mxu0 0.0
    %807 = vmatpush.msra.mxu0 0.0
    %808 = vmatpush.msra.mxu0 0.0
    %809 = vmatpush.msra.mxu0 0.0
    %810 = vmatpush.msra.mxu0 0.0
    %811 = vmatpush.msra.mxu0 0.0
    %812 = vmatpush.msra.mxu0 0.0
    %813 = vmatpush.msra.mxu0 0.0
    %v814 = vand.u32 %v92, 4294901760
    %v815 = vsub.f32 %v92, %v814
    %816 = vmatpush.msra.mxu0 %v815
    %v817 = vand.u32 %v91, 4294901760
    %v818 = vsub.f32 %v91, %v817
    %819 = vmatpush.msra.mxu0 %v818
    %v820 = vand.u32 %v90, 4294901760
    %v821 = vsub.f32 %v90, %v820
    %822 = vmatpush.msra.mxu0 %v821
    %v823 = vand.u32 %v89, 4294901760
    %v824 = vsub.f32 %v89, %v823
    %825 = vmatpush.msra.mxu0 %v824
    %v826 = vand.u32 %v715, 4294901760
    %v827 = vsub.f32 %v715, %v826
    %828 = vmatmul.f32.gmra.mxu0 %v827
    %v829 = vpop.f32.mrf.mxu0
    %v830 = vadd.f32 %v796, %v829
    %v831 = vand.u32 %v718, 4294901760
    %v832 = vsub.f32 %v718, %v831
    %833 = vmatmul.f32.gmra.mxu0 %v832
    %v834 = vpop.f32.mrf.mxu0
    %v835 = vadd.f32 %v800, %v834
    %836 = vdwg.mxu0
    %837 = vmatpush.msra.mxu0 0.0
    %838 = vmatpush.msra.mxu0 0.0
    %839 = vmatpush.msra.mxu0 0.0
    %840 = vmatpush.msra.mxu0 0.0
    %841 = vmatpush.msra.mxu0 0.0
    %842 = vmatpush.msra.mxu0 0.0
    %843 = vmatpush.msra.mxu0 0.0
    %844 = vmatpush.msra.mxu0 0.0
    %845 = vmatpush.msra.mxu0 0.0
    %846 = vmatpush.msra.mxu0 0.0
    %847 = vmatpush.msra.mxu0 0.0
    %848 = vmatpush.msra.mxu0 0.0
    %v849 = vand.u32 %v92, 4294901760
    %850 = vmatpush.msra.mxu0 %v849
    %v851 = vand.u32 %v91, 4294901760
    %852 = vmatpush.msra.mxu0 %v851
    %v853 = vand.u32 %v90, 4294901760
    %854 = vmatpush.msra.mxu0 %v853
    %v855 = vand.u32 %v89, 4294901760
    %856 = vmatpush.msra.mxu0 %v855
    %v857 = vand.u32 %v715, 4294901760
    %v858 = vsub.f32 %v715, %v857
    %v859 = vand.u32 %v858, 4294901760
    %860 = vmatmul.f32.gmra.mxu0 %v859
    %v861 = vpop.f32.mrf.mxu0
    %v862 = vadd.f32 %v830, %v861
    %v863 = vand.u32 %v718, 4294901760
    %v864 = vsub.f32 %v718, %v863
    %v865 = vand.u32 %v864, 4294901760
    %866 = vmatmul.f32.gmra.mxu0 %v865
    %v867 = vpop.f32.mrf.mxu0
    %v868 = vadd.f32 %v835, %v867
    %869 = vdwg.mxu0
    %870 = vmatpush.msra.mxu0 0.0
    %871 = vmatpush.msra.mxu0 0.0
    %872 = vmatpush.msra.mxu0 0.0
    %873 = vmatpush.msra.mxu0 0.0
    %874 = vmatpush.msra.mxu0 0.0
    %875 = vmatpush.msra.mxu0 0.0
    %876 = vmatpush.msra.mxu0 0.0
    %877 = vmatpush.msra.mxu0 0.0
    %878 = vmatpush.msra.mxu0 0.0
    %879 = vmatpush.msra.mxu0 0.0
    %880 = vmatpush.msra.mxu0 0.0
    %881 = vmatpush.msra.mxu0 0.0
    %v882 = vand.u32 %v92, 4294901760
    %v883 = vsub.f32 %v92, %v882
    %v884 = vand.u32 %v883, 4294901760
    %885 = vmatpush.msra.mxu0 %v884
    %v886 = vand.u32 %v91, 4294901760
    %v887 = vsub.f32 %v91, %v886
    %v888 = vand.u32 %v887, 4294901760
    %889 = vmatpush.msra.mxu0 %v888
    %v890 = vand.u32 %v90, 4294901760
    %v891 = vsub.f32 %v90, %v890
    %v892 = vand.u32 %v891, 4294901760
    %893 = vmatpush.msra.mxu0 %v892
    %v894 = vand.u32 %v89, 4294901760
    %v895 = vsub.f32 %v89, %v894
    %v896 = vand.u32 %v895, 4294901760
    %897 = vmatpush.msra.mxu0 %v896
    %v898 = vand.u32 %v715, 4294901760
    %899 = vmatmul.f32.gmra.mxu0 %v898
    %v900 = vpop.f32.mrf.mxu0
    %v901 = vadd.f32 %v862, %v900
    %v902 = vand.u32 %v718, 4294901760
    %903 = vmatmul.f32.gmra.mxu0 %v902
    %v904 = vpop.f32.mrf.mxu0
    %v905 = vadd.f32 %v868, %v904
    %906 = vdwg.mxu0
    %907 = vmatpush.msra.mxu0 0.0
    %908 = vmatpush.msra.mxu0 0.0
    %909 = vmatpush.msra.mxu0 0.0
    %910 = vmatpush.msra.mxu0 0.0
    %911 = vmatpush.msra.mxu0 0.0
    %912 = vmatpush.msra.mxu0 0.0
    %913 = vmatpush.msra.mxu0 0.0
    %914 = vmatpush.msra.mxu0 0.0
    %915 = vmatpush.msra.mxu0 0.0
    %916 = vmatpush.msra.mxu0 0.0
    %917 = vmatpush.msra.mxu0 0.0
    %918 = vmatpush.msra.mxu0 0.0
    %v919 = vand.u32 %v92, 4294901760
    %920 = vmatpush.msra.mxu0 %v919
    %v921 = vand.u32 %v91, 4294901760
    %922 = vmatpush.msra.mxu0 %v921
    %v923 = vand.u32 %v90, 4294901760
    %924 = vmatpush.msra.mxu0 %v923
    %v925 = vand.u32 %v89, 4294901760
    %926 = vmatpush.msra.mxu0 %v925
    %v927 = vand.u32 %v715, 4294901760
    %928 = vmatmul.f32.gmra.mxu0 %v927
    %v929 = vpop.f32.mrf.mxu0
    %v930 = vadd.f32 %v901, %v929
    %v931 = vand.u32 %v718, 4294901760
    %932 = vmatmul.f32.gmra.mxu0 %v931
    %v933 = vpop.f32.mrf.mxu0
    %v934 = vadd.f32 %v905, %v933
    %935 = vdwg.mxu0
    %v937 = vsel %vm330, %v930, 0
    %v940 = vsel %vm330, %v934, 0
    %942 = vmatpush.msra.mxu0 0.0
    %943 = vmatpush.msra.mxu0 0.0
    %944 = vmatpush.msra.mxu0 0.0
    %945 = vmatpush.msra.mxu0 0.0
    %946 = vmatpush.msra.mxu0 0.0
    %947 = vmatpush.msra.mxu0 0.0
    %948 = vmatpush.msra.mxu0 0.0
    %949 = vmatpush.msra.mxu0 0.0
    %950 = vmatpush.msra.mxu0 0.0
    %951 = vmatpush.msra.mxu0 0.0
    %952 = vmatpush.msra.mxu0 0.0
    %953 = vmatpush.msra.mxu0 0.0
    %954 = vmatpush.msra.mxu0 0.0
    %955 = vmatpush.msra.mxu0 0.0
    %956 = vmatpush.msra.mxu0 0.0
    %v957 = vand.u32 %v339, 4294901760
    %958 = vmatpush.msra.mxu0 %v957
    %v959 = vand.u32 %v937, 4294901760
    %v960 = vsub.f32 %v937, %v959
    %v961 = vand.u32 %v960, 4294901760
    %v962 = vsub.f32 %v960, %v961
    %v963 = vand.u32 %v962, 4294901760
    %964 = vmatmul.f32.gmra.mxu0 %v963
    %v965 = vpop.f32.mrf.mxu0
    %v966 = vadd.f32 0.0, %v965
    %v967 = vand.u32 %v940, 4294901760
    %v968 = vsub.f32 %v940, %v967
    %v969 = vand.u32 %v968, 4294901760
    %v970 = vsub.f32 %v968, %v969
    %v971 = vand.u32 %v970, 4294901760
    %972 = vmatmul.f32.gmra.mxu0 %v971
    %v973 = vpop.f32.mrf.mxu0
    %v974 = vadd.f32 0.0, %v973
    %975 = vdwg.mxu0
    %976 = vmatpush.msra.mxu0 0.0
    %977 = vmatpush.msra.mxu0 0.0
    %978 = vmatpush.msra.mxu0 0.0
    %979 = vmatpush.msra.mxu0 0.0
    %980 = vmatpush.msra.mxu0 0.0
    %981 = vmatpush.msra.mxu0 0.0
    %982 = vmatpush.msra.mxu0 0.0
    %983 = vmatpush.msra.mxu0 0.0
    %984 = vmatpush.msra.mxu0 0.0
    %985 = vmatpush.msra.mxu0 0.0
    %986 = vmatpush.msra.mxu0 0.0
    %987 = vmatpush.msra.mxu0 0.0
    %988 = vmatpush.msra.mxu0 0.0
    %989 = vmatpush.msra.mxu0 0.0
    %990 = vmatpush.msra.mxu0 0.0
    %v991 = vand.u32 %v339, 4294901760
    %v992 = vsub.f32 %v339, %v991
    %v993 = vand.u32 %v992, 4294901760
    %v994 = vsub.f32 %v992, %v993
    %v995 = vand.u32 %v994, 4294901760
    %996 = vmatpush.msra.mxu0 %v995
    %v997 = vand.u32 %v937, 4294901760
    %998 = vmatmul.f32.gmra.mxu0 %v997
    %v999 = vpop.f32.mrf.mxu0
    %v1000 = vadd.f32 %v966, %v999
    %v1001 = vand.u32 %v940, 4294901760
    %1002 = vmatmul.f32.gmra.mxu0 %v1001
    %v1003 = vpop.f32.mrf.mxu0
    %v1004 = vadd.f32 %v974, %v1003
    %1005 = vdwg.mxu0
    %1006 = vmatpush.msra.mxu0 0.0
    %1007 = vmatpush.msra.mxu0 0.0
    %1008 = vmatpush.msra.mxu0 0.0
    %1009 = vmatpush.msra.mxu0 0.0
    %1010 = vmatpush.msra.mxu0 0.0
    %1011 = vmatpush.msra.mxu0 0.0
    %1012 = vmatpush.msra.mxu0 0.0
    %1013 = vmatpush.msra.mxu0 0.0
    %1014 = vmatpush.msra.mxu0 0.0
    %1015 = vmatpush.msra.mxu0 0.0
    %1016 = vmatpush.msra.mxu0 0.0
    %1017 = vmatpush.msra.mxu0 0.0
    %1018 = vmatpush.msra.mxu0 0.0
    %1019 = vmatpush.msra.mxu0 0.0
    %1020 = vmatpush.msra.mxu0 0.0
    %v1021 = vand.u32 %v339, 4294901760
    %v1022 = vsub.f32 %v339, %v1021
    %1023 = vmatpush.msra.mxu0 %v1022
    %v1024 = vand.u32 %v937, 4294901760
    %v1025 = vsub.f32 %v937, %v1024
    %1026 = vmatmul.f32.gmra.mxu0 %v1025
    %v1027 = vpop.f32.mrf.mxu0
    %v1028 = vadd.f32 %v1000, %v1027
    %v1029 = vand.u32 %v940, 4294901760
    %v1030 = vsub.f32 %v940, %v1029
    %1031 = vmatmul.f32.gmra.mxu0 %v1030
    %v1032 = vpop.f32.mrf.mxu0
    %v1033 = vadd.f32 %v1004, %v1032
    %1034 = vdwg.mxu0
    %1035 = vmatpush.msra.mxu0 0.0
    %1036 = vmatpush.msra.mxu0 0.0
    %1037 = vmatpush.msra.mxu0 0.0
    %1038 = vmatpush.msra.mxu0 0.0
    %1039 = vmatpush.msra.mxu0 0.0
    %1040 = vmatpush.msra.mxu0 0.0
    %1041 = vmatpush.msra.mxu0 0.0
    %1042 = vmatpush.msra.mxu0 0.0
    %1043 = vmatpush.msra.mxu0 0.0
    %1044 = vmatpush.msra.mxu0 0.0
    %1045 = vmatpush.msra.mxu0 0.0
    %1046 = vmatpush.msra.mxu0 0.0
    %1047 = vmatpush.msra.mxu0 0.0
    %1048 = vmatpush.msra.mxu0 0.0
    %1049 = vmatpush.msra.mxu0 0.0
    %v1050 = vand.u32 %v339, 4294901760
    %1051 = vmatpush.msra.mxu0 %v1050
    %v1052 = vand.u32 %v937, 4294901760
    %v1053 = vsub.f32 %v937, %v1052
    %v1054 = vand.u32 %v1053, 4294901760
    %1055 = vmatmul.f32.gmra.mxu0 %v1054
    %v1056 = vpop.f32.mrf.mxu0
    %v1057 = vadd.f32 %v1028, %v1056
    %v1058 = vand.u32 %v940, 4294901760
    %v1059 = vsub.f32 %v940, %v1058
    %v1060 = vand.u32 %v1059, 4294901760
    %1061 = vmatmul.f32.gmra.mxu0 %v1060
    %v1062 = vpop.f32.mrf.mxu0
    %v1063 = vadd.f32 %v1033, %v1062
    %1064 = vdwg.mxu0
    %1065 = vmatpush.msra.mxu0 0.0
    %1066 = vmatpush.msra.mxu0 0.0
    %1067 = vmatpush.msra.mxu0 0.0
    %1068 = vmatpush.msra.mxu0 0.0
    %1069 = vmatpush.msra.mxu0 0.0
    %1070 = vmatpush.msra.mxu0 0.0
    %1071 = vmatpush.msra.mxu0 0.0
    %1072 = vmatpush.msra.mxu0 0.0
    %1073 = vmatpush.msra.mxu0 0.0
    %1074 = vmatpush.msra.mxu0 0.0
    %1075 = vmatpush.msra.mxu0 0.0
    %1076 = vmatpush.msra.mxu0 0.0
    %1077 = vmatpush.msra.mxu0 0.0
    %1078 = vmatpush.msra.mxu0 0.0
    %1079 = vmatpush.msra.mxu0 0.0
    %v1080 = vand.u32 %v339, 4294901760
    %v1081 = vsub.f32 %v339, %v1080
    %v1082 = vand.u32 %v1081, 4294901760
    %1083 = vmatpush.msra.mxu0 %v1082
    %v1084 = vand.u32 %v937, 4294901760
    %1085 = vmatmul.f32.gmra.mxu0 %v1084
    %v1086 = vpop.f32.mrf.mxu0
    %v1087 = vadd.f32 %v1057, %v1086
    %v1088 = vand.u32 %v940, 4294901760
    %1089 = vmatmul.f32.gmra.mxu0 %v1088
    %v1090 = vpop.f32.mrf.mxu0
    %v1091 = vadd.f32 %v1063, %v1090
    %1092 = vdwg.mxu0
    %1093 = vmatpush.msra.mxu0 0.0
    %1094 = vmatpush.msra.mxu0 0.0
    %1095 = vmatpush.msra.mxu0 0.0
    %1096 = vmatpush.msra.mxu0 0.0
    %1097 = vmatpush.msra.mxu0 0.0
    %1098 = vmatpush.msra.mxu0 0.0
    %1099 = vmatpush.msra.mxu0 0.0
    %1100 = vmatpush.msra.mxu0 0.0
    %1101 = vmatpush.msra.mxu0 0.0
    %1102 = vmatpush.msra.mxu0 0.0
    %1103 = vmatpush.msra.mxu0 0.0
    %1104 = vmatpush.msra.mxu0 0.0
    %1105 = vmatpush.msra.mxu0 0.0
    %1106 = vmatpush.msra.mxu0 0.0
    %1107 = vmatpush.msra.mxu0 0.0
    %v1108 = vand.u32 %v339, 4294901760
    %1109 = vmatpush.msra.mxu0 %v1108
    %v1110 = vand.u32 %v937, 4294901760
    %1111 = vmatmul.f32.gmra.mxu0 %v1110
    %v1112 = vpop.f32.mrf.mxu0
    %v1113 = vadd.f32 %v1087, %v1112
    %v1114 = vand.u32 %v940, 4294901760
    %1115 = vmatmul.f32.gmra.mxu0 %v1114
    %v1116 = vpop.f32.mrf.mxu0
    %v1117 = vadd.f32 %v1091, %v1116
    %1118 = vdwg.mxu0
    %1119 = vmatpush.msra.mxu0 0.0
    %1120 = vmatpush.msra.mxu0 0.0
    %1121 = vmatpush.msra.mxu0 0.0
    %1122 = vmatpush.msra.mxu0 0.0
    %1123 = vmatpush.msra.mxu0 0.0
    %1124 = vmatpush.msra.mxu0 0.0
    %1125 = vmatpush.msra.mxu0 0.0
    %1126 = vmatpush.msra.mxu0 0.0
    %1127 = vmatpush.msra.mxu0 0.0
    %1128 = vmatpush.msra.mxu0 0.0
    %1129 = vmatpush.msra.mxu0 0.0
    %1130 = vmatpush.msra.mxu0 0.0
    %1131 = vmatpush.msra.mxu0 0.0
    %1132 = vmatpush.msra.mxu0 0.0
    %1133 = vmatpush.msra.mxu0 0.0
    %v1134 = vand.u32 %v342, 4294901760
    %1135 = vmatpush.msra.mxu0 %v1134
    %v1136 = vand.u32 %v937, 4294901760
    %v1137 = vsub.f32 %v937, %v1136
    %v1138 = vand.u32 %v1137, 4294901760
    %v1139 = vsub.f32 %v1137, %v1138
    %v1140 = vand.u32 %v1139, 4294901760
    %1141 = vmatmul.f32.gmra.mxu0 %v1140
    %v1142 = vpop.f32.mrf.mxu0
    %v1143 = vadd.f32 0.0, %v1142
    %v1144 = vand.u32 %v940, 4294901760
    %v1145 = vsub.f32 %v940, %v1144
    %v1146 = vand.u32 %v1145, 4294901760
    %v1147 = vsub.f32 %v1145, %v1146
    %v1148 = vand.u32 %v1147, 4294901760
    %1149 = vmatmul.f32.gmra.mxu0 %v1148
    %v1150 = vpop.f32.mrf.mxu0
    %v1151 = vadd.f32 0.0, %v1150
    %1152 = vdwg.mxu0
    %1153 = vmatpush.msra.mxu0 0.0
    %1154 = vmatpush.msra.mxu0 0.0
    %1155 = vmatpush.msra.mxu0 0.0
    %1156 = vmatpush.msra.mxu0 0.0
    %1157 = vmatpush.msra.mxu0 0.0
    %1158 = vmatpush.msra.mxu0 0.0
    %1159 = vmatpush.msra.mxu0 0.0
    %1160 = vmatpush.msra.mxu0 0.0
    %1161 = vmatpush.msra.mxu0 0.0
    %1162 = vmatpush.msra.mxu0 0.0
    %1163 = vmatpush.msra.mxu0 0.0
    %1164 = vmatpush.msra.mxu0 0.0
    %1165 = vmatpush.msra.mxu0 0.0
    %1166 = vmatpush.msra.mxu0 0.0
    %1167 = vmatpush.msra.mxu0 0.0
    %v1168 = vand.u32 %v342, 4294901760
    %v1169 = vsub.f32 %v342, %v1168
    %v1170 = vand.u32 %v1169, 4294901760
    %v1171 = vsub.f32 %v1169, %v1170
    %v1172 = vand.u32 %v1171, 4294901760
    %1173 = vmatpush.msra.mxu0 %v1172
    %v1174 = vand.u32 %v937, 4294901760
    %1175 = vmatmul.f32.gmra.mxu0 %v1174
    %v1176 = vpop.f32.mrf.mxu0
    %v1177 = vadd.f32 %v1143, %v1176
    %v1178 = vand.u32 %v940, 4294901760
    %1179 = vmatmul.f32.gmra.mxu0 %v1178
    %v1180 = vpop.f32.mrf.mxu0
    %v1181 = vadd.f32 %v1151, %v1180
    %1182 = vdwg.mxu0
    %1183 = vmatpush.msra.mxu0 0.0
    %1184 = vmatpush.msra.mxu0 0.0
    %1185 = vmatpush.msra.mxu0 0.0
    %1186 = vmatpush.msra.mxu0 0.0
    %1187 = vmatpush.msra.mxu0 0.0
    %1188 = vmatpush.msra.mxu0 0.0
    %1189 = vmatpush.msra.mxu0 0.0
    %1190 = vmatpush.msra.mxu0 0.0
    %1191 = vmatpush.msra.mxu0 0.0
    %1192 = vmatpush.msra.mxu0 0.0
    %1193 = vmatpush.msra.mxu0 0.0
    %1194 = vmatpush.msra.mxu0 0.0
    %1195 = vmatpush.msra.mxu0 0.0
    %1196 = vmatpush.msra.mxu0 0.0
    %1197 = vmatpush.msra.mxu0 0.0
    %v1198 = vand.u32 %v342, 4294901760
    %v1199 = vsub.f32 %v342, %v1198
    %1200 = vmatpush.msra.mxu0 %v1199
    %v1201 = vand.u32 %v937, 4294901760
    %v1202 = vsub.f32 %v937, %v1201
    %1203 = vmatmul.f32.gmra.mxu0 %v1202
    %v1204 = vpop.f32.mrf.mxu0
    %v1205 = vadd.f32 %v1177, %v1204
    %v1206 = vand.u32 %v940, 4294901760
    %v1207 = vsub.f32 %v940, %v1206
    %1208 = vmatmul.f32.gmra.mxu0 %v1207
    %v1209 = vpop.f32.mrf.mxu0
    %v1210 = vadd.f32 %v1181, %v1209
    %1211 = vdwg.mxu0
    %1212 = vmatpush.msra.mxu0 0.0
    %1213 = vmatpush.msra.mxu0 0.0
    %1214 = vmatpush.msra.mxu0 0.0
    %1215 = vmatpush.msra.mxu0 0.0
    %1216 = vmatpush.msra.mxu0 0.0
    %1217 = vmatpush.msra.mxu0 0.0
    %1218 = vmatpush.msra.mxu0 0.0
    %1219 = vmatpush.msra.mxu0 0.0
    %1220 = vmatpush.msra.mxu0 0.0
    %1221 = vmatpush.msra.mxu0 0.0
    %1222 = vmatpush.msra.mxu0 0.0
    %1223 = vmatpush.msra.mxu0 0.0
    %1224 = vmatpush.msra.mxu0 0.0
    %1225 = vmatpush.msra.mxu0 0.0
    %1226 = vmatpush.msra.mxu0 0.0
    %v1227 = vand.u32 %v342, 4294901760
    %1228 = vmatpush.msra.mxu0 %v1227
    %v1229 = vand.u32 %v937, 4294901760
    %v1230 = vsub.f32 %v937, %v1229
    %v1231 = vand.u32 %v1230, 4294901760
    %1232 = vmatmul.f32.gmra.mxu0 %v1231
    %v1233 = vpop.f32.mrf.mxu0
    %v1234 = vadd.f32 %v1205, %v1233
    %v1235 = vand.u32 %v940, 4294901760
    %v1236 = vsub.f32 %v940, %v1235
    %v1237 = vand.u32 %v1236, 4294901760
    %1238 = vmatmul.f32.gmra.mxu0 %v1237
    %v1239 = vpop.f32.mrf.mxu0
    %v1240 = vadd.f32 %v1210, %v1239
    %1241 = vdwg.mxu0
    %1242 = vmatpush.msra.mxu0 0.0
    %1243 = vmatpush.msra.mxu0 0.0
    %1244 = vmatpush.msra.mxu0 0.0
    %1245 = vmatpush.msra.mxu0 0.0
    %1246 = vmatpush.msra.mxu0 0.0
    %1247 = vmatpush.msra.mxu0 0.0
    %1248 = vmatpush.msra.mxu0 0.0
    %1249 = vmatpush.msra.mxu0 0.0
    %1250 = vmatpush.msra.mxu0 0.0
    %1251 = vmatpush.msra.mxu0 0.0
    %1252 = vmatpush.msra.mxu0 0.0
    %1253 = vmatpush.msra.mxu0 0.0
    %1254 = vmatpush.msra.mxu0 0.0
    %1255 = vmatpush.msra.mxu0 0.0
    %1256 = vmatpush.msra.mxu0 0.0
    %v1257 = vand.u32 %v342, 4294901760
    %v1258 = vsub.f32 %v342, %v1257
    %v1259 = vand.u32 %v1258, 4294901760
    %1260 = vmatpush.msra.mxu0 %v1259
    %v1261 = vand.u32 %v937, 4294901760
    %1262 = vmatmul.f32.gmra.mxu0 %v1261
    %v1263 = vpop.f32.mrf.mxu0
    %v1264 = vadd.f32 %v1234, %v1263
    %v1265 = vand.u32 %v940, 4294901760
    %1266 = vmatmul.f32.gmra.mxu0 %v1265
    %v1267 = vpop.f32.mrf.mxu0
    %v1268 = vadd.f32 %v1240, %v1267
    %1269 = vdwg.mxu0
    %1270 = vmatpush.msra.mxu0 0.0
    %1271 = vmatpush.msra.mxu0 0.0
    %1272 = vmatpush.msra.mxu0 0.0
    %1273 = vmatpush.msra.mxu0 0.0
    %1274 = vmatpush.msra.mxu0 0.0
    %1275 = vmatpush.msra.mxu0 0.0
    %1276 = vmatpush.msra.mxu0 0.0
    %1277 = vmatpush.msra.mxu0 0.0
    %1278 = vmatpush.msra.mxu0 0.0
    %1279 = vmatpush.msra.mxu0 0.0
    %1280 = vmatpush.msra.mxu0 0.0
    %1281 = vmatpush.msra.mxu0 0.0
    %1282 = vmatpush.msra.mxu0 0.0
    %1283 = vmatpush.msra.mxu0 0.0
    %1284 = vmatpush.msra.mxu0 0.0
    %v1285 = vand.u32 %v342, 4294901760
    %1286 = vmatpush.msra.mxu0 %v1285
    %v1287 = vand.u32 %v937, 4294901760
    %1288 = vmatmul.f32.gmra.mxu0 %v1287
    %v1289 = vpop.f32.mrf.mxu0
    %v1290 = vadd.f32 %v1264, %v1289
    %v1291 = vand.u32 %v940, 4294901760
    %1292 = vmatmul.f32.gmra.mxu0 %v1291
    %v1293 = vpop.f32.mrf.mxu0
    %v1294 = vadd.f32 %v1268, %v1293
    %1295 = vdwg.mxu0
    %s1296 = scalar_lea.vmem %s4, 32
    %v1297 = vld [vmem:[%s1296] sm:$0xff]
    %v1298 = vld [vmem:[%s1296 + $0x8] sm:$0xff]
    %s1299 = scalar_lea.vmem %s5, 32
    %v1300 = vld [vmem:[%s1299] sm:$0xff]
    %v1301 = vld [vmem:[%s1299 + $0x8] sm:$0xff]
    %1303 = vset.pattern.permute.xlu0 0
    %1304 = vperm.xlu0 %1303, %v1300
    %v1305 = vpop.permute.xlu0 %1304
    %1308 = vset.pattern.permute.xlu0 0
    %1309 = vperm.xlu0 %1308, %v1301
    %v1310 = vpop.permute.xlu0 %1309
    %v1313 = vsel %vm107, %v1297, 0
    %v1316 = vsel %vm107, %v1298, 0
    %1318 = vmatpush.msra.mxu0 0.0
    %1319 = vmatpush.msra.mxu0 0.0
    %1320 = vmatpush.msra.mxu0 0.0
    %1321 = vmatpush.msra.mxu0 0.0
    %1322 = vmatpush.msra.mxu0 0.0
    %1323 = vmatpush.msra.mxu0 0.0
    %1324 = vmatpush.msra.mxu0 0.0
    %1325 = vmatpush.msra.mxu0 0.0
    %1326 = vmatpush.msra.mxu0 0.0
    %1327 = vmatpush.msra.mxu0 0.0
    %1328 = vmatpush.msra.mxu0 0.0
    %1329 = vmatpush.msra.mxu0 0.0
    %v1330 = vand.u32 %v92, 4294901760
    %1331 = vmatpush.msra.mxu0 %v1330
    %v1332 = vand.u32 %v91, 4294901760
    %1333 = vmatpush.msra.mxu0 %v1332
    %v1334 = vand.u32 %v90, 4294901760
    %1335 = vmatpush.msra.mxu0 %v1334
    %v1336 = vand.u32 %v89, 4294901760
    %1337 = vmatpush.msra.mxu0 %v1336
    %v1338 = vand.u32 %v1313, 4294901760
    %v1339 = vsub.f32 %v1313, %v1338
    %v1340 = vand.u32 %v1339, 4294901760
    %v1341 = vsub.f32 %v1339, %v1340
    %v1342 = vand.u32 %v1341, 4294901760
    %1343 = vmatmul.f32.gmra.mxu0 %v1342
    %v1344 = vpop.f32.mrf.mxu0
    %v1345 = vadd.f32 %v1305, %v1344
    %v1346 = vand.u32 %v1316, 4294901760
    %v1347 = vsub.f32 %v1316, %v1346
    %v1348 = vand.u32 %v1347, 4294901760
    %v1349 = vsub.f32 %v1347, %v1348
    %v1350 = vand.u32 %v1349, 4294901760
    %1351 = vmatmul.f32.gmra.mxu0 %v1350
    %v1352 = vpop.f32.mrf.mxu0
    %v1353 = vadd.f32 %v1310, %v1352
    %1354 = vdwg.mxu0
    %1355 = vmatpush.msra.mxu0 0.0
    %1356 = vmatpush.msra.mxu0 0.0
    %1357 = vmatpush.msra.mxu0 0.0
    %1358 = vmatpush.msra.mxu0 0.0
    %1359 = vmatpush.msra.mxu0 0.0
    %1360 = vmatpush.msra.mxu0 0.0
    %1361 = vmatpush.msra.mxu0 0.0
    %1362 = vmatpush.msra.mxu0 0.0
    %1363 = vmatpush.msra.mxu0 0.0
    %1364 = vmatpush.msra.mxu0 0.0
    %1365 = vmatpush.msra.mxu0 0.0
    %1366 = vmatpush.msra.mxu0 0.0
    %v1367 = vand.u32 %v92, 4294901760
    %v1368 = vsub.f32 %v92, %v1367
    %v1369 = vand.u32 %v1368, 4294901760
    %v1370 = vsub.f32 %v1368, %v1369
    %v1371 = vand.u32 %v1370, 4294901760
    %1372 = vmatpush.msra.mxu0 %v1371
    %v1373 = vand.u32 %v91, 4294901760
    %v1374 = vsub.f32 %v91, %v1373
    %v1375 = vand.u32 %v1374, 4294901760
    %v1376 = vsub.f32 %v1374, %v1375
    %v1377 = vand.u32 %v1376, 4294901760
    %1378 = vmatpush.msra.mxu0 %v1377
    %v1379 = vand.u32 %v90, 4294901760
    %v1380 = vsub.f32 %v90, %v1379
    %v1381 = vand.u32 %v1380, 4294901760
    %v1382 = vsub.f32 %v1380, %v1381
    %v1383 = vand.u32 %v1382, 4294901760
    %1384 = vmatpush.msra.mxu0 %v1383
    %v1385 = vand.u32 %v89, 4294901760
    %v1386 = vsub.f32 %v89, %v1385
    %v1387 = vand.u32 %v1386, 4294901760
    %v1388 = vsub.f32 %v1386, %v1387
    %v1389 = vand.u32 %v1388, 4294901760
    %1390 = vmatpush.msra.mxu0 %v1389
    %v1391 = vand.u32 %v1313, 4294901760
    %1392 = vmatmul.f32.gmra.mxu0 %v1391
    %v1393 = vpop.f32.mrf.mxu0
    %v1394 = vadd.f32 %v1345, %v1393
    %v1395 = vand.u32 %v1316, 4294901760
    %1396 = vmatmul.f32.gmra.mxu0 %v1395
    %v1397 = vpop.f32.mrf.mxu0
    %v1398 = vadd.f32 %v1353, %v1397
    %1399 = vdwg.mxu0
    %1400 = vmatpush.msra.mxu0 0.0
    %1401 = vmatpush.msra.mxu0 0.0
    %1402 = vmatpush.msra.mxu0 0.0
    %1403 = vmatpush.msra.mxu0 0.0
    %1404 = vmatpush.msra.mxu0 0.0
    %1405 = vmatpush.msra.mxu0 0.0
    %1406 = vmatpush.msra.mxu0 0.0
    %1407 = vmatpush.msra.mxu0 0.0
    %1408 = vmatpush.msra.mxu0 0.0
    %1409 = vmatpush.msra.mxu0 0.0
    %1410 = vmatpush.msra.mxu0 0.0
    %1411 = vmatpush.msra.mxu0 0.0
    %v1412 = vand.u32 %v92, 4294901760
    %v1413 = vsub.f32 %v92, %v1412
    %1414 = vmatpush.msra.mxu0 %v1413
    %v1415 = vand.u32 %v91, 4294901760
    %v1416 = vsub.f32 %v91, %v1415
    %1417 = vmatpush.msra.mxu0 %v1416
    %v1418 = vand.u32 %v90, 4294901760
    %v1419 = vsub.f32 %v90, %v1418
    %1420 = vmatpush.msra.mxu0 %v1419
    %v1421 = vand.u32 %v89, 4294901760
    %v1422 = vsub.f32 %v89, %v1421
    %1423 = vmatpush.msra.mxu0 %v1422
    %v1424 = vand.u32 %v1313, 4294901760
    %v1425 = vsub.f32 %v1313, %v1424
    %1426 = vmatmul.f32.gmra.mxu0 %v1425
    %v1427 = vpop.f32.mrf.mxu0
    %v1428 = vadd.f32 %v1394, %v1427
    %v1429 = vand.u32 %v1316, 4294901760
    %v1430 = vsub.f32 %v1316, %v1429
    %1431 = vmatmul.f32.gmra.mxu0 %v1430
    %v1432 = vpop.f32.mrf.mxu0
    %v1433 = vadd.f32 %v1398, %v1432
    %1434 = vdwg.mxu0
    %1435 = vmatpush.msra.mxu0 0.0
    %1436 = vmatpush.msra.mxu0 0.0
    %1437 = vmatpush.msra.mxu0 0.0
    %1438 = vmatpush.msra.mxu0 0.0
    %1439 = vmatpush.msra.mxu0 0.0
    %1440 = vmatpush.msra.mxu0 0.0
    %1441 = vmatpush.msra.mxu0 0.0
    %1442 = vmatpush.msra.mxu0 0.0
    %1443 = vmatpush.msra.mxu0 0.0
    %1444 = vmatpush.msra.mxu0 0.0
    %1445 = vmatpush.msra.mxu0 0.0
    %1446 = vmatpush.msra.mxu0 0.0
    %v1447 = vand.u32 %v92, 4294901760
    %1448 = vmatpush.msra.mxu0 %v1447
    %v1449 = vand.u32 %v91, 4294901760
    %1450 = vmatpush.msra.mxu0 %v1449
    %v1451 = vand.u32 %v90, 4294901760
    %1452 = vmatpush.msra.mxu0 %v1451
    %v1453 = vand.u32 %v89, 4294901760
    %1454 = vmatpush.msra.mxu0 %v1453
    %v1455 = vand.u32 %v1313, 4294901760
    %v1456 = vsub.f32 %v1313, %v1455
    %v1457 = vand.u32 %v1456, 4294901760
    %1458 = vmatmul.f32.gmra.mxu0 %v1457
    %v1459 = vpop.f32.mrf.mxu0
    %v1460 = vadd.f32 %v1428, %v1459
    %v1461 = vand.u32 %v1316, 4294901760
    %v1462 = vsub.f32 %v1316, %v1461
    %v1463 = vand.u32 %v1462, 4294901760
    %1464 = vmatmul.f32.gmra.mxu0 %v1463
    %v1465 = vpop.f32.mrf.mxu0
    %v1466 = vadd.f32 %v1433, %v1465
    %1467 = vdwg.mxu0
    %1468 = vmatpush.msra.mxu0 0.0
    %1469 = vmatpush.msra.mxu0 0.0
    %1470 = vmatpush.msra.mxu0 0.0
    %1471 = vmatpush.msra.mxu0 0.0
    %1472 = vmatpush.msra.mxu0 0.0
    %1473 = vmatpush.msra.mxu0 0.0
    %1474 = vmatpush.msra.mxu0 0.0
    %1475 = vmatpush.msra.mxu0 0.0
    %1476 = vmatpush.msra.mxu0 0.0
    %1477 = vmatpush.msra.mxu0 0.0
    %1478 = vmatpush.msra.mxu0 0.0
    %1479 = vmatpush.msra.mxu0 0.0
    %v1480 = vand.u32 %v92, 4294901760
    %v1481 = vsub.f32 %v92, %v1480
    %v1482 = vand.u32 %v1481, 4294901760
    %1483 = vmatpush.msra.mxu0 %v1482
    %v1484 = vand.u32 %v91, 4294901760
    %v1485 = vsub.f32 %v91, %v1484
    %v1486 = vand.u32 %v1485, 4294901760
    %1487 = vmatpush.msra.mxu0 %v1486
    %v1488 = vand.u32 %v90, 4294901760
    %v1489 = vsub.f32 %v90, %v1488
    %v1490 = vand.u32 %v1489, 4294901760
    %1491 = vmatpush.msra.mxu0 %v1490
    %v1492 = vand.u32 %v89, 4294901760
    %v1493 = vsub.f32 %v89, %v1492
    %v1494 = vand.u32 %v1493, 4294901760
    %1495 = vmatpush.msra.mxu0 %v1494
    %v1496 = vand.u32 %v1313, 4294901760
    %1497 = vmatmul.f32.gmra.mxu0 %v1496
    %v1498 = vpop.f32.mrf.mxu0
    %v1499 = vadd.f32 %v1460, %v1498
    %v1500 = vand.u32 %v1316, 4294901760
    %1501 = vmatmul.f32.gmra.mxu0 %v1500
    %v1502 = vpop.f32.mrf.mxu0
    %v1503 = vadd.f32 %v1466, %v1502
    %1504 = vdwg.mxu0
    %1505 = vmatpush.msra.mxu0 0.0
    %1506 = vmatpush.msra.mxu0 0.0
    %1507 = vmatpush.msra.mxu0 0.0
    %1508 = vmatpush.msra.mxu0 0.0
    %1509 = vmatpush.msra.mxu0 0.0
    %1510 = vmatpush.msra.mxu0 0.0
    %1511 = vmatpush.msra.mxu0 0.0
    %1512 = vmatpush.msra.mxu0 0.0
    %1513 = vmatpush.msra.mxu0 0.0
    %1514 = vmatpush.msra.mxu0 0.0
    %1515 = vmatpush.msra.mxu0 0.0
    %1516 = vmatpush.msra.mxu0 0.0
    %v1517 = vand.u32 %v92, 4294901760
    %1518 = vmatpush.msra.mxu0 %v1517
    %v1519 = vand.u32 %v91, 4294901760
    %1520 = vmatpush.msra.mxu0 %v1519
    %v1521 = vand.u32 %v90, 4294901760
    %1522 = vmatpush.msra.mxu0 %v1521
    %v1523 = vand.u32 %v89, 4294901760
    %1524 = vmatpush.msra.mxu0 %v1523
    %v1525 = vand.u32 %v1313, 4294901760
    %1526 = vmatmul.f32.gmra.mxu0 %v1525
    %v1527 = vpop.f32.mrf.mxu0
    %v1528 = vadd.f32 %v1499, %v1527
    %v1529 = vand.u32 %v1316, 4294901760
    %1530 = vmatmul.f32.gmra.mxu0 %v1529
    %v1531 = vpop.f32.mrf.mxu0
    %v1532 = vadd.f32 %v1503, %v1531
    %1533 = vdwg.mxu0
    %v1535 = vsel %vm330, %v1528, 0
    %v1538 = vsel %vm330, %v1532, 0
    %1540 = vmatpush.msra.mxu0 0.0
    %1541 = vmatpush.msra.mxu0 0.0
    %1542 = vmatpush.msra.mxu0 0.0
    %1543 = vmatpush.msra.mxu0 0.0
    %1544 = vmatpush.msra.mxu0 0.0
    %1545 = vmatpush.msra.mxu0 0.0
    %1546 = vmatpush.msra.mxu0 0.0
    %1547 = vmatpush.msra.mxu0 0.0
    %1548 = vmatpush.msra.mxu0 0.0
    %1549 = vmatpush.msra.mxu0 0.0
    %1550 = vmatpush.msra.mxu0 0.0
    %1551 = vmatpush.msra.mxu0 0.0
    %1552 = vmatpush.msra.mxu0 0.0
    %1553 = vmatpush.msra.mxu0 0.0
    %1554 = vmatpush.msra.mxu0 0.0
    %v1555 = vand.u32 %v339, 4294901760
    %1556 = vmatpush.msra.mxu0 %v1555
    %v1557 = vand.u32 %v1535, 4294901760
    %v1558 = vsub.f32 %v1535, %v1557
    %v1559 = vand.u32 %v1558, 4294901760
    %v1560 = vsub.f32 %v1558, %v1559
    %v1561 = vand.u32 %v1560, 4294901760
    %1562 = vmatmul.f32.gmra.mxu0 %v1561
    %v1563 = vpop.f32.mrf.mxu0
    %v1564 = vadd.f32 0.0, %v1563
    %v1565 = vand.u32 %v1538, 4294901760
    %v1566 = vsub.f32 %v1538, %v1565
    %v1567 = vand.u32 %v1566, 4294901760
    %v1568 = vsub.f32 %v1566, %v1567
    %v1569 = vand.u32 %v1568, 4294901760
    %1570 = vmatmul.f32.gmra.mxu0 %v1569
    %v1571 = vpop.f32.mrf.mxu0
    %v1572 = vadd.f32 0.0, %v1571
    %1573 = vdwg.mxu0
    %1574 = vmatpush.msra.mxu0 0.0
    %1575 = vmatpush.msra.mxu0 0.0
    %1576 = vmatpush.msra.mxu0 0.0
    %1577 = vmatpush.msra.mxu0 0.0
    %1578 = vmatpush.msra.mxu0 0.0
    %1579 = vmatpush.msra.mxu0 0.0
    %1580 = vmatpush.msra.mxu0 0.0
    %1581 = vmatpush.msra.mxu0 0.0
    %1582 = vmatpush.msra.mxu0 0.0
    %1583 = vmatpush.msra.mxu0 0.0
    %1584 = vmatpush.msra.mxu0 0.0
    %1585 = vmatpush.msra.mxu0 0.0
    %1586 = vmatpush.msra.mxu0 0.0
    %1587 = vmatpush.msra.mxu0 0.0
    %1588 = vmatpush.msra.mxu0 0.0
    %v1589 = vand.u32 %v339, 4294901760
    %v1590 = vsub.f32 %v339, %v1589
    %v1591 = vand.u32 %v1590, 4294901760
    %v1592 = vsub.f32 %v1590, %v1591
    %v1593 = vand.u32 %v1592, 4294901760
    %1594 = vmatpush.msra.mxu0 %v1593
    %v1595 = vand.u32 %v1535, 4294901760
    %1596 = vmatmul.f32.gmra.mxu0 %v1595
    %v1597 = vpop.f32.mrf.mxu0
    %v1598 = vadd.f32 %v1564, %v1597
    %v1599 = vand.u32 %v1538, 4294901760
    %1600 = vmatmul.f32.gmra.mxu0 %v1599
    %v1601 = vpop.f32.mrf.mxu0
    %v1602 = vadd.f32 %v1572, %v1601
    %1603 = vdwg.mxu0
    %1604 = vmatpush.msra.mxu0 0.0
    %1605 = vmatpush.msra.mxu0 0.0
    %1606 = vmatpush.msra.mxu0 0.0
    %1607 = vmatpush.msra.mxu0 0.0
    %1608 = vmatpush.msra.mxu0 0.0
    %1609 = vmatpush.msra.mxu0 0.0
    %1610 = vmatpush.msra.mxu0 0.0
    %1611 = vmatpush.msra.mxu0 0.0
    %1612 = vmatpush.msra.mxu0 0.0
    %1613 = vmatpush.msra.mxu0 0.0
    %1614 = vmatpush.msra.mxu0 0.0
    %1615 = vmatpush.msra.mxu0 0.0
    %1616 = vmatpush.msra.mxu0 0.0
    %1617 = vmatpush.msra.mxu0 0.0
    %1618 = vmatpush.msra.mxu0 0.0
    %v1619 = vand.u32 %v339, 4294901760
    %v1620 = vsub.f32 %v339, %v1619
    %1621 = vmatpush.msra.mxu0 %v1620
    %v1622 = vand.u32 %v1535, 4294901760
    %v1623 = vsub.f32 %v1535, %v1622
    %1624 = vmatmul.f32.gmra.mxu0 %v1623
    %v1625 = vpop.f32.mrf.mxu0
    %v1626 = vadd.f32 %v1598, %v1625
    %v1627 = vand.u32 %v1538, 4294901760
    %v1628 = vsub.f32 %v1538, %v1627
    %1629 = vmatmul.f32.gmra.mxu0 %v1628
    %v1630 = vpop.f32.mrf.mxu0
    %v1631 = vadd.f32 %v1602, %v1630
    %1632 = vdwg.mxu0
    %1633 = vmatpush.msra.mxu0 0.0
    %1634 = vmatpush.msra.mxu0 0.0
    %1635 = vmatpush.msra.mxu0 0.0
    %1636 = vmatpush.msra.mxu0 0.0
    %1637 = vmatpush.msra.mxu0 0.0
    %1638 = vmatpush.msra.mxu0 0.0
    %1639 = vmatpush.msra.mxu0 0.0
    %1640 = vmatpush.msra.mxu0 0.0
    %1641 = vmatpush.msra.mxu0 0.0
    %1642 = vmatpush.msra.mxu0 0.0
    %1643 = vmatpush.msra.mxu0 0.0
    %1644 = vmatpush.msra.mxu0 0.0
    %1645 = vmatpush.msra.mxu0 0.0
    %1646 = vmatpush.msra.mxu0 0.0
    %1647 = vmatpush.msra.mxu0 0.0
    %v1648 = vand.u32 %v339, 4294901760
    %1649 = vmatpush.msra.mxu0 %v1648
    %v1650 = vand.u32 %v1535, 4294901760
    %v1651 = vsub.f32 %v1535, %v1650
    %v1652 = vand.u32 %v1651, 4294901760
    %1653 = vmatmul.f32.gmra.mxu0 %v1652
    %v1654 = vpop.f32.mrf.mxu0
    %v1655 = vadd.f32 %v1626, %v1654
    %v1656 = vand.u32 %v1538, 4294901760
    %v1657 = vsub.f32 %v1538, %v1656
    %v1658 = vand.u32 %v1657, 4294901760
    %1659 = vmatmul.f32.gmra.mxu0 %v1658
    %v1660 = vpop.f32.mrf.mxu0
    %v1661 = vadd.f32 %v1631, %v1660
    %1662 = vdwg.mxu0
    %1663 = vmatpush.msra.mxu0 0.0
    %1664 = vmatpush.msra.mxu0 0.0
    %1665 = vmatpush.msra.mxu0 0.0
    %1666 = vmatpush.msra.mxu0 0.0
    %1667 = vmatpush.msra.mxu0 0.0
    %1668 = vmatpush.msra.mxu0 0.0
    %1669 = vmatpush.msra.mxu0 0.0
    %1670 = vmatpush.msra.mxu0 0.0
    %1671 = vmatpush.msra.mxu0 0.0
    %1672 = vmatpush.msra.mxu0 0.0
    %1673 = vmatpush.msra.mxu0 0.0
    %1674 = vmatpush.msra.mxu0 0.0
    %1675 = vmatpush.msra.mxu0 0.0
    %1676 = vmatpush.msra.mxu0 0.0
    %1677 = vmatpush.msra.mxu0 0.0
    %v1678 = vand.u32 %v339, 4294901760
    %v1679 = vsub.f32 %v339, %v1678
    %v1680 = vand.u32 %v1679, 4294901760
    %1681 = vmatpush.msra.mxu0 %v1680
    %v1682 = vand.u32 %v1535, 4294901760
    %1683 = vmatmul.f32.gmra.mxu0 %v1682
    %v1684 = vpop.f32.mrf.mxu0
    %v1685 = vadd.f32 %v1655, %v1684
    %v1686 = vand.u32 %v1538, 4294901760
    %1687 = vmatmul.f32.gmra.mxu0 %v1686
    %v1688 = vpop.f32.mrf.mxu0
    %v1689 = vadd.f32 %v1661, %v1688
    %1690 = vdwg.mxu0
    %1691 = vmatpush.msra.mxu0 0.0
    %1692 = vmatpush.msra.mxu0 0.0
    %1693 = vmatpush.msra.mxu0 0.0
    %1694 = vmatpush.msra.mxu0 0.0
    %1695 = vmatpush.msra.mxu0 0.0
    %1696 = vmatpush.msra.mxu0 0.0
    %1697 = vmatpush.msra.mxu0 0.0
    %1698 = vmatpush.msra.mxu0 0.0
    %1699 = vmatpush.msra.mxu0 0.0
    %1700 = vmatpush.msra.mxu0 0.0
    %1701 = vmatpush.msra.mxu0 0.0
    %1702 = vmatpush.msra.mxu0 0.0
    %1703 = vmatpush.msra.mxu0 0.0
    %1704 = vmatpush.msra.mxu0 0.0
    %1705 = vmatpush.msra.mxu0 0.0
    %v1706 = vand.u32 %v339, 4294901760
    %1707 = vmatpush.msra.mxu0 %v1706
    %v1708 = vand.u32 %v1535, 4294901760
    %1709 = vmatmul.f32.gmra.mxu0 %v1708
    %v1710 = vpop.f32.mrf.mxu0
    %v1711 = vadd.f32 %v1685, %v1710
    %v1712 = vand.u32 %v1538, 4294901760
    %1713 = vmatmul.f32.gmra.mxu0 %v1712
    %v1714 = vpop.f32.mrf.mxu0
    %v1715 = vadd.f32 %v1689, %v1714
    %1716 = vdwg.mxu0
    %1717 = vmatpush.msra.mxu0 0.0
    %1718 = vmatpush.msra.mxu0 0.0
    %1719 = vmatpush.msra.mxu0 0.0
    %1720 = vmatpush.msra.mxu0 0.0
    %1721 = vmatpush.msra.mxu0 0.0
    %1722 = vmatpush.msra.mxu0 0.0
    %1723 = vmatpush.msra.mxu0 0.0
    %1724 = vmatpush.msra.mxu0 0.0
    %1725 = vmatpush.msra.mxu0 0.0
    %1726 = vmatpush.msra.mxu0 0.0
    %1727 = vmatpush.msra.mxu0 0.0
    %1728 = vmatpush.msra.mxu0 0.0
    %1729 = vmatpush.msra.mxu0 0.0
    %1730 = vmatpush.msra.mxu0 0.0
    %1731 = vmatpush.msra.mxu0 0.0
    %v1732 = vand.u32 %v342, 4294901760
    %1733 = vmatpush.msra.mxu0 %v1732
    %v1734 = vand.u32 %v1535, 4294901760
    %v1735 = vsub.f32 %v1535, %v1734
    %v1736 = vand.u32 %v1735, 4294901760
    %v1737 = vsub.f32 %v1735, %v1736
    %v1738 = vand.u32 %v1737, 4294901760
    %1739 = vmatmul.f32.gmra.mxu0 %v1738
    %v1740 = vpop.f32.mrf.mxu0
    %v1741 = vadd.f32 0.0, %v1740
    %v1742 = vand.u32 %v1538, 4294901760
    %v1743 = vsub.f32 %v1538, %v1742
    %v1744 = vand.u32 %v1743, 4294901760
    %v1745 = vsub.f32 %v1743, %v1744
    %v1746 = vand.u32 %v1745, 4294901760
    %1747 = vmatmul.f32.gmra.mxu0 %v1746
    %v1748 = vpop.f32.mrf.mxu0
    %v1749 = vadd.f32 0.0, %v1748
    %1750 = vdwg.mxu0
    %1751 = vmatpush.msra.mxu0 0.0
    %1752 = vmatpush.msra.mxu0 0.0
    %1753 = vmatpush.msra.mxu0 0.0
    %1754 = vmatpush.msra.mxu0 0.0
    %1755 = vmatpush.msra.mxu0 0.0
    %1756 = vmatpush.msra.mxu0 0.0
    %1757 = vmatpush.msra.mxu0 0.0
    %1758 = vmatpush.msra.mxu0 0.0
    %1759 = vmatpush.msra.mxu0 0.0
    %1760 = vmatpush.msra.mxu0 0.0
    %1761 = vmatpush.msra.mxu0 0.0
    %1762 = vmatpush.msra.mxu0 0.0
    %1763 = vmatpush.msra.mxu0 0.0
    %1764 = vmatpush.msra.mxu0 0.0
    %1765 = vmatpush.msra.mxu0 0.0
    %v1766 = vand.u32 %v342, 4294901760
    %v1767 = vsub.f32 %v342, %v1766
    %v1768 = vand.u32 %v1767, 4294901760
    %v1769 = vsub.f32 %v1767, %v1768
    %v1770 = vand.u32 %v1769, 4294901760
    %1771 = vmatpush.msra.mxu0 %v1770
    %v1772 = vand.u32 %v1535, 4294901760
    %1773 = vmatmul.f32.gmra.mxu0 %v1772
    %v1774 = vpop.f32.mrf.mxu0
    %v1775 = vadd.f32 %v1741, %v1774
    %v1776 = vand.u32 %v1538, 4294901760
    %1777 = vmatmul.f32.gmra.mxu0 %v1776
    %v1778 = vpop.f32.mrf.mxu0
    %v1779 = vadd.f32 %v1749, %v1778
    %1780 = vdwg.mxu0
    %1781 = vmatpush.msra.mxu0 0.0
    %1782 = vmatpush.msra.mxu0 0.0
    %1783 = vmatpush.msra.mxu0 0.0
    %1784 = vmatpush.msra.mxu0 0.0
    %1785 = vmatpush.msra.mxu0 0.0
    %1786 = vmatpush.msra.mxu0 0.0
    %1787 = vmatpush.msra.mxu0 0.0
    %1788 = vmatpush.msra.mxu0 0.0
    %1789 = vmatpush.msra.mxu0 0.0
    %1790 = vmatpush.msra.mxu0 0.0
    %1791 = vmatpush.msra.mxu0 0.0
    %1792 = vmatpush.msra.mxu0 0.0
    %1793 = vmatpush.msra.mxu0 0.0
    %1794 = vmatpush.msra.mxu0 0.0
    %1795 = vmatpush.msra.mxu0 0.0
    %v1796 = vand.u32 %v342, 4294901760
    %v1797 = vsub.f32 %v342, %v1796
    %1798 = vmatpush.msra.mxu0 %v1797
    %v1799 = vand.u32 %v1535, 4294901760
    %v1800 = vsub.f32 %v1535, %v1799
    %1801 = vmatmul.f32.gmra.mxu0 %v1800
    %v1802 = vpop.f32.mrf.mxu0
    %v1803 = vadd.f32 %v1775, %v1802
    %v1804 = vand.u32 %v1538, 4294901760
    %v1805 = vsub.f32 %v1538, %v1804
    %1806 = vmatmul.f32.gmra.mxu0 %v1805
    %v1807 = vpop.f32.mrf.mxu0
    %v1808 = vadd.f32 %v1779, %v1807
    %1809 = vdwg.mxu0
    %1810 = vmatpush.msra.mxu0 0.0
    %1811 = vmatpush.msra.mxu0 0.0
    %1812 = vmatpush.msra.mxu0 0.0
    %1813 = vmatpush.msra.mxu0 0.0
    %1814 = vmatpush.msra.mxu0 0.0
    %1815 = vmatpush.msra.mxu0 0.0
    %1816 = vmatpush.msra.mxu0 0.0
    %1817 = vmatpush.msra.mxu0 0.0
    %1818 = vmatpush.msra.mxu0 0.0
    %1819 = vmatpush.msra.mxu0 0.0
    %1820 = vmatpush.msra.mxu0 0.0
    %1821 = vmatpush.msra.mxu0 0.0
    %1822 = vmatpush.msra.mxu0 0.0
    %1823 = vmatpush.msra.mxu0 0.0
    %1824 = vmatpush.msra.mxu0 0.0
    %v1825 = vand.u32 %v342, 4294901760
    %1826 = vmatpush.msra.mxu0 %v1825
    %v1827 = vand.u32 %v1535, 4294901760
    %v1828 = vsub.f32 %v1535, %v1827
    %v1829 = vand.u32 %v1828, 4294901760
    %1830 = vmatmul.f32.gmra.mxu0 %v1829
    %v1831 = vpop.f32.mrf.mxu0
    %v1832 = vadd.f32 %v1803, %v1831
    %v1833 = vand.u32 %v1538, 4294901760
    %v1834 = vsub.f32 %v1538, %v1833
    %v1835 = vand.u32 %v1834, 4294901760
    %1836 = vmatmul.f32.gmra.mxu0 %v1835
    %v1837 = vpop.f32.mrf.mxu0
    %v1838 = vadd.f32 %v1808, %v1837
    %1839 = vdwg.mxu0
    %1840 = vmatpush.msra.mxu0 0.0
    %1841 = vmatpush.msra.mxu0 0.0
    %1842 = vmatpush.msra.mxu0 0.0
    %1843 = vmatpush.msra.mxu0 0.0
    %1844 = vmatpush.msra.mxu0 0.0
    %1845 = vmatpush.msra.mxu0 0.0
    %1846 = vmatpush.msra.mxu0 0.0
    %1847 = vmatpush.msra.mxu0 0.0
    %1848 = vmatpush.msra.mxu0 0.0
    %1849 = vmatpush.msra.mxu0 0.0
    %1850 = vmatpush.msra.mxu0 0.0
    %1851 = vmatpush.msra.mxu0 0.0
    %1852 = vmatpush.msra.mxu0 0.0
    %1853 = vmatpush.msra.mxu0 0.0
    %1854 = vmatpush.msra.mxu0 0.0
    %v1855 = vand.u32 %v342, 4294901760
    %v1856 = vsub.f32 %v342, %v1855
    %v1857 = vand.u32 %v1856, 4294901760
    %1858 = vmatpush.msra.mxu0 %v1857
    %v1859 = vand.u32 %v1535, 4294901760
    %1860 = vmatmul.f32.gmra.mxu0 %v1859
    %v1861 = vpop.f32.mrf.mxu0
    %v1862 = vadd.f32 %v1832, %v1861
    %v1863 = vand.u32 %v1538, 4294901760
    %1864 = vmatmul.f32.gmra.mxu0 %v1863
    %v1865 = vpop.f32.mrf.mxu0
    %v1866 = vadd.f32 %v1838, %v1865
    %1867 = vdwg.mxu0
    %1868 = vmatpush.msra.mxu0 0.0
    %1869 = vmatpush.msra.mxu0 0.0
    %1870 = vmatpush.msra.mxu0 0.0
    %1871 = vmatpush.msra.mxu0 0.0
    %1872 = vmatpush.msra.mxu0 0.0
    %1873 = vmatpush.msra.mxu0 0.0
    %1874 = vmatpush.msra.mxu0 0.0
    %1875 = vmatpush.msra.mxu0 0.0
    %1876 = vmatpush.msra.mxu0 0.0
    %1877 = vmatpush.msra.mxu0 0.0
    %1878 = vmatpush.msra.mxu0 0.0
    %1879 = vmatpush.msra.mxu0 0.0
    %1880 = vmatpush.msra.mxu0 0.0
    %1881 = vmatpush.msra.mxu0 0.0
    %1882 = vmatpush.msra.mxu0 0.0
    %v1883 = vand.u32 %v342, 4294901760
    %1884 = vmatpush.msra.mxu0 %v1883
    %v1885 = vand.u32 %v1535, 4294901760
    %1886 = vmatmul.f32.gmra.mxu0 %v1885
    %v1887 = vpop.f32.mrf.mxu0
    %v1888 = vadd.f32 %v1862, %v1887
    %v1889 = vand.u32 %v1538, 4294901760
    %1890 = vmatmul.f32.gmra.mxu0 %v1889
    %v1891 = vpop.f32.mrf.mxu0
    %v1892 = vadd.f32 %v1866, %v1891
    %1893 = vdwg.mxu0
    %v1894 = vld [vmem:[%s6] sm:$0xff]
    %v1895 = vld [vmem:[%s6 + $0x8] sm:$0xff]
    %v1896 = vld [vmem:[%s7] sm:$0xff]
    %v1897 = vld [vmem:[%s7 + $0x8] sm:$0xff]
    %1899 = vset.pattern.permute.xlu0 0
    %1900 = vperm.xlu0 %1899, %v1896
    %v1901 = vpop.permute.xlu0 %1900
    %1904 = vset.pattern.permute.xlu0 0
    %1905 = vperm.xlu0 %1904, %v1897
    %v1906 = vpop.permute.xlu0 %1905
    %v1909 = vsel %vm107, %v1894, 0
    %v1912 = vsel %vm107, %v1895, 0
    %1914 = vmatpush.msra.mxu0 0.0
    %1915 = vmatpush.msra.mxu0 0.0
    %1916 = vmatpush.msra.mxu0 0.0
    %1917 = vmatpush.msra.mxu0 0.0
    %1918 = vmatpush.msra.mxu0 0.0
    %1919 = vmatpush.msra.mxu0 0.0
    %1920 = vmatpush.msra.mxu0 0.0
    %1921 = vmatpush.msra.mxu0 0.0
    %1922 = vmatpush.msra.mxu0 0.0
    %1923 = vmatpush.msra.mxu0 0.0
    %1924 = vmatpush.msra.mxu0 0.0
    %1925 = vmatpush.msra.mxu0 0.0
    %v1926 = vand.u32 %v92, 4294901760
    %1927 = vmatpush.msra.mxu0 %v1926
    %v1928 = vand.u32 %v91, 4294901760
    %1929 = vmatpush.msra.mxu0 %v1928
    %v1930 = vand.u32 %v90, 4294901760
    %1931 = vmatpush.msra.mxu0 %v1930
    %v1932 = vand.u32 %v89, 4294901760
    %1933 = vmatpush.msra.mxu0 %v1932
    %v1934 = vand.u32 %v1909, 4294901760
    %v1935 = vsub.f32 %v1909, %v1934
    %v1936 = vand.u32 %v1935, 4294901760
    %v1937 = vsub.f32 %v1935, %v1936
    %v1938 = vand.u32 %v1937, 4294901760
    %1939 = vmatmul.f32.gmra.mxu0 %v1938
    %v1940 = vpop.f32.mrf.mxu0
    %v1941 = vadd.f32 %v1901, %v1940
    %v1942 = vand.u32 %v1912, 4294901760
    %v1943 = vsub.f32 %v1912, %v1942
    %v1944 = vand.u32 %v1943, 4294901760
    %v1945 = vsub.f32 %v1943, %v1944
    %v1946 = vand.u32 %v1945, 4294901760
    %1947 = vmatmul.f32.gmra.mxu0 %v1946
    %v1948 = vpop.f32.mrf.mxu0
    %v1949 = vadd.f32 %v1906, %v1948
    %1950 = vdwg.mxu0
    %1951 = vmatpush.msra.mxu0 0.0
    %1952 = vmatpush.msra.mxu0 0.0
    %1953 = vmatpush.msra.mxu0 0.0
    %1954 = vmatpush.msra.mxu0 0.0
    %1955 = vmatpush.msra.mxu0 0.0
    %1956 = vmatpush.msra.mxu0 0.0
    %1957 = vmatpush.msra.mxu0 0.0
    %1958 = vmatpush.msra.mxu0 0.0
    %1959 = vmatpush.msra.mxu0 0.0
    %1960 = vmatpush.msra.mxu0 0.0
    %1961 = vmatpush.msra.mxu0 0.0
    %1962 = vmatpush.msra.mxu0 0.0
    %v1963 = vand.u32 %v92, 4294901760
    %v1964 = vsub.f32 %v92, %v1963
    %v1965 = vand.u32 %v1964, 4294901760
    %v1966 = vsub.f32 %v1964, %v1965
    %v1967 = vand.u32 %v1966, 4294901760
    %1968 = vmatpush.msra.mxu0 %v1967
    %v1969 = vand.u32 %v91, 4294901760
    %v1970 = vsub.f32 %v91, %v1969
    %v1971 = vand.u32 %v1970, 4294901760
    %v1972 = vsub.f32 %v1970, %v1971
    %v1973 = vand.u32 %v1972, 4294901760
    %1974 = vmatpush.msra.mxu0 %v1973
    %v1975 = vand.u32 %v90, 4294901760
    %v1976 = vsub.f32 %v90, %v1975
    %v1977 = vand.u32 %v1976, 4294901760
    %v1978 = vsub.f32 %v1976, %v1977
    %v1979 = vand.u32 %v1978, 4294901760
    %1980 = vmatpush.msra.mxu0 %v1979
    %v1981 = vand.u32 %v89, 4294901760
    %v1982 = vsub.f32 %v89, %v1981
    %v1983 = vand.u32 %v1982, 4294901760
    %v1984 = vsub.f32 %v1982, %v1983
    %v1985 = vand.u32 %v1984, 4294901760
    %1986 = vmatpush.msra.mxu0 %v1985
    %v1987 = vand.u32 %v1909, 4294901760
    %1988 = vmatmul.f32.gmra.mxu0 %v1987
    %v1989 = vpop.f32.mrf.mxu0
    %v1990 = vadd.f32 %v1941, %v1989
    %v1991 = vand.u32 %v1912, 4294901760
    %1992 = vmatmul.f32.gmra.mxu0 %v1991
    %v1993 = vpop.f32.mrf.mxu0
    %v1994 = vadd.f32 %v1949, %v1993
    %1995 = vdwg.mxu0
    %1996 = vmatpush.msra.mxu0 0.0
    %1997 = vmatpush.msra.mxu0 0.0
    %1998 = vmatpush.msra.mxu0 0.0
    %1999 = vmatpush.msra.mxu0 0.0
    %2000 = vmatpush.msra.mxu0 0.0
    %2001 = vmatpush.msra.mxu0 0.0
    %2002 = vmatpush.msra.mxu0 0.0
    %2003 = vmatpush.msra.mxu0 0.0
    %2004 = vmatpush.msra.mxu0 0.0
    %2005 = vmatpush.msra.mxu0 0.0
    %2006 = vmatpush.msra.mxu0 0.0
    %2007 = vmatpush.msra.mxu0 0.0
    %v2008 = vand.u32 %v92, 4294901760
    %v2009 = vsub.f32 %v92, %v2008
    %2010 = vmatpush.msra.mxu0 %v2009
    %v2011 = vand.u32 %v91, 4294901760
    %v2012 = vsub.f32 %v91, %v2011
    %2013 = vmatpush.msra.mxu0 %v2012
    %v2014 = vand.u32 %v90, 4294901760
    %v2015 = vsub.f32 %v90, %v2014
    %2016 = vmatpush.msra.mxu0 %v2015
    %v2017 = vand.u32 %v89, 4294901760
    %v2018 = vsub.f32 %v89, %v2017
    %2019 = vmatpush.msra.mxu0 %v2018
    %v2020 = vand.u32 %v1909, 4294901760
    %v2021 = vsub.f32 %v1909, %v2020
    %2022 = vmatmul.f32.gmra.mxu0 %v2021
    %v2023 = vpop.f32.mrf.mxu0
    %v2024 = vadd.f32 %v1990, %v2023
    %v2025 = vand.u32 %v1912, 4294901760
    %v2026 = vsub.f32 %v1912, %v2025
    %2027 = vmatmul.f32.gmra.mxu0 %v2026
    %v2028 = vpop.f32.mrf.mxu0
    %v2029 = vadd.f32 %v1994, %v2028
    %2030 = vdwg.mxu0
    %2031 = vmatpush.msra.mxu0 0.0
    %2032 = vmatpush.msra.mxu0 0.0
    %2033 = vmatpush.msra.mxu0 0.0
    %2034 = vmatpush.msra.mxu0 0.0
    %2035 = vmatpush.msra.mxu0 0.0
    %2036 = vmatpush.msra.mxu0 0.0
    %2037 = vmatpush.msra.mxu0 0.0
    %2038 = vmatpush.msra.mxu0 0.0
    %2039 = vmatpush.msra.mxu0 0.0
    %2040 = vmatpush.msra.mxu0 0.0
    %2041 = vmatpush.msra.mxu0 0.0
    %2042 = vmatpush.msra.mxu0 0.0
    %v2043 = vand.u32 %v92, 4294901760
    %2044 = vmatpush.msra.mxu0 %v2043
    %v2045 = vand.u32 %v91, 4294901760
    %2046 = vmatpush.msra.mxu0 %v2045
    %v2047 = vand.u32 %v90, 4294901760
    %2048 = vmatpush.msra.mxu0 %v2047
    %v2049 = vand.u32 %v89, 4294901760
    %2050 = vmatpush.msra.mxu0 %v2049
    %v2051 = vand.u32 %v1909, 4294901760
    %v2052 = vsub.f32 %v1909, %v2051
    %v2053 = vand.u32 %v2052, 4294901760
    %2054 = vmatmul.f32.gmra.mxu0 %v2053
    %v2055 = vpop.f32.mrf.mxu0
    %v2056 = vadd.f32 %v2024, %v2055
    %v2057 = vand.u32 %v1912, 4294901760
    %v2058 = vsub.f32 %v1912, %v2057
    %v2059 = vand.u32 %v2058, 4294901760
    %2060 = vmatmul.f32.gmra.mxu0 %v2059
    %v2061 = vpop.f32.mrf.mxu0
    %v2062 = vadd.f32 %v2029, %v2061
    %2063 = vdwg.mxu0
    %2064 = vmatpush.msra.mxu0 0.0
    %2065 = vmatpush.msra.mxu0 0.0
    %2066 = vmatpush.msra.mxu0 0.0
    %2067 = vmatpush.msra.mxu0 0.0
    %2068 = vmatpush.msra.mxu0 0.0
    %2069 = vmatpush.msra.mxu0 0.0
    %2070 = vmatpush.msra.mxu0 0.0
    %2071 = vmatpush.msra.mxu0 0.0
    %2072 = vmatpush.msra.mxu0 0.0
    %2073 = vmatpush.msra.mxu0 0.0
    %2074 = vmatpush.msra.mxu0 0.0
    %2075 = vmatpush.msra.mxu0 0.0
    %v2076 = vand.u32 %v92, 4294901760
    %v2077 = vsub.f32 %v92, %v2076
    %v2078 = vand.u32 %v2077, 4294901760
    %2079 = vmatpush.msra.mxu0 %v2078
    %v2080 = vand.u32 %v91, 4294901760
    %v2081 = vsub.f32 %v91, %v2080
    %v2082 = vand.u32 %v2081, 4294901760
    %2083 = vmatpush.msra.mxu0 %v2082
    %v2084 = vand.u32 %v90, 4294901760
    %v2085 = vsub.f32 %v90, %v2084
    %v2086 = vand.u32 %v2085, 4294901760
    %2087 = vmatpush.msra.mxu0 %v2086
    %v2088 = vand.u32 %v89, 4294901760
    %v2089 = vsub.f32 %v89, %v2088
    %v2090 = vand.u32 %v2089, 4294901760
    %2091 = vmatpush.msra.mxu0 %v2090
    %v2092 = vand.u32 %v1909, 4294901760
    %2093 = vmatmul.f32.gmra.mxu0 %v2092
    %v2094 = vpop.f32.mrf.mxu0
    %v2095 = vadd.f32 %v2056, %v2094
    %v2096 = vand.u32 %v1912, 4294901760
    %2097 = vmatmul.f32.gmra.mxu0 %v2096
    %v2098 = vpop.f32.mrf.mxu0
    %v2099 = vadd.f32 %v2062, %v2098
    %2100 = vdwg.mxu0
    %2101 = vmatpush.msra.mxu0 0.0
    %2102 = vmatpush.msra.mxu0 0.0
    %2103 = vmatpush.msra.mxu0 0.0
    %2104 = vmatpush.msra.mxu0 0.0
    %2105 = vmatpush.msra.mxu0 0.0
    %2106 = vmatpush.msra.mxu0 0.0
    %2107 = vmatpush.msra.mxu0 0.0
    %2108 = vmatpush.msra.mxu0 0.0
    %2109 = vmatpush.msra.mxu0 0.0
    %2110 = vmatpush.msra.mxu0 0.0
    %2111 = vmatpush.msra.mxu0 0.0
    %2112 = vmatpush.msra.mxu0 0.0
    %v2113 = vand.u32 %v92, 4294901760
    %2114 = vmatpush.msra.mxu0 %v2113
    %v2115 = vand.u32 %v91, 4294901760
    %2116 = vmatpush.msra.mxu0 %v2115
    %v2117 = vand.u32 %v90, 4294901760
    %2118 = vmatpush.msra.mxu0 %v2117
    %v2119 = vand.u32 %v89, 4294901760
    %2120 = vmatpush.msra.mxu0 %v2119
    %v2121 = vand.u32 %v1909, 4294901760
    %2122 = vmatmul.f32.gmra.mxu0 %v2121
    %v2123 = vpop.f32.mrf.mxu0
    %v2124 = vadd.f32 %v2095, %v2123
    %v2125 = vand.u32 %v1912, 4294901760
    %2126 = vmatmul.f32.gmra.mxu0 %v2125
    %v2127 = vpop.f32.mrf.mxu0
    %v2128 = vadd.f32 %v2099, %v2127
    %2129 = vdwg.mxu0
    %v2130 = vld [vmem:[#allocation2] sm:$0xff]
    %v2131 = vld [vmem:[%s0] sm:$0xff]
    %v2132 = vld [vmem:[%s0 + $0x8] sm:$0xff]
    %vm2133 = vcmask 64512
    %v2135 = vsel %vm2133, %v2130, 0
    %2137 = vmatpush.msra.mxu0 0.0
    %2138 = vmatpush.msra.mxu0 0.0
    %2139 = vmatpush.msra.mxu0 0.0
    %2140 = vmatpush.msra.mxu0 0.0
    %2141 = vmatpush.msra.mxu0 0.0
    %2142 = vmatpush.msra.mxu0 0.0
    %2143 = vmatpush.msra.mxu0 0.0
    %2144 = vmatpush.msra.mxu0 0.0
    %2145 = vmatpush.msra.mxu0 0.0
    %2146 = vmatpush.msra.mxu0 0.0
    %2147 = vmatpush.msra.mxu0 0.0
    %2148 = vmatpush.msra.mxu0 0.0
    %2149 = vmatpush.msra.mxu0 0.0
    %2150 = vmatpush.msra.mxu0 0.0
    %2151 = vmatpush.msra.mxu0 0.0
    %v2152 = vand.u32 %v2131, 4294901760
    %2153 = vmatpush.msra.mxu0 %v2152
    %v2154 = vand.u32 %v2135, 4294901760
    %v2155 = vsub.f32 %v2135, %v2154
    %v2156 = vand.u32 %v2155, 4294901760
    %v2157 = vsub.f32 %v2155, %v2156
    %v2158 = vand.u32 %v2157, 4294901760
    %2159 = vmatmul.f32.gmra.mxu0 %v2158
    %v2160 = vpop.f32.mrf.mxu0
    %v2161 = vadd.f32 0.0, %v2160
    %2162 = vdwg.mxu0
    %2163 = vmatpush.msra.mxu0 0.0
    %2164 = vmatpush.msra.mxu0 0.0
    %2165 = vmatpush.msra.mxu0 0.0
    %2166 = vmatpush.msra.mxu0 0.0
    %2167 = vmatpush.msra.mxu0 0.0
    %2168 = vmatpush.msra.mxu0 0.0
    %2169 = vmatpush.msra.mxu0 0.0
    %2170 = vmatpush.msra.mxu0 0.0
    %2171 = vmatpush.msra.mxu0 0.0
    %2172 = vmatpush.msra.mxu0 0.0
    %2173 = vmatpush.msra.mxu0 0.0
    %2174 = vmatpush.msra.mxu0 0.0
    %2175 = vmatpush.msra.mxu0 0.0
    %2176 = vmatpush.msra.mxu0 0.0
    %2177 = vmatpush.msra.mxu0 0.0
    %v2178 = vand.u32 %v2131, 4294901760
    %v2179 = vsub.f32 %v2131, %v2178
    %v2180 = vand.u32 %v2179, 4294901760
    %v2181 = vsub.f32 %v2179, %v2180
    %v2182 = vand.u32 %v2181, 4294901760
    %2183 = vmatpush.msra.mxu0 %v2182
    %v2184 = vand.u32 %v2135, 4294901760
    %2185 = vmatmul.f32.gmra.mxu0 %v2184
    %v2186 = vpop.f32.mrf.mxu0
    %v2187 = vadd.f32 %v2161, %v2186
    %2188 = vdwg.mxu0
    %2189 = vmatpush.msra.mxu0 0.0
    %2190 = vmatpush.msra.mxu0 0.0
    %2191 = vmatpush.msra.mxu0 0.0
    %2192 = vmatpush.msra.mxu0 0.0
    %2193 = vmatpush.msra.mxu0 0.0
    %2194 = vmatpush.msra.mxu0 0.0
    %2195 = vmatpush.msra.mxu0 0.0
    %2196 = vmatpush.msra.mxu0 0.0
    %2197 = vmatpush.msra.mxu0 0.0
    %2198 = vmatpush.msra.mxu0 0.0
    %2199 = vmatpush.msra.mxu0 0.0
    %2200 = vmatpush.msra.mxu0 0.0
    %2201 = vmatpush.msra.mxu0 0.0
    %2202 = vmatpush.msra.mxu0 0.0
    %2203 = vmatpush.msra.mxu0 0.0
    %v2204 = vand.u32 %v2131, 4294901760
    %v2205 = vsub.f32 %v2131, %v2204
    %2206 = vmatpush.msra.mxu0 %v2205
    %v2207 = vand.u32 %v2135, 4294901760
    %v2208 = vsub.f32 %v2135, %v2207
    %2209 = vmatmul.f32.gmra.mxu0 %v2208
    %v2210 = vpop.f32.mrf.mxu0
    %v2211 = vadd.f32 %v2187, %v2210
    %2212 = vdwg.mxu0
    %2213 = vmatpush.msra.mxu0 0.0
    %2214 = vmatpush.msra.mxu0 0.0
    %2215 = vmatpush.msra.mxu0 0.0
    %2216 = vmatpush.msra.mxu0 0.0
    %2217 = vmatpush.msra.mxu0 0.0
    %2218 = vmatpush.msra.mxu0 0.0
    %2219 = vmatpush.msra.mxu0 0.0
    %2220 = vmatpush.msra.mxu0 0.0
    %2221 = vmatpush.msra.mxu0 0.0
    %2222 = vmatpush.msra.mxu0 0.0
    %2223 = vmatpush.msra.mxu0 0.0
    %2224 = vmatpush.msra.mxu0 0.0
    %2225 = vmatpush.msra.mxu0 0.0
    %2226 = vmatpush.msra.mxu0 0.0
    %2227 = vmatpush.msra.mxu0 0.0
    %v2228 = vand.u32 %v2131, 4294901760
    %2229 = vmatpush.msra.mxu0 %v2228
    %v2230 = vand.u32 %v2135, 4294901760
    %v2231 = vsub.f32 %v2135, %v2230
    %v2232 = vand.u32 %v2231, 4294901760
    %2233 = vmatmul.f32.gmra.mxu0 %v2232
    %v2234 = vpop.f32.mrf.mxu0
    %v2235 = vadd.f32 %v2211, %v2234
    %2236 = vdwg.mxu0
    %2237 = vmatpush.msra.mxu0 0.0
    %2238 = vmatpush.msra.mxu0 0.0
    %2239 = vmatpush.msra.mxu0 0.0
    %2240 = vmatpush.msra.mxu0 0.0
    %2241 = vmatpush.msra.mxu0 0.0
    %2242 = vmatpush.msra.mxu0 0.0
    %2243 = vmatpush.msra.mxu0 0.0
    %2244 = vmatpush.msra.mxu0 0.0
    %2245 = vmatpush.msra.mxu0 0.0
    %2246 = vmatpush.msra.mxu0 0.0
    %2247 = vmatpush.msra.mxu0 0.0
    %2248 = vmatpush.msra.mxu0 0.0
    %2249 = vmatpush.msra.mxu0 0.0
    %2250 = vmatpush.msra.mxu0 0.0
    %2251 = vmatpush.msra.mxu0 0.0
    %v2252 = vand.u32 %v2131, 4294901760
    %v2253 = vsub.f32 %v2131, %v2252
    %v2254 = vand.u32 %v2253, 4294901760
    %2255 = vmatpush.msra.mxu0 %v2254
    %v2256 = vand.u32 %v2135, 4294901760
    %2257 = vmatmul.f32.gmra.mxu0 %v2256
    %v2258 = vpop.f32.mrf.mxu0
    %v2259 = vadd.f32 %v2235, %v2258
    %2260 = vdwg.mxu0
    %2261 = vmatpush.msra.mxu0 0.0
    %2262 = vmatpush.msra.mxu0 0.0
    %2263 = vmatpush.msra.mxu0 0.0
    %2264 = vmatpush.msra.mxu0 0.0
    %2265 = vmatpush.msra.mxu0 0.0
    %2266 = vmatpush.msra.mxu0 0.0
    %2267 = vmatpush.msra.mxu0 0.0
    %2268 = vmatpush.msra.mxu0 0.0
    %2269 = vmatpush.msra.mxu0 0.0
    %2270 = vmatpush.msra.mxu0 0.0
    %2271 = vmatpush.msra.mxu0 0.0
    %2272 = vmatpush.msra.mxu0 0.0
    %2273 = vmatpush.msra.mxu0 0.0
    %2274 = vmatpush.msra.mxu0 0.0
    %2275 = vmatpush.msra.mxu0 0.0
    %v2276 = vand.u32 %v2131, 4294901760
    %2277 = vmatpush.msra.mxu0 %v2276
    %v2278 = vand.u32 %v2135, 4294901760
    %2279 = vmatmul.f32.gmra.mxu0 %v2278
    %v2280 = vpop.f32.mrf.mxu0
    %v2281 = vadd.f32 %v2259, %v2280
    %2282 = vdwg.mxu0
    %2283 = vmatpush.msra.mxu0 0.0
    %2284 = vmatpush.msra.mxu0 0.0
    %2285 = vmatpush.msra.mxu0 0.0
    %2286 = vmatpush.msra.mxu0 0.0
    %2287 = vmatpush.msra.mxu0 0.0
    %2288 = vmatpush.msra.mxu0 0.0
    %2289 = vmatpush.msra.mxu0 0.0
    %2290 = vmatpush.msra.mxu0 0.0
    %2291 = vmatpush.msra.mxu0 0.0
    %2292 = vmatpush.msra.mxu0 0.0
    %2293 = vmatpush.msra.mxu0 0.0
    %2294 = vmatpush.msra.mxu0 0.0
    %2295 = vmatpush.msra.mxu0 0.0
    %2296 = vmatpush.msra.mxu0 0.0
    %2297 = vmatpush.msra.mxu0 0.0
    %v2298 = vand.u32 %v2132, 4294901760
    %2299 = vmatpush.msra.mxu0 %v2298
    %v2300 = vand.u32 %v2135, 4294901760
    %v2301 = vsub.f32 %v2135, %v2300
    %v2302 = vand.u32 %v2301, 4294901760
    %v2303 = vsub.f32 %v2301, %v2302
    %v2304 = vand.u32 %v2303, 4294901760
    %2305 = vmatmul.f32.gmra.mxu0 %v2304
    %v2306 = vpop.f32.mrf.mxu0
    %v2307 = vadd.f32 0.0, %v2306
    %2308 = vdwg.mxu0
    %2309 = vmatpush.msra.mxu0 0.0
    %2310 = vmatpush.msra.mxu0 0.0
    %2311 = vmatpush.msra.mxu0 0.0
    %2312 = vmatpush.msra.mxu0 0.0
    %2313 = vmatpush.msra.mxu0 0.0
    %2314 = vmatpush.msra.mxu0 0.0
    %2315 = vmatpush.msra.mxu0 0.0
    %2316 = vmatpush.msra.mxu0 0.0
    %2317 = vmatpush.msra.mxu0 0.0
    %2318 = vmatpush.msra.mxu0 0.0
    %2319 = vmatpush.msra.mxu0 0.0
    %2320 = vmatpush.msra.mxu0 0.0
    %2321 = vmatpush.msra.mxu0 0.0
    %2322 = vmatpush.msra.mxu0 0.0
    %2323 = vmatpush.msra.mxu0 0.0
    %v2324 = vand.u32 %v2132, 4294901760
    %v2325 = vsub.f32 %v2132, %v2324
    %v2326 = vand.u32 %v2325, 4294901760
    %v2327 = vsub.f32 %v2325, %v2326
    %v2328 = vand.u32 %v2327, 4294901760
    %2329 = vmatpush.msra.mxu0 %v2328
    %v2330 = vand.u32 %v2135, 4294901760
    %2331 = vmatmul.f32.gmra.mxu0 %v2330
    %v2332 = vpop.f32.mrf.mxu0
    %v2333 = vadd.f32 %v2307, %v2332
    %2334 = vdwg.mxu0
    %2335 = vmatpush.msra.mxu0 0.0
    %2336 = vmatpush.msra.mxu0 0.0
    %2337 = vmatpush.msra.mxu0 0.0
    %2338 = vmatpush.msra.mxu0 0.0
    %2339 = vmatpush.msra.mxu0 0.0
    %2340 = vmatpush.msra.mxu0 0.0
    %2341 = vmatpush.msra.mxu0 0.0
    %2342 = vmatpush.msra.mxu0 0.0
    %2343 = vmatpush.msra.mxu0 0.0
    %2344 = vmatpush.msra.mxu0 0.0
    %2345 = vmatpush.msra.mxu0 0.0
    %2346 = vmatpush.msra.mxu0 0.0
    %2347 = vmatpush.msra.mxu0 0.0
    %2348 = vmatpush.msra.mxu0 0.0
    %2349 = vmatpush.msra.mxu0 0.0
    %v2350 = vand.u32 %v2132, 4294901760
    %v2351 = vsub.f32 %v2132, %v2350
    %2352 = vmatpush.msra.mxu0 %v2351
    %v2353 = vand.u32 %v2135, 4294901760
    %v2354 = vsub.f32 %v2135, %v2353
    %2355 = vmatmul.f32.gmra.mxu0 %v2354
    %v2356 = vpop.f32.mrf.mxu0
    %v2357 = vadd.f32 %v2333, %v2356
    %2358 = vdwg.mxu0
    %2359 = vmatpush.msra.mxu0 0.0
    %2360 = vmatpush.msra.mxu0 0.0
    %2361 = vmatpush.msra.mxu0 0.0
    %2362 = vmatpush.msra.mxu0 0.0
    %2363 = vmatpush.msra.mxu0 0.0
    %2364 = vmatpush.msra.mxu0 0.0
    %2365 = vmatpush.msra.mxu0 0.0
    %2366 = vmatpush.msra.mxu0 0.0
    %2367 = vmatpush.msra.mxu0 0.0
    %2368 = vmatpush.msra.mxu0 0.0
    %2369 = vmatpush.msra.mxu0 0.0
    %2370 = vmatpush.msra.mxu0 0.0
    %2371 = vmatpush.msra.mxu0 0.0
    %2372 = vmatpush.msra.mxu0 0.0
    %2373 = vmatpush.msra.mxu0 0.0
    %v2374 = vand.u32 %v2132, 4294901760
    %2375 = vmatpush.msra.mxu0 %v2374
    %v2376 = vand.u32 %v2135, 4294901760
    %v2377 = vsub.f32 %v2135, %v2376
    %v2378 = vand.u32 %v2377, 4294901760
    %2379 = vmatmul.f32.gmra.mxu0 %v2378
    %v2380 = vpop.f32.mrf.mxu0
    %v2381 = vadd.f32 %v2357, %v2380
    %2382 = vdwg.mxu0
    %2383 = vmatpush.msra.mxu0 0.0
    %2384 = vmatpush.msra.mxu0 0.0
    %2385 = vmatpush.msra.mxu0 0.0
    %2386 = vmatpush.msra.mxu0 0.0
    %2387 = vmatpush.msra.mxu0 0.0
    %2388 = vmatpush.msra.mxu0 0.0
    %2389 = vmatpush.msra.mxu0 0.0
    %2390 = vmatpush.msra.mxu0 0.0
    %2391 = vmatpush.msra.mxu0 0.0
    %2392 = vmatpush.msra.mxu0 0.0
    %2393 = vmatpush.msra.mxu0 0.0
    %2394 = vmatpush.msra.mxu0 0.0
    %2395 = vmatpush.msra.mxu0 0.0
    %2396 = vmatpush.msra.mxu0 0.0
    %2397 = vmatpush.msra.mxu0 0.0
    %v2398 = vand.u32 %v2132, 4294901760
    %v2399 = vsub.f32 %v2132, %v2398
    %v2400 = vand.u32 %v2399, 4294901760
    %2401 = vmatpush.msra.mxu0 %v2400
    %v2402 = vand.u32 %v2135, 4294901760
    %2403 = vmatmul.f32.gmra.mxu0 %v2402
    %v2404 = vpop.f32.mrf.mxu0
    %v2405 = vadd.f32 %v2381, %v2404
    %2406 = vdwg.mxu0
    %2407 = vmatpush.msra.mxu0 0.0
    %2408 = vmatpush.msra.mxu0 0.0
    %2409 = vmatpush.msra.mxu0 0.0
    %2410 = vmatpush.msra.mxu0 0.0
    %2411 = vmatpush.msra.mxu0 0.0
    %2412 = vmatpush.msra.mxu0 0.0
    %2413 = vmatpush.msra.mxu0 0.0
    %2414 = vmatpush.msra.mxu0 0.0
    %2415 = vmatpush.msra.mxu0 0.0
    %2416 = vmatpush.msra.mxu0 0.0
    %2417 = vmatpush.msra.mxu0 0.0
    %2418 = vmatpush.msra.mxu0 0.0
    %2419 = vmatpush.msra.mxu0 0.0
    %2420 = vmatpush.msra.mxu0 0.0
    %2421 = vmatpush.msra.mxu0 0.0
    %v2422 = vand.u32 %v2132, 4294901760
    %2423 = vmatpush.msra.mxu0 %v2422
    %v2424 = vand.u32 %v2135, 4294901760
    %2425 = vmatmul.f32.gmra.mxu0 %v2424
    %v2426 = vpop.f32.mrf.mxu0
    %v2427 = vadd.f32 %v2405, %v2426
    %2428 = vdwg.mxu0
    %v2429 = vld [vmem:[%s3] sm:$0x1]
    %vm2430 = vcmask 57344
    %v2431 = vsel %vm2430, %v2429, 0.0
    %2432 = vadd.xlane.f32.xlu0 %v2431
    %v2433 = vpop.xlane.xlu0 %2432
    %v2434 = vrot.slane %v2433, 4
    %v2435 = vadd.f32 %v2433, %v2434
    %v2436 = vrot.slane %v2435, 2
    %v2437 = vadd.f32 %v2435, %v2436
    %v2438 = vrot.slane %v2437, 1
    %v2439 = vadd.f32 %v2437, %v2438
    %s2440 = vtos %v2439
    %v2441 = vstv %s2440
    %v2442 = vmul.f32 %v2441, 128.0
    %v2443 = vadd.f32 %v2281, %v2427
    %2444 = vadd.xlane.f32.xlu0 %v2443
    %v2445 = vpop.xlane.xlu0 %2444
    %v2446 = vrcp.pop 256.0
    %v2447 = vmul.f32 256.0, %v2446
    %v2448 = vsub.f32 1.0, %v2447
    %v2449 = vmul.f32 %v2446, %v2448
    %v2450 = vadd.f32 %v2446, %v2449
    %vm2451 = vweird.f32 %v2446
    %v2452 = vsel %vm2451, %v2446, %v2450
    %v2453 = vmul.f32 %v2445, %v2452
    %v2454 = vsub.f32 %v2281, %v2453
    %v2455 = vsub.f32 %v2427, %v2453
    %v2456 = vmul.f32 %v2454, %v2454
    %v2457 = vmul.f32 %v2455, %v2455
    %v2458 = vadd.f32 %v2456, %v2457
    %2459 = vadd.xlane.f32.xlu0 %v2458
    %v2460 = vpop.xlane.xlu0 %2459
    %v2461 = vrcp.pop 255.0
    %v2462 = vmul.f32 255.0, %v2461
    %v2463 = vsub.f32 1.0, %v2462
    %v2464 = vmul.f32 %v2461, %v2463
    %v2465 = vadd.f32 %v2461, %v2464
    %vm2466 = vweird.f32 %v2461
    %v2467 = vsel %vm2466, %v2461, %v2465
    %v2468 = vmul.f32 %v2460, %v2467
    %v2469 = vrsqrt.pop %v2468
    %v2470 = vmul.f32 %v2469, %v2468
    %v2471 = vmul.f32 %v2470, %v2469
    %v2472 = vmul.f32 0.5, %v2471
    %v2473 = vsub.f32 1.5, %v2472
    %v2474 = vmul.f32 %v2469, %v2473
    %v2475 = vmul.f32 %v2468, %v2474
    %vm2476 = vcmp.eq.f32.partialorder %v2468, inf
    %v2477 = vsel %vm2476, %v2468, %v2475
    %vm2478 = vcmp.eq.f32.partialorder %v2468, 0.0
    %v2479 = vand.u32 %v2468, 2147483648
    %v2480 = vsel %vm2478, %v2479, %v2477
    %v2481 = vadd.f32 %v2480, 1e-07
    %v2482 = vlog2.pop %v2481
    %v2483 = vmul.f32 %v2482, 0.6931472
    %v2484 = vsub.f32 0.0, %v2483
    %v2485 = vmul.f32 %v2484, 1.442695
    %v2486 = vpow.pop %v2485
    %v2487 = vmul.f32 %v2454, %v2486
    %v2488 = vmul.f32 %v2455, %v2486
    %vm2489 = vcmask 7168
    %v2490 = vsel %vm2489, %v2484, 0.0
    %2491 = vadd.xlane.f32.xlu0 %v2490
    %v2492 = vpop.xlane.xlu0 %2491
    %v2493 = vrot.slane %v2492, 4
    %v2494 = vadd.f32 %v2492, %v2493
    %v2495 = vrot.slane %v2494, 2
    %v2496 = vadd.f32 %v2494, %v2495
    %v2497 = vrot.slane %v2496, 1
    %v2498 = vadd.f32 %v2496, %v2497
    %s2499 = vtos %v2498
    %v2500 = vstv %s2499
    %v2501 = vmul.f32 %v2500, 128.0
    %v2502 = vadd.f32 %v2442, %v2501
    %v2505 = vrot.slane %v2487, 4
    %v2506 = vrot.slane %v2488, 4
    %vm2509 = vcmask 1043456
    %v2510 = vsel %vm2509, %v2487, %v2505
    %v2511 = vsel %vm2509, %v2488, %v2506
    %2512 = vrot.lane.b32.xlu0 %v2510, 1
    %v2513 = vpop.permute.xlu0 %2512
    %2514 = vrot.lane.b32.xlu0 %v2511, 1
    %v2515 = vpop.permute.xlu0 %2514
    %vm2516 = vcmp.lt.s32.totalorder %v60, 1
    %v2517 = vsel %vm2516, %v2513, %v2515
    %v2518 = vsel %vm2516, %v2515, %v2513
    %v2519 = vsel %vm66, 1, 0
    %v2520 = vsel %vm67, 1, 0
    %vm2521 = vcmp.eq.s32.totalorder %v2519, 1
    %vm2522 = vcmp.eq.s32.totalorder %v2520, 1
    %v2523 = vsel %vm2521, 0.0, %v2518
    %v2524 = vsel %vm2522, 0.0, %v2517
    %v2525 = vmul.f32 %v515, %v2523
    %v2526 = vmul.f32 %v692, %v2524
    %v2527 = vmul.f32 %v519, %v2523
    %v2528 = vmul.f32 %v696, %v2524
    %v2530 = vsel %vm330, %v2124, 0
    %v2533 = vsel %vm330, %v2128, 0
    %2535 = vmatpush.msra.mxu0 0.0
    %2536 = vmatpush.msra.mxu0 0.0
    %2537 = vmatpush.msra.mxu0 0.0
    %2538 = vmatpush.msra.mxu0 0.0
    %2539 = vmatpush.msra.mxu0 0.0
    %2540 = vmatpush.msra.mxu0 0.0
    %2541 = vmatpush.msra.mxu0 0.0
    %2542 = vmatpush.msra.mxu0 0.0
    %2543 = vmatpush.msra.mxu0 0.0
    %2544 = vmatpush.msra.mxu0 0.0
    %2545 = vmatpush.msra.mxu0 0.0
    %2546 = vmatpush.msra.mxu0 0.0
    %2547 = vmatpush.msra.mxu0 0.0
    %2548 = vmatpush.msra.mxu0 0.0
    %2549 = vmatpush.msra.mxu0 0.0
    %v2550 = vand.u32 %v339, 4294901760
    %2551 = vmatpush.msra.mxu0 %v2550
    %v2552 = vand.u32 %v2530, 4294901760
    %v2553 = vsub.f32 %v2530, %v2552
    %v2554 = vand.u32 %v2553, 4294901760
    %v2555 = vsub.f32 %v2553, %v2554
    %v2556 = vand.u32 %v2555, 4294901760
    %2557 = vmatmul.f32.gmra.mxu0 %v2556
    %v2558 = vpop.f32.mrf.mxu0
    %v2559 = vadd.f32 %v2525, %v2558
    %v2560 = vand.u32 %v2533, 4294901760
    %v2561 = vsub.f32 %v2533, %v2560
    %v2562 = vand.u32 %v2561, 4294901760
    %v2563 = vsub.f32 %v2561, %v2562
    %v2564 = vand.u32 %v2563, 4294901760
    %2565 = vmatmul.f32.gmra.mxu0 %v2564
    %v2566 = vpop.f32.mrf.mxu0
    %v2567 = vadd.f32 %v2527, %v2566
    %2568 = vdwg.mxu0
    %2569 = vmatpush.msra.mxu0 0.0
    %2570 = vmatpush.msra.mxu0 0.0
    %2571 = vmatpush.msra.mxu0 0.0
    %2572 = vmatpush.msra.mxu0 0.0
    %2573 = vmatpush.msra.mxu0 0.0
    %2574 = vmatpush.msra.mxu0 0.0
    %2575 = vmatpush.msra.mxu0 0.0
    %2576 = vmatpush.msra.mxu0 0.0
    %2577 = vmatpush.msra.mxu0 0.0
    %2578 = vmatpush.msra.mxu0 0.0
    %2579 = vmatpush.msra.mxu0 0.0
    %2580 = vmatpush.msra.mxu0 0.0
    %2581 = vmatpush.msra.mxu0 0.0
    %2582 = vmatpush.msra.mxu0 0.0
    %2583 = vmatpush.msra.mxu0 0.0
    %v2584 = vand.u32 %v339, 4294901760
    %v2585 = vsub.f32 %v339, %v2584
    %v2586 = vand.u32 %v2585, 4294901760
    %v2587 = vsub.f32 %v2585, %v2586
    %v2588 = vand.u32 %v2587, 4294901760
    %2589 = vmatpush.msra.mxu0 %v2588
    %v2590 = vand.u32 %v2530, 4294901760
    %2591 = vmatmul.f32.gmra.mxu0 %v2590
    %v2592 = vpop.f32.mrf.mxu0
    %v2593 = vadd.f32 %v2559, %v2592
    %v2594 = vand.u32 %v2533, 4294901760
    %2595 = vmatmul.f32.gmra.mxu0 %v2594
    %v2596 = vpop.f32.mrf.mxu0
    %v2597 = vadd.f32 %v2567, %v2596
    %2598 = vdwg.mxu0
    %2599 = vmatpush.msra.mxu0 0.0
    %2600 = vmatpush.msra.mxu0 0.0
    %2601 = vmatpush.msra.mxu0 0.0
    %2602 = vmatpush.msra.mxu0 0.0
    %2603 = vmatpush.msra.mxu0 0.0
    %2604 = vmatpush.msra.mxu0 0.0
    %2605 = vmatpush.msra.mxu0 0.0
    %2606 = vmatpush.msra.mxu0 0.0
    %2607 = vmatpush.msra.mxu0 0.0
    %2608 = vmatpush.msra.mxu0 0.0
    %2609 = vmatpush.msra.mxu0 0.0
    %2610 = vmatpush.msra.mxu0 0.0
    %2611 = vmatpush.msra.mxu0 0.0
    %2612 = vmatpush.msra.mxu0 0.0
    %2613 = vmatpush.msra.mxu0 0.0
    %v2614 = vand.u32 %v339, 4294901760
    %v2615 = vsub.f32 %v339, %v2614
    %2616 = vmatpush.msra.mxu0 %v2615
    %v2617 = vand.u32 %v2530, 4294901760
    %v2618 = vsub.f32 %v2530, %v2617
    %2619 = vmatmul.f32.gmra.mxu0 %v2618
    %v2620 = vpop.f32.mrf.mxu0
    %v2621 = vadd.f32 %v2593, %v2620
    %v2622 = vand.u32 %v2533, 4294901760
    %v2623 = vsub.f32 %v2533, %v2622
    %2624 = vmatmul.f32.gmra.mxu0 %v2623
    %v2625 = vpop.f32.mrf.mxu0
    %v2626 = vadd.f32 %v2597, %v2625
    %2627 = vdwg.mxu0
    %2628 = vmatpush.msra.mxu0 0.0
    %2629 = vmatpush.msra.mxu0 0.0
    %2630 = vmatpush.msra.mxu0 0.0
    %2631 = vmatpush.msra.mxu0 0.0
    %2632 = vmatpush.msra.mxu0 0.0
    %2633 = vmatpush.msra.mxu0 0.0
    %2634 = vmatpush.msra.mxu0 0.0
    %2635 = vmatpush.msra.mxu0 0.0
    %2636 = vmatpush.msra.mxu0 0.0
    %2637 = vmatpush.msra.mxu0 0.0
    %2638 = vmatpush.msra.mxu0 0.0
    %2639 = vmatpush.msra.mxu0 0.0
    %2640 = vmatpush.msra.mxu0 0.0
    %2641 = vmatpush.msra.mxu0 0.0
    %2642 = vmatpush.msra.mxu0 0.0
    %v2643 = vand.u32 %v339, 4294901760
    %2644 = vmatpush.msra.mxu0 %v2643
    %v2645 = vand.u32 %v2530, 4294901760
    %v2646 = vsub.f32 %v2530, %v2645
    %v2647 = vand.u32 %v2646, 4294901760
    %2648 = vmatmul.f32.gmra.mxu0 %v2647
    %v2649 = vpop.f32.mrf.mxu0
    %v2650 = vadd.f32 %v2621, %v2649
    %v2651 = vand.u32 %v2533, 4294901760
    %v2652 = vsub.f32 %v2533, %v2651
    %v2653 = vand.u32 %v2652, 4294901760
    %2654 = vmatmul.f32.gmra.mxu0 %v2653
    %v2655 = vpop.f32.mrf.mxu0
    %v2656 = vadd.f32 %v2626, %v2655
    %2657 = vdwg.mxu0
    %2658 = vmatpush.msra.mxu0 0.0
    %2659 = vmatpush.msra.mxu0 0.0
    %2660 = vmatpush.msra.mxu0 0.0
    %2661 = vmatpush.msra.mxu0 0.0
    %2662 = vmatpush.msra.mxu0 0.0
    %2663 = vmatpush.msra.mxu0 0.0
    %2664 = vmatpush.msra.mxu0 0.0
    %2665 = vmatpush.msra.mxu0 0.0
    %2666 = vmatpush.msra.mxu0 0.0
    %2667 = vmatpush.msra.mxu0 0.0
    %2668 = vmatpush.msra.mxu0 0.0
    %2669 = vmatpush.msra.mxu0 0.0
    %2670 = vmatpush.msra.mxu0 0.0
    %2671 = vmatpush.msra.mxu0 0.0
    %2672 = vmatpush.msra.mxu0 0.0
    %v2673 = vand.u32 %v339, 4294901760
    %v2674 = vsub.f32 %v339, %v2673
    %v2675 = vand.u32 %v2674, 4294901760
    %2676 = vmatpush.msra.mxu0 %v2675
    %v2677 = vand.u32 %v2530, 4294901760
    %2678 = vmatmul.f32.gmra.mxu0 %v2677
    %v2679 = vpop.f32.mrf.mxu0
    %v2680 = vadd.f32 %v2650, %v2679
    %v2681 = vand.u32 %v2533, 4294901760
    %2682 = vmatmul.f32.gmra.mxu0 %v2681
    %v2683 = vpop.f32.mrf.mxu0
    %v2684 = vadd.f32 %v2656, %v2683
    %2685 = vdwg.mxu0
    %2686 = vmatpush.msra.mxu0 0.0
    %2687 = vmatpush.msra.mxu0 0.0
    %2688 = vmatpush.msra.mxu0 0.0
    %2689 = vmatpush.msra.mxu0 0.0
    %2690 = vmatpush.msra.mxu0 0.0
    %2691 = vmatpush.msra.mxu0 0.0
    %2692 = vmatpush.msra.mxu0 0.0
    %2693 = vmatpush.msra.mxu0 0.0
    %2694 = vmatpush.msra.mxu0 0.0
    %2695 = vmatpush.msra.mxu0 0.0
    %2696 = vmatpush.msra.mxu0 0.0
    %2697 = vmatpush.msra.mxu0 0.0
    %2698 = vmatpush.msra.mxu0 0.0
    %2699 = vmatpush.msra.mxu0 0.0
    %2700 = vmatpush.msra.mxu0 0.0
    %v2701 = vand.u32 %v339, 4294901760
    %2702 = vmatpush.msra.mxu0 %v2701
    %v2703 = vand.u32 %v2530, 4294901760
    %2704 = vmatmul.f32.gmra.mxu0 %v2703
    %v2705 = vpop.f32.mrf.mxu0
    %v2706 = vadd.f32 %v2680, %v2705
    %v2707 = vand.u32 %v2533, 4294901760
    %2708 = vmatmul.f32.gmra.mxu0 %v2707
    %v2709 = vpop.f32.mrf.mxu0
    %v2710 = vadd.f32 %v2684, %v2709
    %2711 = vdwg.mxu0
    %2712 = vmatpush.msra.mxu0 0.0
    %2713 = vmatpush.msra.mxu0 0.0
    %2714 = vmatpush.msra.mxu0 0.0
    %2715 = vmatpush.msra.mxu0 0.0
    %2716 = vmatpush.msra.mxu0 0.0
    %2717 = vmatpush.msra.mxu0 0.0
    %2718 = vmatpush.msra.mxu0 0.0
    %2719 = vmatpush.msra.mxu0 0.0
    %2720 = vmatpush.msra.mxu0 0.0
    %2721 = vmatpush.msra.mxu0 0.0
    %2722 = vmatpush.msra.mxu0 0.0
    %2723 = vmatpush.msra.mxu0 0.0
    %2724 = vmatpush.msra.mxu0 0.0
    %2725 = vmatpush.msra.mxu0 0.0
    %2726 = vmatpush.msra.mxu0 0.0
    %v2727 = vand.u32 %v342, 4294901760
    %2728 = vmatpush.msra.mxu0 %v2727
    %v2729 = vand.u32 %v2530, 4294901760
    %v2730 = vsub.f32 %v2530, %v2729
    %v2731 = vand.u32 %v2730, 4294901760
    %v2732 = vsub.f32 %v2730, %v2731
    %v2733 = vand.u32 %v2732, 4294901760
    %2734 = vmatmul.f32.gmra.mxu0 %v2733
    %v2735 = vpop.f32.mrf.mxu0
    %v2736 = vadd.f32 %v2526, %v2735
    %v2737 = vand.u32 %v2533, 4294901760
    %v2738 = vsub.f32 %v2533, %v2737
    %v2739 = vand.u32 %v2738, 4294901760
    %v2740 = vsub.f32 %v2738, %v2739
    %v2741 = vand.u32 %v2740, 4294901760
    %2742 = vmatmul.f32.gmra.mxu0 %v2741
    %v2743 = vpop.f32.mrf.mxu0
    %v2744 = vadd.f32 %v2528, %v2743
    %2745 = vdwg.mxu0
    %2746 = vmatpush.msra.mxu0 0.0
    %2747 = vmatpush.msra.mxu0 0.0
    %2748 = vmatpush.msra.mxu0 0.0
    %2749 = vmatpush.msra.mxu0 0.0
    %2750 = vmatpush.msra.mxu0 0.0
    %2751 = vmatpush.msra.mxu0 0.0
    %2752 = vmatpush.msra.mxu0 0.0
    %2753 = vmatpush.msra.mxu0 0.0
    %2754 = vmatpush.msra.mxu0 0.0
    %2755 = vmatpush.msra.mxu0 0.0
    %2756 = vmatpush.msra.mxu0 0.0
    %2757 = vmatpush.msra.mxu0 0.0
    %2758 = vmatpush.msra.mxu0 0.0
    %2759 = vmatpush.msra.mxu0 0.0
    %2760 = vmatpush.msra.mxu0 0.0
    %v2761 = vand.u32 %v342, 4294901760
    %v2762 = vsub.f32 %v342, %v2761
    %v2763 = vand.u32 %v2762, 4294901760
    %v2764 = vsub.f32 %v2762, %v2763
    %v2765 = vand.u32 %v2764, 4294901760
    %2766 = vmatpush.msra.mxu0 %v2765
    %v2767 = vand.u32 %v2530, 4294901760
    %2768 = vmatmul.f32.gmra.mxu0 %v2767
    %v2769 = vpop.f32.mrf.mxu0
    %v2770 = vadd.f32 %v2736, %v2769
    %v2771 = vand.u32 %v2533, 4294901760
    %2772 = vmatmul.f32.gmra.mxu0 %v2771
    %v2773 = vpop.f32.mrf.mxu0
    %v2774 = vadd.f32 %v2744, %v2773
    %2775 = vdwg.mxu0
    %2776 = vmatpush.msra.mxu0 0.0
    %2777 = vmatpush.msra.mxu0 0.0
    %2778 = vmatpush.msra.mxu0 0.0
    %2779 = vmatpush.msra.mxu0 0.0
    %2780 = vmatpush.msra.mxu0 0.0
    %2781 = vmatpush.msra.mxu0 0.0
    %2782 = vmatpush.msra.mxu0 0.0
    %2783 = vmatpush.msra.mxu0 0.0
    %2784 = vmatpush.msra.mxu0 0.0
    %2785 = vmatpush.msra.mxu0 0.0
    %2786 = vmatpush.msra.mxu0 0.0
    %2787 = vmatpush.msra.mxu0 0.0
    %2788 = vmatpush.msra.mxu0 0.0
    %2789 = vmatpush.msra.mxu0 0.0
    %2790 = vmatpush.msra.mxu0 0.0
    %v2791 = vand.u32 %v342, 4294901760
    %v2792 = vsub.f32 %v342, %v2791
    %2793 = vmatpush.msra.mxu0 %v2792
    %v2794 = vand.u32 %v2530, 4294901760
    %v2795 = vsub.f32 %v2530, %v2794
    %2796 = vmatmul.f32.gmra.mxu0 %v2795
    %v2797 = vpop.f32.mrf.mxu0
    %v2798 = vadd.f32 %v2770, %v2797
    %v2799 = vand.u32 %v2533, 4294901760
    %v2800 = vsub.f32 %v2533, %v2799
    %2801 = vmatmul.f32.gmra.mxu0 %v2800
    %v2802 = vpop.f32.mrf.mxu0
    %v2803 = vadd.f32 %v2774, %v2802
    %2804 = vdwg.mxu0
    %2805 = vmatpush.msra.mxu0 0.0
    %2806 = vmatpush.msra.mxu0 0.0
    %2807 = vmatpush.msra.mxu0 0.0
    %2808 = vmatpush.msra.mxu0 0.0
    %2809 = vmatpush.msra.mxu0 0.0
    %2810 = vmatpush.msra.mxu0 0.0
    %2811 = vmatpush.msra.mxu0 0.0
    %2812 = vmatpush.msra.mxu0 0.0
    %2813 = vmatpush.msra.mxu0 0.0
    %2814 = vmatpush.msra.mxu0 0.0
    %2815 = vmatpush.msra.mxu0 0.0
    %2816 = vmatpush.msra.mxu0 0.0
    %2817 = vmatpush.msra.mxu0 0.0
    %2818 = vmatpush.msra.mxu0 0.0
    %2819 = vmatpush.msra.mxu0 0.0
    %v2820 = vand.u32 %v342, 4294901760
    %2821 = vmatpush.msra.mxu0 %v2820
    %v2822 = vand.u32 %v2530, 4294901760
    %v2823 = vsub.f32 %v2530, %v2822
    %v2824 = vand.u32 %v2823, 4294901760
    %2825 = vmatmul.f32.gmra.mxu0 %v2824
    %v2826 = vpop.f32.mrf.mxu0
    %v2827 = vadd.f32 %v2798, %v2826
    %v2828 = vand.u32 %v2533, 4294901760
    %v2829 = vsub.f32 %v2533, %v2828
    %v2830 = vand.u32 %v2829, 4294901760
    %2831 = vmatmul.f32.gmra.mxu0 %v2830
    %v2832 = vpop.f32.mrf.mxu0
    %v2833 = vadd.f32 %v2803, %v2832
    %2834 = vdwg.mxu0
    %2835 = vmatpush.msra.mxu0 0.0
    %2836 = vmatpush.msra.mxu0 0.0
    %2837 = vmatpush.msra.mxu0 0.0
    %2838 = vmatpush.msra.mxu0 0.0
    %2839 = vmatpush.msra.mxu0 0.0
    %2840 = vmatpush.msra.mxu0 0.0
    %2841 = vmatpush.msra.mxu0 0.0
    %2842 = vmatpush.msra.mxu0 0.0
    %2843 = vmatpush.msra.mxu0 0.0
    %2844 = vmatpush.msra.mxu0 0.0
    %2845 = vmatpush.msra.mxu0 0.0
    %2846 = vmatpush.msra.mxu0 0.0
    %2847 = vmatpush.msra.mxu0 0.0
    %2848 = vmatpush.msra.mxu0 0.0
    %2849 = vmatpush.msra.mxu0 0.0
    %v2850 = vand.u32 %v342, 4294901760
    %v2851 = vsub.f32 %v342, %v2850
    %v2852 = vand.u32 %v2851, 4294901760
    %2853 = vmatpush.msra.mxu0 %v2852
    %v2854 = vand.u32 %v2530, 4294901760
    %2855 = vmatmul.f32.gmra.mxu0 %v2854
    %v2856 = vpop.f32.mrf.mxu0
    %v2857 = vadd.f32 %v2827, %v2856
    %v2858 = vand.u32 %v2533, 4294901760
    %2859 = vmatmul.f32.gmra.mxu0 %v2858
    %v2860 = vpop.f32.mrf.mxu0
    %v2861 = vadd.f32 %v2833, %v2860
    %2862 = vdwg.mxu0
    %2863 = vmatpush.msra.mxu0 0.0
    %2864 = vmatpush.msra.mxu0 0.0
    %2865 = vmatpush.msra.mxu0 0.0
    %2866 = vmatpush.msra.mxu0 0.0
    %2867 = vmatpush.msra.mxu0 0.0
    %2868 = vmatpush.msra.mxu0 0.0
    %2869 = vmatpush.msra.mxu0 0.0
    %2870 = vmatpush.msra.mxu0 0.0
    %2871 = vmatpush.msra.mxu0 0.0
    %2872 = vmatpush.msra.mxu0 0.0
    %2873 = vmatpush.msra.mxu0 0.0
    %2874 = vmatpush.msra.mxu0 0.0
    %2875 = vmatpush.msra.mxu0 0.0
    %2876 = vmatpush.msra.mxu0 0.0
    %2877 = vmatpush.msra.mxu0 0.0
    %v2878 = vand.u32 %v342, 4294901760
    %2879 = vmatpush.msra.mxu0 %v2878
    %v2880 = vand.u32 %v2530, 4294901760
    %2881 = vmatmul.f32.gmra.mxu0 %v2880
    %v2882 = vpop.f32.mrf.mxu0
    %v2883 = vadd.f32 %v2857, %v2882
    %v2884 = vand.u32 %v2533, 4294901760
    %2885 = vmatmul.f32.gmra.mxu0 %v2884
    %v2886 = vpop.f32.mrf.mxu0
    %v2887 = vadd.f32 %v2861, %v2886
    %2888 = vdwg.mxu0
    %v2889 = vmul.f32 %v1113, %v2510
    %v2890 = vmul.f32 %v1290, %v2511
    %v2891 = vmul.f32 %v1117, %v2510
    %v2892 = vmul.f32 %v1294, %v2511
    %v2893 = vadd.f32 %v2706, %v2889
    %v2894 = vadd.f32 %v2883, %v2890
    %v2895 = vadd.f32 %v2710, %v2891
    %v2896 = vadd.f32 %v2887, %v2892
    %2897 = vrot.lane.b32.xlu0 %v2510, 127
    %v2898 = vpop.permute.xlu0 %2897
    %2899 = vrot.lane.b32.xlu0 %v2511, 127
    %v2900 = vpop.permute.xlu0 %2899
    %vm2901 = vcmp.lt.s32.totalorder %v60, 127
    %v2902 = vsel %vm2901, %v2898, %v2900
    %v2903 = vsel %vm2901, %v2900, %v2898
    %v2904 = vsel %vm72, 1, 0
    %v2905 = vsel %vm73, 1, 0
    %vm2906 = vcmp.eq.s32.totalorder %v2904, 1
    %vm2907 = vcmp.eq.s32.totalorder %v2905, 1
    %v2908 = vsel %vm2906, 0.0, %v2902
    %v2909 = vsel %vm2907, 0.0, %v2903
    %v2910 = vmul.f32 %v1711, %v2908
    %v2911 = vmul.f32 %v1888, %v2909
    %v2912 = vmul.f32 %v1715, %v2908
    %v2913 = vmul.f32 %v1892, %v2909
    %v2914 = vadd.f32 %v2893, %v2910
    %v2915 = vadd.f32 %v2894, %v2911
    %v2916 = vadd.f32 %v2895, %v2912
    %v2917 = vadd.f32 %v2896, %v2913
    %v2918 = vmax.f32 %v2914, 0.0
    %v2919 = vmax.f32 %v2915, 0.0
    %v2920 = vmax.f32 %v2916, 0.0
    %v2921 = vmax.f32 %v2917, 0.0
    %v2922 = vld [vmem:[%s8] sm:$0xff]
    %v2923 = vld [vmem:[%s8 + $0x8] sm:$0xff]
    %v2924 = vld [vmem:[%s9] sm:$0xff]
    %v2925 = vld [vmem:[%s9 + $0x8] sm:$0xff]
    %2927 = vset.pattern.permute.xlu0 0
    %2928 = vperm.xlu0 %2927, %v2924
    %v2929 = vpop.permute.xlu0 %2928
    %2932 = vset.pattern.permute.xlu0 0
    %2933 = vperm.xlu0 %2932, %v2925
    %v2934 = vpop.permute.xlu0 %2933
    %vm2936 = vcmask 130048
    %v2938 = vsel %vm2936, %v2922, 0
    %v2941 = vsel %vm2936, %v2923, 0
    %2943 = vmatpush.msra.mxu0 0.0
    %2944 = vmatpush.msra.mxu0 0.0
    %2945 = vmatpush.msra.mxu0 0.0
    %2946 = vmatpush.msra.mxu0 0.0
    %2947 = vmatpush.msra.mxu0 0.0
    %2948 = vmatpush.msra.mxu0 0.0
    %2949 = vmatpush.msra.mxu0 0.0
    %2950 = vmatpush.msra.mxu0 0.0
    %2951 = vmatpush.msra.mxu0 0.0
    %2952 = vmatpush.msra.mxu0 0.0
    %2953 = vmatpush.msra.mxu0 0.0
    %2954 = vmatpush.msra.mxu0 0.0
    %2955 = vmatpush.msra.mxu0 0.0
    %2956 = vmatpush.msra.mxu0 0.0
    %v2957 = vand.u32 %v2920, 4294901760
    %2958 = vmatpush.msra.mxu0 %v2957
    %v2959 = vand.u32 %v2918, 4294901760
    %2960 = vmatpush.msra.mxu0 %v2959
    %v2961 = vand.u32 %v2938, 4294901760
    %v2962 = vsub.f32 %v2938, %v2961
    %v2963 = vand.u32 %v2962, 4294901760
    %v2964 = vsub.f32 %v2962, %v2963
    %v2965 = vand.u32 %v2964, 4294901760
    %2966 = vmatmul.f32.gmra.mxu0 %v2965
    %v2967 = vpop.f32.mrf.mxu0
    %v2968 = vadd.f32 %v2929, %v2967
    %v2969 = vand.u32 %v2941, 4294901760
    %v2970 = vsub.f32 %v2941, %v2969
    %v2971 = vand.u32 %v2970, 4294901760
    %v2972 = vsub.f32 %v2970, %v2971
    %v2973 = vand.u32 %v2972, 4294901760
    %2974 = vmatmul.f32.gmra.mxu0 %v2973
    %v2975 = vpop.f32.mrf.mxu0
    %v2976 = vadd.f32 %v2934, %v2975
    %2977 = vdwg.mxu0
    %2978 = vmatpush.msra.mxu0 0.0
    %2979 = vmatpush.msra.mxu0 0.0
    %2980 = vmatpush.msra.mxu0 0.0
    %2981 = vmatpush.msra.mxu0 0.0
    %2982 = vmatpush.msra.mxu0 0.0
    %2983 = vmatpush.msra.mxu0 0.0
    %2984 = vmatpush.msra.mxu0 0.0
    %2985 = vmatpush.msra.mxu0 0.0
    %2986 = vmatpush.msra.mxu0 0.0
    %2987 = vmatpush.msra.mxu0 0.0
    %2988 = vmatpush.msra.mxu0 0.0
    %2989 = vmatpush.msra.mxu0 0.0
    %2990 = vmatpush.msra.mxu0 0.0
    %2991 = vmatpush.msra.mxu0 0.0
    %v2992 = vand.u32 %v2920, 4294901760
    %v2993 = vsub.f32 %v2920, %v2992
    %v2994 = vand.u32 %v2993, 4294901760
    %v2995 = vsub.f32 %v2993, %v2994
    %v2996 = vand.u32 %v2995, 4294901760
    %2997 = vmatpush.msra.mxu0 %v2996
    %v2998 = vand.u32 %v2918, 4294901760
    %v2999 = vsub.f32 %v2918, %v2998
    %v3000 = vand.u32 %v2999, 4294901760
    %v3001 = vsub.f32 %v2999, %v3000
    %v3002 = vand.u32 %v3001, 4294901760
    %3003 = vmatpush.msra.mxu0 %v3002
    %v3004 = vand.u32 %v2938, 4294901760
    %3005 = vmatmul.f32.gmra.mxu0 %v3004
    %v3006 = vpop.f32.mrf.mxu0
    %v3007 = vadd.f32 %v2968, %v3006
    %v3008 = vand.u32 %v2941, 4294901760
    %3009 = vmatmul.f32.gmra.mxu0 %v3008
    %v3010 = vpop.f32.mrf.mxu0
    %v3011 = vadd.f32 %v2976, %v3010
    %3012 = vdwg.mxu0
    %3013 = vmatpush.msra.mxu0 0.0
    %3014 = vmatpush.msra.mxu0 0.0
    %3015 = vmatpush.msra.mxu0 0.0
    %3016 = vmatpush.msra.mxu0 0.0
    %3017 = vmatpush.msra.mxu0 0.0
    %3018 = vmatpush.msra.mxu0 0.0
    %3019 = vmatpush.msra.mxu0 0.0
    %3020 = vmatpush.msra.mxu0 0.0
    %3021 = vmatpush.msra.mxu0 0.0
    %3022 = vmatpush.msra.mxu0 0.0
    %3023 = vmatpush.msra.mxu0 0.0
    %3024 = vmatpush.msra.mxu0 0.0
    %3025 = vmatpush.msra.mxu0 0.0
    %3026 = vmatpush.msra.mxu0 0.0
    %v3027 = vand.u32 %v2920, 4294901760
    %v3028 = vsub.f32 %v2920, %v3027
    %3029 = vmatpush.msra.mxu0 %v3028
    %v3030 = vand.u32 %v2918, 4294901760
    %v3031 = vsub.f32 %v2918, %v3030
    %3032 = vmatpush.msra.mxu0 %v3031
    %v3033 = vand.u32 %v2938, 4294901760
    %v3034 = vsub.f32 %v2938, %v3033
    %3035 = vmatmul.f32.gmra.mxu0 %v3034
    %v3036 = vpop.f32.mrf.mxu0
    %v3037 = vadd.f32 %v3007, %v3036
    %v3038 = vand.u32 %v2941, 4294901760
    %v3039 = vsub.f32 %v2941, %v3038
    %3040 = vmatmul.f32.gmra.mxu0 %v3039
    %v3041 = vpop.f32.mrf.mxu0
    %v3042 = vadd.f32 %v3011, %v3041
    %3043 = vdwg.mxu0
    %3044 = vmatpush.msra.mxu0 0.0
    %3045 = vmatpush.msra.mxu0 0.0
    %3046 = vmatpush.msra.mxu0 0.0
    %3047 = vmatpush.msra.mxu0 0.0
    %3048 = vmatpush.msra.mxu0 0.0
    %3049 = vmatpush.msra.mxu0 0.0
    %3050 = vmatpush.msra.mxu0 0.0
    %3051 = vmatpush.msra.mxu0 0.0
    %3052 = vmatpush.msra.mxu0 0.0
    %3053 = vmatpush.msra.mxu0 0.0
    %3054 = vmatpush.msra.mxu0 0.0
    %3055 = vmatpush.msra.mxu0 0.0
    %3056 = vmatpush.msra.mxu0 0.0
    %3057 = vmatpush.msra.mxu0 0.0
    %v3058 = vand.u32 %v2920, 4294901760
    %3059 = vmatpush.msra.mxu0 %v3058
    %v3060 = vand.u32 %v2918, 4294901760
    %3061 = vmatpush.msra.mxu0 %v3060
    %v3062 = vand.u32 %v2938, 4294901760
    %v3063 = vsub.f32 %v2938, %v3062
    %v3064 = vand.u32 %v3063, 4294901760
    %3065 = vmatmul.f32.gmra.mxu0 %v3064
    %v3066 = vpop.f32.mrf.mxu0
    %v3067 = vadd.f32 %v3037, %v3066
    %v3068 = vand.u32 %v2941, 4294901760
    %v3069 = vsub.f32 %v2941, %v3068
    %v3070 = vand.u32 %v3069, 4294901760
    %3071 = vmatmul.f32.gmra.mxu0 %v3070
    %v3072 = vpop.f32.mrf.mxu0
    %v3073 = vadd.f32 %v3042, %v3072
    %3074 = vdwg.mxu0
    %3075 = vmatpush.msra.mxu0 0.0
    %3076 = vmatpush.msra.mxu0 0.0
    %3077 = vmatpush.msra.mxu0 0.0
    %3078 = vmatpush.msra.mxu0 0.0
    %3079 = vmatpush.msra.mxu0 0.0
    %3080 = vmatpush.msra.mxu0 0.0
    %3081 = vmatpush.msra.mxu0 0.0
    %3082 = vmatpush.msra.mxu0 0.0
    %3083 = vmatpush.msra.mxu0 0.0
    %3084 = vmatpush.msra.mxu0 0.0
    %3085 = vmatpush.msra.mxu0 0.0
    %3086 = vmatpush.msra.mxu0 0.0
    %3087 = vmatpush.msra.mxu0 0.0
    %3088 = vmatpush.msra.mxu0 0.0
    %v3089 = vand.u32 %v2920, 4294901760
    %v3090 = vsub.f32 %v2920, %v3089
    %v3091 = vand.u32 %v3090, 4294901760
    %3092 = vmatpush.msra.mxu0 %v3091
    %v3093 = vand.u32 %v2918, 4294901760
    %v3094 = vsub.f32 %v2918, %v3093
    %v3095 = vand.u32 %v3094, 4294901760
    %3096 = vmatpush.msra.mxu0 %v3095
    %v3097 = vand.u32 %v2938, 4294901760
    %3098 = vmatmul.f32.gmra.mxu0 %v3097
    %v3099 = vpop.f32.mrf.mxu0
    %v3100 = vadd.f32 %v3067, %v3099
    %v3101 = vand.u32 %v2941, 4294901760
    %3102 = vmatmul.f32.gmra.mxu0 %v3101
    %v3103 = vpop.f32.mrf.mxu0
    %v3104 = vadd.f32 %v3073, %v3103
    %3105 = vdwg.mxu0
    %3106 = vmatpush.msra.mxu0 0.0
    %3107 = vmatpush.msra.mxu0 0.0
    %3108 = vmatpush.msra.mxu0 0.0
    %3109 = vmatpush.msra.mxu0 0.0
    %3110 = vmatpush.msra.mxu0 0.0
    %3111 = vmatpush.msra.mxu0 0.0
    %3112 = vmatpush.msra.mxu0 0.0
    %3113 = vmatpush.msra.mxu0 0.0
    %3114 = vmatpush.msra.mxu0 0.0
    %3115 = vmatpush.msra.mxu0 0.0
    %3116 = vmatpush.msra.mxu0 0.0
    %3117 = vmatpush.msra.mxu0 0.0
    %3118 = vmatpush.msra.mxu0 0.0
    %3119 = vmatpush.msra.mxu0 0.0
    %v3120 = vand.u32 %v2920, 4294901760
    %3121 = vmatpush.msra.mxu0 %v3120
    %v3122 = vand.u32 %v2918, 4294901760
    %3123 = vmatpush.msra.mxu0 %v3122
    %v3124 = vand.u32 %v2938, 4294901760
    %3125 = vmatmul.f32.gmra.mxu0 %v3124
    %v3126 = vpop.f32.mrf.mxu0
    %v3127 = vadd.f32 %v3100, %v3126
    %v3128 = vand.u32 %v2941, 4294901760
    %3129 = vmatmul.f32.gmra.mxu0 %v3128
    %v3130 = vpop.f32.mrf.mxu0
    %v3131 = vadd.f32 %v3104, %v3130
    %3132 = vdwg.mxu0
    %3133 = vmatpush.msra.mxu0 0.0
    %3134 = vmatpush.msra.mxu0 0.0
    %3135 = vmatpush.msra.mxu0 0.0
    %3136 = vmatpush.msra.mxu0 0.0
    %3137 = vmatpush.msra.mxu0 0.0
    %3138 = vmatpush.msra.mxu0 0.0
    %3139 = vmatpush.msra.mxu0 0.0
    %3140 = vmatpush.msra.mxu0 0.0
    %3141 = vmatpush.msra.mxu0 0.0
    %3142 = vmatpush.msra.mxu0 0.0
    %3143 = vmatpush.msra.mxu0 0.0
    %3144 = vmatpush.msra.mxu0 0.0
    %3145 = vmatpush.msra.mxu0 0.0
    %3146 = vmatpush.msra.mxu0 0.0
    %v3147 = vand.u32 %v2921, 4294901760
    %3148 = vmatpush.msra.mxu0 %v3147
    %v3149 = vand.u32 %v2919, 4294901760
    %3150 = vmatpush.msra.mxu0 %v3149
    %v3151 = vand.u32 %v2938, 4294901760
    %v3152 = vsub.f32 %v2938, %v3151
    %v3153 = vand.u32 %v3152, 4294901760
    %v3154 = vsub.f32 %v3152, %v3153
    %v3155 = vand.u32 %v3154, 4294901760
    %3156 = vmatmul.f32.gmra.mxu0 %v3155
    %v3157 = vpop.f32.mrf.mxu0
    %v3158 = vadd.f32 %v2929, %v3157
    %v3159 = vand.u32 %v2941, 4294901760
    %v3160 = vsub.f32 %v2941, %v3159
    %v3161 = vand.u32 %v3160, 4294901760
    %v3162 = vsub.f32 %v3160, %v3161
    %v3163 = vand.u32 %v3162, 4294901760
    %3164 = vmatmul.f32.gmra.mxu0 %v3163
    %v3165 = vpop.f32.mrf.mxu0
    %v3166 = vadd.f32 %v2934, %v3165
    %3167 = vdwg.mxu0
    %3168 = vmatpush.msra.mxu0 0.0
    %3169 = vmatpush.msra.mxu0 0.0
    %3170 = vmatpush.msra.mxu0 0.0
    %3171 = vmatpush.msra.mxu0 0.0
    %3172 = vmatpush.msra.mxu0 0.0
    %3173 = vmatpush.msra.mxu0 0.0
    %3174 = vmatpush.msra.mxu0 0.0
    %3175 = vmatpush.msra.mxu0 0.0
    %3176 = vmatpush.msra.mxu0 0.0
    %3177 = vmatpush.msra.mxu0 0.0
    %3178 = vmatpush.msra.mxu0 0.0
    %3179 = vmatpush.msra.mxu0 0.0
    %3180 = vmatpush.msra.mxu0 0.0
    %3181 = vmatpush.msra.mxu0 0.0
    %v3182 = vand.u32 %v2921, 4294901760
    %v3183 = vsub.f32 %v2921, %v3182
    %v3184 = vand.u32 %v3183, 4294901760
    %v3185 = vsub.f32 %v3183, %v3184
    %v3186 = vand.u32 %v3185, 4294901760
    %3187 = vmatpush.msra.mxu0 %v3186
    %v3188 = vand.u32 %v2919, 4294901760
    %v3189 = vsub.f32 %v2919, %v3188
    %v3190 = vand.u32 %v3189, 4294901760
    %v3191 = vsub.f32 %v3189, %v3190
    %v3192 = vand.u32 %v3191, 4294901760
    %3193 = vmatpush.msra.mxu0 %v3192
    %v3194 = vand.u32 %v2938, 4294901760
    %3195 = vmatmul.f32.gmra.mxu0 %v3194
    %v3196 = vpop.f32.mrf.mxu0
    %v3197 = vadd.f32 %v3158, %v3196
    %v3198 = vand.u32 %v2941, 4294901760
    %3199 = vmatmul.f32.gmra.mxu0 %v3198
    %v3200 = vpop.f32.mrf.mxu0
    %v3201 = vadd.f32 %v3166, %v3200
    %3202 = vdwg.mxu0
    %3203 = vmatpush.msra.mxu0 0.0
    %3204 = vmatpush.msra.mxu0 0.0
    %3205 = vmatpush.msra.mxu0 0.0
    %3206 = vmatpush.msra.mxu0 0.0
    %3207 = vmatpush.msra.mxu0 0.0
    %3208 = vmatpush.msra.mxu0 0.0
    %3209 = vmatpush.msra.mxu0 0.0
    %3210 = vmatpush.msra.mxu0 0.0
    %3211 = vmatpush.msra.mxu0 0.0
    %3212 = vmatpush.msra.mxu0 0.0
    %3213 = vmatpush.msra.mxu0 0.0
    %3214 = vmatpush.msra.mxu0 0.0
    %3215 = vmatpush.msra.mxu0 0.0
    %3216 = vmatpush.msra.mxu0 0.0
    %v3217 = vand.u32 %v2921, 4294901760
    %v3218 = vsub.f32 %v2921, %v3217
    %3219 = vmatpush.msra.mxu0 %v3218
    %v3220 = vand.u32 %v2919, 4294901760
    %v3221 = vsub.f32 %v2919, %v3220
    %3222 = vmatpush.msra.mxu0 %v3221
    %v3223 = vand.u32 %v2938, 4294901760
    %v3224 = vsub.f32 %v2938, %v3223
    %3225 = vmatmul.f32.gmra.mxu0 %v3224
    %v3226 = vpop.f32.mrf.mxu0
    %v3227 = vadd.f32 %v3197, %v3226
    %v3228 = vand.u32 %v2941, 4294901760
    %v3229 = vsub.f32 %v2941, %v3228
    %3230 = vmatmul.f32.gmra.mxu0 %v3229
    %v3231 = vpop.f32.mrf.mxu0
    %v3232 = vadd.f32 %v3201, %v3231
    %3233 = vdwg.mxu0
    %3234 = vmatpush.msra.mxu0 0.0
    %3235 = vmatpush.msra.mxu0 0.0
    %3236 = vmatpush.msra.mxu0 0.0
    %3237 = vmatpush.msra.mxu0 0.0
    %3238 = vmatpush.msra.mxu0 0.0
    %3239 = vmatpush.msra.mxu0 0.0
    %3240 = vmatpush.msra.mxu0 0.0
    %3241 = vmatpush.msra.mxu0 0.0
    %3242 = vmatpush.msra.mxu0 0.0
    %3243 = vmatpush.msra.mxu0 0.0
    %3244 = vmatpush.msra.mxu0 0.0
    %3245 = vmatpush.msra.mxu0 0.0
    %3246 = vmatpush.msra.mxu0 0.0
    %3247 = vmatpush.msra.mxu0 0.0
    %v3248 = vand.u32 %v2921, 4294901760
    %3249 = vmatpush.msra.mxu0 %v3248
    %v3250 = vand.u32 %v2919, 4294901760
    %3251 = vmatpush.msra.mxu0 %v3250
    %v3252 = vand.u32 %v2938, 4294901760
    %v3253 = vsub.f32 %v2938, %v3252
    %v3254 = vand.u32 %v3253, 4294901760
    %3255 = vmatmul.f32.gmra.mxu0 %v3254
    %v3256 = vpop.f32.mrf.mxu0
    %v3257 = vadd.f32 %v3227, %v3256
    %v3258 = vand.u32 %v2941, 4294901760
    %v3259 = vsub.f32 %v2941, %v3258
    %v3260 = vand.u32 %v3259, 4294901760
    %3261 = vmatmul.f32.gmra.mxu0 %v3260
    %v3262 = vpop.f32.mrf.mxu0
    %v3263 = vadd.f32 %v3232, %v3262
    %3264 = vdwg.mxu0
    %3265 = vmatpush.msra.mxu0 0.0
    %3266 = vmatpush.msra.mxu0 0.0
    %3267 = vmatpush.msra.mxu0 0.0
    %3268 = vmatpush.msra.mxu0 0.0
    %3269 = vmatpush.msra.mxu0 0.0
    %3270 = vmatpush.msra.mxu0 0.0
    %3271 = vmatpush.msra.mxu0 0.0
    %3272 = vmatpush.msra.mxu0 0.0
    %3273 = vmatpush.msra.mxu0 0.0
    %3274 = vmatpush.msra.mxu0 0.0
    %3275 = vmatpush.msra.mxu0 0.0
    %3276 = vmatpush.msra.mxu0 0.0
    %3277 = vmatpush.msra.mxu0 0.0
    %3278 = vmatpush.msra.mxu0 0.0
    %v3279 = vand.u32 %v2921, 4294901760
    %v3280 = vsub.f32 %v2921, %v3279
    %v3281 = vand.u32 %v3280, 4294901760
    %3282 = vmatpush.msra.mxu0 %v3281
    %v3283 = vand.u32 %v2919, 4294901760
    %v3284 = vsub.f32 %v2919, %v3283
    %v3285 = vand.u32 %v3284, 4294901760
    %3286 = vmatpush.msra.mxu0 %v3285
    %v3287 = vand.u32 %v2938, 4294901760
    %3288 = vmatmul.f32.gmra.mxu0 %v3287
    %v3289 = vpop.f32.mrf.mxu0
    %v3290 = vadd.f32 %v3257, %v3289
    %v3291 = vand.u32 %v2941, 4294901760
    %3292 = vmatmul.f32.gmra.mxu0 %v3291
    %v3293 = vpop.f32.mrf.mxu0
    %v3294 = vadd.f32 %v3263, %v3293
    %3295 = vdwg.mxu0
    %3296 = vmatpush.msra.mxu0 0.0
    %3297 = vmatpush.msra.mxu0 0.0
    %3298 = vmatpush.msra.mxu0 0.0
    %3299 = vmatpush.msra.mxu0 0.0
    %3300 = vmatpush.msra.mxu0 0.0
    %3301 = vmatpush.msra.mxu0 0.0
    %3302 = vmatpush.msra.mxu0 0.0
    %3303 = vmatpush.msra.mxu0 0.0
    %3304 = vmatpush.msra.mxu0 0.0
    %3305 = vmatpush.msra.mxu0 0.0
    %3306 = vmatpush.msra.mxu0 0.0
    %3307 = vmatpush.msra.mxu0 0.0
    %3308 = vmatpush.msra.mxu0 0.0
    %3309 = vmatpush.msra.mxu0 0.0
    %v3310 = vand.u32 %v2921, 4294901760
    %3311 = vmatpush.msra.mxu0 %v3310
    %v3312 = vand.u32 %v2919, 4294901760
    %3313 = vmatpush.msra.mxu0 %v3312
    %v3314 = vand.u32 %v2938, 4294901760
    %3315 = vmatmul.f32.gmra.mxu0 %v3314
    %v3316 = vpop.f32.mrf.mxu0
    %v3317 = vadd.f32 %v3290, %v3316
    %v3318 = vand.u32 %v2941, 4294901760
    %3319 = vmatmul.f32.gmra.mxu0 %v3318
    %v3320 = vpop.f32.mrf.mxu0
    %v3321 = vadd.f32 %v3294, %v3320
    %3322 = vdwg.mxu0
    %v3323 = vmax.f32 %v3127, 0.0
    %v3324 = vmax.f32 %v3317, 0.0
    %v3325 = vmax.f32 %v3131, 0.0
    %v3326 = vmax.f32 %v3321, 0.0
    %v3327 = vld [vmem:[%s10] sm:$0xff]
    %v3329 = vsel %vm2936, %v3327, 0
    %3331 = vmatpush.msra.mxu0 0.0
    %3332 = vmatpush.msra.mxu0 0.0
    %3333 = vmatpush.msra.mxu0 0.0
    %3334 = vmatpush.msra.mxu0 0.0
    %3335 = vmatpush.msra.mxu0 0.0
    %3336 = vmatpush.msra.mxu0 0.0
    %3337 = vmatpush.msra.mxu0 0.0
    %3338 = vmatpush.msra.mxu0 0.0
    %3339 = vmatpush.msra.mxu0 0.0
    %3340 = vmatpush.msra.mxu0 0.0
    %3341 = vmatpush.msra.mxu0 0.0
    %3342 = vmatpush.msra.mxu0 0.0
    %3343 = vmatpush.msra.mxu0 0.0
    %3344 = vmatpush.msra.mxu0 0.0
    %v3345 = vand.u32 %v3325, 4294901760
    %3346 = vmatpush.msra.mxu0 %v3345
    %v3347 = vand.u32 %v3323, 4294901760
    %3348 = vmatpush.msra.mxu0 %v3347
    %v3349 = vand.u32 %v3329, 4294901760
    %v3350 = vsub.f32 %v3329, %v3349
    %v3351 = vand.u32 %v3350, 4294901760
    %v3352 = vsub.f32 %v3350, %v3351
    %v3353 = vand.u32 %v3352, 4294901760
    %3354 = vmatmul.f32.gmra.mxu0 %v3353
    %v3355 = vpop.f32.mrf.mxu0
    %v3356 = vadd.f32 0.0, %v3355
    %3357 = vdwg.mxu0
    %3358 = vmatpush.msra.mxu0 0.0
    %3359 = vmatpush.msra.mxu0 0.0
    %3360 = vmatpush.msra.mxu0 0.0
    %3361 = vmatpush.msra.mxu0 0.0
    %3362 = vmatpush.msra.mxu0 0.0
    %3363 = vmatpush.msra.mxu0 0.0
    %3364 = vmatpush.msra.mxu0 0.0
    %3365 = vmatpush.msra.mxu0 0.0
    %3366 = vmatpush.msra.mxu0 0.0
    %3367 = vmatpush.msra.mxu0 0.0
    %3368 = vmatpush.msra.mxu0 0.0
    %3369 = vmatpush.msra.mxu0 0.0
    %3370 = vmatpush.msra.mxu0 0.0
    %3371 = vmatpush.msra.mxu0 0.0
    %v3372 = vand.u32 %v3325, 4294901760
    %v3373 = vsub.f32 %v3325, %v3372
    %v3374 = vand.u32 %v3373, 4294901760
    %v3375 = vsub.f32 %v3373, %v3374
    %v3376 = vand.u32 %v3375, 4294901760
    %3377 = vmatpush.msra.mxu0 %v3376
    %v3378 = vand.u32 %v3323, 4294901760
    %v3379 = vsub.f32 %v3323, %v3378
    %v3380 = vand.u32 %v3379, 4294901760
    %v3381 = vsub.f32 %v3379, %v3380
    %v3382 = vand.u32 %v3381, 4294901760
    %3383 = vmatpush.msra.mxu0 %v3382
    %v3384 = vand.u32 %v3329, 4294901760
    %3385 = vmatmul.f32.gmra.mxu0 %v3384
    %v3386 = vpop.f32.mrf.mxu0
    %v3387 = vadd.f32 %v3356, %v3386
    %3388 = vdwg.mxu0
    %3389 = vmatpush.msra.mxu0 0.0
    %3390 = vmatpush.msra.mxu0 0.0
    %3391 = vmatpush.msra.mxu0 0.0
    %3392 = vmatpush.msra.mxu0 0.0
    %3393 = vmatpush.msra.mxu0 0.0
    %3394 = vmatpush.msra.mxu0 0.0
    %3395 = vmatpush.msra.mxu0 0.0
    %3396 = vmatpush.msra.mxu0 0.0
    %3397 = vmatpush.msra.mxu0 0.0
    %3398 = vmatpush.msra.mxu0 0.0
    %3399 = vmatpush.msra.mxu0 0.0
    %3400 = vmatpush.msra.mxu0 0.0
    %3401 = vmatpush.msra.mxu0 0.0
    %3402 = vmatpush.msra.mxu0 0.0
    %v3403 = vand.u32 %v3325, 4294901760
    %v3404 = vsub.f32 %v3325, %v3403
    %3405 = vmatpush.msra.mxu0 %v3404
    %v3406 = vand.u32 %v3323, 4294901760
    %v3407 = vsub.f32 %v3323, %v3406
    %3408 = vmatpush.msra.mxu0 %v3407
    %v3409 = vand.u32 %v3329, 4294901760
    %v3410 = vsub.f32 %v3329, %v3409
    %3411 = vmatmul.f32.gmra.mxu0 %v3410
    %v3412 = vpop.f32.mrf.mxu0
    %v3413 = vadd.f32 %v3387, %v3412
    %3414 = vdwg.mxu0
    %3415 = vmatpush.msra.mxu0 0.0
    %3416 = vmatpush.msra.mxu0 0.0
    %3417 = vmatpush.msra.mxu0 0.0
    %3418 = vmatpush.msra.mxu0 0.0
    %3419 = vmatpush.msra.mxu0 0.0
    %3420 = vmatpush.msra.mxu0 0.0
    %3421 = vmatpush.msra.mxu0 0.0
    %3422 = vmatpush.msra.mxu0 0.0
    %3423 = vmatpush.msra.mxu0 0.0
    %3424 = vmatpush.msra.mxu0 0.0
    %3425 = vmatpush.msra.mxu0 0.0
    %3426 = vmatpush.msra.mxu0 0.0
    %3427 = vmatpush.msra.mxu0 0.0
    %3428 = vmatpush.msra.mxu0 0.0
    %v3429 = vand.u32 %v3325, 4294901760
    %3430 = vmatpush.msra.mxu0 %v3429
    %v3431 = vand.u32 %v3323, 4294901760
    %3432 = vmatpush.msra.mxu0 %v3431
    %v3433 = vand.u32 %v3329, 4294901760
    %v3434 = vsub.f32 %v3329, %v3433
    %v3435 = vand.u32 %v3434, 4294901760
    %3436 = vmatmul.f32.gmra.mxu0 %v3435
    %v3437 = vpop.f32.mrf.mxu0
    %v3438 = vadd.f32 %v3413, %v3437
    %3439 = vdwg.mxu0
    %3440 = vmatpush.msra.mxu0 0.0
    %3441 = vmatpush.msra.mxu0 0.0
    %3442 = vmatpush.msra.mxu0 0.0
    %3443 = vmatpush.msra.mxu0 0.0
    %3444 = vmatpush.msra.mxu0 0.0
    %3445 = vmatpush.msra.mxu0 0.0
    %3446 = vmatpush.msra.mxu0 0.0
    %3447 = vmatpush.msra.mxu0 0.0
    %3448 = vmatpush.msra.mxu0 0.0
    %3449 = vmatpush.msra.mxu0 0.0
    %3450 = vmatpush.msra.mxu0 0.0
    %3451 = vmatpush.msra.mxu0 0.0
    %3452 = vmatpush.msra.mxu0 0.0
    %3453 = vmatpush.msra.mxu0 0.0
    %v3454 = vand.u32 %v3325, 4294901760
    %v3455 = vsub.f32 %v3325, %v3454
    %v3456 = vand.u32 %v3455, 4294901760
    %3457 = vmatpush.msra.mxu0 %v3456
    %v3458 = vand.u32 %v3323, 4294901760
    %v3459 = vsub.f32 %v3323, %v3458
    %v3460 = vand.u32 %v3459, 4294901760
    %3461 = vmatpush.msra.mxu0 %v3460
    %v3462 = vand.u32 %v3329, 4294901760
    %3463 = vmatmul.f32.gmra.mxu0 %v3462
    %v3464 = vpop.f32.mrf.mxu0
    %v3465 = vadd.f32 %v3438, %v3464
    %3466 = vdwg.mxu0
    %3467 = vmatpush.msra.mxu0 0.0
    %3468 = vmatpush.msra.mxu0 0.0
    %3469 = vmatpush.msra.mxu0 0.0
    %3470 = vmatpush.msra.mxu0 0.0
    %3471 = vmatpush.msra.mxu0 0.0
    %3472 = vmatpush.msra.mxu0 0.0
    %3473 = vmatpush.msra.mxu0 0.0
    %3474 = vmatpush.msra.mxu0 0.0
    %3475 = vmatpush.msra.mxu0 0.0
    %3476 = vmatpush.msra.mxu0 0.0
    %3477 = vmatpush.msra.mxu0 0.0
    %3478 = vmatpush.msra.mxu0 0.0
    %3479 = vmatpush.msra.mxu0 0.0
    %3480 = vmatpush.msra.mxu0 0.0
    %v3481 = vand.u32 %v3325, 4294901760
    %3482 = vmatpush.msra.mxu0 %v3481
    %v3483 = vand.u32 %v3323, 4294901760
    %3484 = vmatpush.msra.mxu0 %v3483
    %v3485 = vand.u32 %v3329, 4294901760
    %3486 = vmatmul.f32.gmra.mxu0 %v3485
    %v3487 = vpop.f32.mrf.mxu0
    %v3488 = vadd.f32 %v3465, %v3487
    %3489 = vdwg.mxu0
    %3490 = vmatpush.msra.mxu0 0.0
    %3491 = vmatpush.msra.mxu0 0.0
    %3492 = vmatpush.msra.mxu0 0.0
    %3493 = vmatpush.msra.mxu0 0.0
    %3494 = vmatpush.msra.mxu0 0.0
    %3495 = vmatpush.msra.mxu0 0.0
    %3496 = vmatpush.msra.mxu0 0.0
    %3497 = vmatpush.msra.mxu0 0.0
    %3498 = vmatpush.msra.mxu0 0.0
    %3499 = vmatpush.msra.mxu0 0.0
    %3500 = vmatpush.msra.mxu0 0.0
    %3501 = vmatpush.msra.mxu0 0.0
    %3502 = vmatpush.msra.mxu0 0.0
    %3503 = vmatpush.msra.mxu0 0.0
    %v3504 = vand.u32 %v3326, 4294901760
    %3505 = vmatpush.msra.mxu0 %v3504
    %v3506 = vand.u32 %v3324, 4294901760
    %3507 = vmatpush.msra.mxu0 %v3506
    %v3508 = vand.u32 %v3329, 4294901760
    %v3509 = vsub.f32 %v3329, %v3508
    %v3510 = vand.u32 %v3509, 4294901760
    %v3511 = vsub.f32 %v3509, %v3510
    %v3512 = vand.u32 %v3511, 4294901760
    %3513 = vmatmul.f32.gmra.mxu0 %v3512
    %v3514 = vpop.f32.mrf.mxu0
    %v3515 = vadd.f32 0.0, %v3514
    %3516 = vdwg.mxu0
    %3517 = vmatpush.msra.mxu0 0.0
    %3518 = vmatpush.msra.mxu0 0.0
    %3519 = vmatpush.msra.mxu0 0.0
    %3520 = vmatpush.msra.mxu0 0.0
    %3521 = vmatpush.msra.mxu0 0.0
    %3522 = vmatpush.msra.mxu0 0.0
    %3523 = vmatpush.msra.mxu0 0.0
    %3524 = vmatpush.msra.mxu0 0.0
    %3525 = vmatpush.msra.mxu0 0.0
    %3526 = vmatpush.msra.mxu0 0.0
    %3527 = vmatpush.msra.mxu0 0.0
    %3528 = vmatpush.msra.mxu0 0.0
    %3529 = vmatpush.msra.mxu0 0.0
    %3530 = vmatpush.msra.mxu0 0.0
    %v3531 = vand.u32 %v3326, 4294901760
    %v3532 = vsub.f32 %v3326, %v3531
    %v3533 = vand.u32 %v3532, 4294901760
    %v3534 = vsub.f32 %v3532, %v3533
    %v3535 = vand.u32 %v3534, 4294901760
    %3536 = vmatpush.msra.mxu0 %v3535
    %v3537 = vand.u32 %v3324, 4294901760
    %v3538 = vsub.f32 %v3324, %v3537
    %v3539 = vand.u32 %v3538, 4294901760
    %v3540 = vsub.f32 %v3538, %v3539
    %v3541 = vand.u32 %v3540, 4294901760
    %3542 = vmatpush.msra.mxu0 %v3541
    %v3543 = vand.u32 %v3329, 4294901760
    %3544 = vmatmul.f32.gmra.mxu0 %v3543
    %v3545 = vpop.f32.mrf.mxu0
    %v3546 = vadd.f32 %v3515, %v3545
    %3547 = vdwg.mxu0
    %3548 = vmatpush.msra.mxu0 0.0
    %3549 = vmatpush.msra.mxu0 0.0
    %3550 = vmatpush.msra.mxu0 0.0
    %3551 = vmatpush.msra.mxu0 0.0
    %3552 = vmatpush.msra.mxu0 0.0
    %3553 = vmatpush.msra.mxu0 0.0
    %3554 = vmatpush.msra.mxu0 0.0
    %3555 = vmatpush.msra.mxu0 0.0
    %3556 = vmatpush.msra.mxu0 0.0
    %3557 = vmatpush.msra.mxu0 0.0
    %3558 = vmatpush.msra.mxu0 0.0
    %3559 = vmatpush.msra.mxu0 0.0
    %3560 = vmatpush.msra.mxu0 0.0
    %3561 = vmatpush.msra.mxu0 0.0
    %v3562 = vand.u32 %v3326, 4294901760
    %v3563 = vsub.f32 %v3326, %v3562
    %3564 = vmatpush.msra.mxu0 %v3563
    %v3565 = vand.u32 %v3324, 4294901760
    %v3566 = vsub.f32 %v3324, %v3565
    %3567 = vmatpush.msra.mxu0 %v3566
    %v3568 = vand.u32 %v3329, 4294901760
    %v3569 = vsub.f32 %v3329, %v3568
    %3570 = vmatmul.f32.gmra.mxu0 %v3569
    %v3571 = vpop.f32.mrf.mxu0
    %v3572 = vadd.f32 %v3546, %v3571
    %3573 = vdwg.mxu0
    %3574 = vmatpush.msra.mxu0 0.0
    %3575 = vmatpush.msra.mxu0 0.0
    %3576 = vmatpush.msra.mxu0 0.0
    %3577 = vmatpush.msra.mxu0 0.0
    %3578 = vmatpush.msra.mxu0 0.0
    %3579 = vmatpush.msra.mxu0 0.0
    %3580 = vmatpush.msra.mxu0 0.0
    %3581 = vmatpush.msra.mxu0 0.0
    %3582 = vmatpush.msra.mxu0 0.0
    %3583 = vmatpush.msra.mxu0 0.0
    %3584 = vmatpush.msra.mxu0 0.0
    %3585 = vmatpush.msra.mxu0 0.0
    %3586 = vmatpush.msra.mxu0 0.0
    %3587 = vmatpush.msra.mxu0 0.0
    %v3588 = vand.u32 %v3326, 4294901760
    %3589 = vmatpush.msra.mxu0 %v3588
    %v3590 = vand.u32 %v3324, 4294901760
    %3591 = vmatpush.msra.mxu0 %v3590
    %v3592 = vand.u32 %v3329, 4294901760
    %v3593 = vsub.f32 %v3329, %v3592
    %v3594 = vand.u32 %v3593, 4294901760
    %3595 = vmatmul.f32.gmra.mxu0 %v3594
    %v3596 = vpop.f32.mrf.mxu0
    %v3597 = vadd.f32 %v3572, %v3596
    %3598 = vdwg.mxu0
    %3599 = vmatpush.msra.mxu0 0.0
    %3600 = vmatpush.msra.mxu0 0.0
    %3601 = vmatpush.msra.mxu0 0.0
    %3602 = vmatpush.msra.mxu0 0.0
    %3603 = vmatpush.msra.mxu0 0.0
    %3604 = vmatpush.msra.mxu0 0.0
    %3605 = vmatpush.msra.mxu0 0.0
    %3606 = vmatpush.msra.mxu0 0.0
    %3607 = vmatpush.msra.mxu0 0.0
    %3608 = vmatpush.msra.mxu0 0.0
    %3609 = vmatpush.msra.mxu0 0.0
    %3610 = vmatpush.msra.mxu0 0.0
    %3611 = vmatpush.msra.mxu0 0.0
    %3612 = vmatpush.msra.mxu0 0.0
    %v3613 = vand.u32 %v3326, 4294901760
    %v3614 = vsub.f32 %v3326, %v3613
    %v3615 = vand.u32 %v3614, 4294901760
    %3616 = vmatpush.msra.mxu0 %v3615
    %v3617 = vand.u32 %v3324, 4294901760
    %v3618 = vsub.f32 %v3324, %v3617
    %v3619 = vand.u32 %v3618, 4294901760
    %3620 = vmatpush.msra.mxu0 %v3619
    %v3621 = vand.u32 %v3329, 4294901760
    %3622 = vmatmul.f32.gmra.mxu0 %v3621
    %v3623 = vpop.f32.mrf.mxu0
    %v3624 = vadd.f32 %v3597, %v3623
    %3625 = vdwg.mxu0
    %3626 = vmatpush.msra.mxu0 0.0
    %3627 = vmatpush.msra.mxu0 0.0
    %3628 = vmatpush.msra.mxu0 0.0
    %3629 = vmatpush.msra.mxu0 0.0
    %3630 = vmatpush.msra.mxu0 0.0
    %3631 = vmatpush.msra.mxu0 0.0
    %3632 = vmatpush.msra.mxu0 0.0
    %3633 = vmatpush.msra.mxu0 0.0
    %3634 = vmatpush.msra.mxu0 0.0
    %3635 = vmatpush.msra.mxu0 0.0
    %3636 = vmatpush.msra.mxu0 0.0
    %3637 = vmatpush.msra.mxu0 0.0
    %3638 = vmatpush.msra.mxu0 0.0
    %3639 = vmatpush.msra.mxu0 0.0
    %v3640 = vand.u32 %v3326, 4294901760
    %3641 = vmatpush.msra.mxu0 %v3640
    %v3642 = vand.u32 %v3324, 4294901760
    %3643 = vmatpush.msra.mxu0 %v3642
    %v3644 = vand.u32 %v3329, 4294901760
    %3645 = vmatmul.f32.gmra.mxu0 %v3644
    %v3646 = vpop.f32.mrf.mxu0
    %v3647 = vadd.f32 %v3624, %v3646
    %3648 = vdwg.mxu0
    %s3649 = scalar_lea.vmem %s10, 8
    %v3650 = vld [vmem:[%s3649] sm:$0xff]
    %v3652 = vsel %vm2936, %v3650, 0
    %3654 = vmatpush.msra.mxu0 0.0
    %3655 = vmatpush.msra.mxu0 0.0
    %3656 = vmatpush.msra.mxu0 0.0
    %3657 = vmatpush.msra.mxu0 0.0
    %3658 = vmatpush.msra.mxu0 0.0
    %3659 = vmatpush.msra.mxu0 0.0
    %3660 = vmatpush.msra.mxu0 0.0
    %3661 = vmatpush.msra.mxu0 0.0
    %3662 = vmatpush.msra.mxu0 0.0
    %3663 = vmatpush.msra.mxu0 0.0
    %3664 = vmatpush.msra.mxu0 0.0
    %3665 = vmatpush.msra.mxu0 0.0
    %3666 = vmatpush.msra.mxu0 0.0
    %3667 = vmatpush.msra.mxu0 0.0
    %v3668 = vand.u32 %v3325, 4294901760
    %3669 = vmatpush.msra.mxu0 %v3668
    %v3670 = vand.u32 %v3323, 4294901760
    %3671 = vmatpush.msra.mxu0 %v3670
    %v3672 = vand.u32 %v3652, 4294901760
    %v3673 = vsub.f32 %v3652, %v3672
    %v3674 = vand.u32 %v3673, 4294901760
    %v3675 = vsub.f32 %v3673, %v3674
    %v3676 = vand.u32 %v3675, 4294901760
    %3677 = vmatmul.f32.gmra.mxu0 %v3676
    %v3678 = vpop.f32.mrf.mxu0
    %v3679 = vadd.f32 0.0, %v3678
    %3680 = vdwg.mxu0
    %3681 = vmatpush.msra.mxu0 0.0
    %3682 = vmatpush.msra.mxu0 0.0
    %3683 = vmatpush.msra.mxu0 0.0
    %3684 = vmatpush.msra.mxu0 0.0
    %3685 = vmatpush.msra.mxu0 0.0
    %3686 = vmatpush.msra.mxu0 0.0
    %3687 = vmatpush.msra.mxu0 0.0
    %3688 = vmatpush.msra.mxu0 0.0
    %3689 = vmatpush.msra.mxu0 0.0
    %3690 = vmatpush.msra.mxu0 0.0
    %3691 = vmatpush.msra.mxu0 0.0
    %3692 = vmatpush.msra.mxu0 0.0
    %3693 = vmatpush.msra.mxu0 0.0
    %3694 = vmatpush.msra.mxu0 0.0
    %v3695 = vand.u32 %v3325, 4294901760
    %v3696 = vsub.f32 %v3325, %v3695
    %v3697 = vand.u32 %v3696, 4294901760
    %v3698 = vsub.f32 %v3696, %v3697
    %v3699 = vand.u32 %v3698, 4294901760
    %3700 = vmatpush.msra.mxu0 %v3699
    %v3701 = vand.u32 %v3323, 4294901760
    %v3702 = vsub.f32 %v3323, %v3701
    %v3703 = vand.u32 %v3702, 4294901760
    %v3704 = vsub.f32 %v3702, %v3703
    %v3705 = vand.u32 %v3704, 4294901760
    %3706 = vmatpush.msra.mxu0 %v3705
    %v3707 = vand.u32 %v3652, 4294901760
    %3708 = vmatmul.f32.gmra.mxu0 %v3707
    %v3709 = vpop.f32.mrf.mxu0
    %v3710 = vadd.f32 %v3679, %v3709
    %3711 = vdwg.mxu0
    %3712 = vmatpush.msra.mxu0 0.0
    %3713 = vmatpush.msra.mxu0 0.0
    %3714 = vmatpush.msra.mxu0 0.0
    %3715 = vmatpush.msra.mxu0 0.0
    %3716 = vmatpush.msra.mxu0 0.0
    %3717 = vmatpush.msra.mxu0 0.0
    %3718 = vmatpush.msra.mxu0 0.0
    %3719 = vmatpush.msra.mxu0 0.0
    %3720 = vmatpush.msra.mxu0 0.0
    %3721 = vmatpush.msra.mxu0 0.0
    %3722 = vmatpush.msra.mxu0 0.0
    %3723 = vmatpush.msra.mxu0 0.0
    %3724 = vmatpush.msra.mxu0 0.0
    %3725 = vmatpush.msra.mxu0 0.0
    %v3726 = vand.u32 %v3325, 4294901760
    %v3727 = vsub.f32 %v3325, %v3726
    %3728 = vmatpush.msra.mxu0 %v3727
    %v3729 = vand.u32 %v3323, 4294901760
    %v3730 = vsub.f32 %v3323, %v3729
    %3731 = vmatpush.msra.mxu0 %v3730
    %v3732 = vand.u32 %v3652, 4294901760
    %v3733 = vsub.f32 %v3652, %v3732
    %3734 = vmatmul.f32.gmra.mxu0 %v3733
    %v3735 = vpop.f32.mrf.mxu0
    %v3736 = vadd.f32 %v3710, %v3735
    %3737 = vdwg.mxu0
    %3738 = vmatpush.msra.mxu0 0.0
    %3739 = vmatpush.msra.mxu0 0.0
    %3740 = vmatpush.msra.mxu0 0.0
    %3741 = vmatpush.msra.mxu0 0.0
    %3742 = vmatpush.msra.mxu0 0.0
    %3743 = vmatpush.msra.mxu0 0.0
    %3744 = vmatpush.msra.mxu0 0.0
    %3745 = vmatpush.msra.mxu0 0.0
    %3746 = vmatpush.msra.mxu0 0.0
    %3747 = vmatpush.msra.mxu0 0.0
    %3748 = vmatpush.msra.mxu0 0.0
    %3749 = vmatpush.msra.mxu0 0.0
    %3750 = vmatpush.msra.mxu0 0.0
    %3751 = vmatpush.msra.mxu0 0.0
    %v3752 = vand.u32 %v3325, 4294901760
    %3753 = vmatpush.msra.mxu0 %v3752
    %v3754 = vand.u32 %v3323, 4294901760
    %3755 = vmatpush.msra.mxu0 %v3754
    %v3756 = vand.u32 %v3652, 4294901760
    %v3757 = vsub.f32 %v3652, %v3756
    %v3758 = vand.u32 %v3757, 4294901760
    %3759 = vmatmul.f32.gmra.mxu0 %v3758
    %v3760 = vpop.f32.mrf.mxu0
    %v3761 = vadd.f32 %v3736, %v3760
    %3762 = vdwg.mxu0
    %3763 = vmatpush.msra.mxu0 0.0
    %3764 = vmatpush.msra.mxu0 0.0
    %3765 = vmatpush.msra.mxu0 0.0
    %3766 = vmatpush.msra.mxu0 0.0
    %3767 = vmatpush.msra.mxu0 0.0
    %3768 = vmatpush.msra.mxu0 0.0
    %3769 = vmatpush.msra.mxu0 0.0
    %3770 = vmatpush.msra.mxu0 0.0
    %3771 = vmatpush.msra.mxu0 0.0
    %3772 = vmatpush.msra.mxu0 0.0
    %3773 = vmatpush.msra.mxu0 0.0
    %3774 = vmatpush.msra.mxu0 0.0
    %3775 = vmatpush.msra.mxu0 0.0
    %3776 = vmatpush.msra.mxu0 0.0
    %v3777 = vand.u32 %v3325, 4294901760
    %v3778 = vsub.f32 %v3325, %v3777
    %v3779 = vand.u32 %v3778, 4294901760
    %3780 = vmatpush.msra.mxu0 %v3779
    %v3781 = vand.u32 %v3323, 4294901760
    %v3782 = vsub.f32 %v3323, %v3781
    %v3783 = vand.u32 %v3782, 4294901760
    %3784 = vmatpush.msra.mxu0 %v3783
    %v3785 = vand.u32 %v3652, 4294901760
    %3786 = vmatmul.f32.gmra.mxu0 %v3785
    %v3787 = vpop.f32.mrf.mxu0
    %v3788 = vadd.f32 %v3761, %v3787
    %3789 = vdwg.mxu0
    %3790 = vmatpush.msra.mxu0 0.0
    %3791 = vmatpush.msra.mxu0 0.0
    %3792 = vmatpush.msra.mxu0 0.0
    %3793 = vmatpush.msra.mxu0 0.0
    %3794 = vmatpush.msra.mxu0 0.0
    %3795 = vmatpush.msra.mxu0 0.0
    %3796 = vmatpush.msra.mxu0 0.0
    %3797 = vmatpush.msra.mxu0 0.0
    %3798 = vmatpush.msra.mxu0 0.0
    %3799 = vmatpush.msra.mxu0 0.0
    %3800 = vmatpush.msra.mxu0 0.0
    %3801 = vmatpush.msra.mxu0 0.0
    %3802 = vmatpush.msra.mxu0 0.0
    %3803 = vmatpush.msra.mxu0 0.0
    %v3804 = vand.u32 %v3325, 4294901760
    %3805 = vmatpush.msra.mxu0 %v3804
    %v3806 = vand.u32 %v3323, 4294901760
    %3807 = vmatpush.msra.mxu0 %v3806
    %v3808 = vand.u32 %v3652, 4294901760
    %3809 = vmatmul.f32.gmra.mxu0 %v3808
    %v3810 = vpop.f32.mrf.mxu0
    %v3811 = vadd.f32 %v3788, %v3810
    %3812 = vdwg.mxu0
    %3813 = vmatpush.msra.mxu0 0.0
    %3814 = vmatpush.msra.mxu0 0.0
    %3815 = vmatpush.msra.mxu0 0.0
    %3816 = vmatpush.msra.mxu0 0.0
    %3817 = vmatpush.msra.mxu0 0.0
    %3818 = vmatpush.msra.mxu0 0.0
    %3819 = vmatpush.msra.mxu0 0.0
    %3820 = vmatpush.msra.mxu0 0.0
    %3821 = vmatpush.msra.mxu0 0.0
    %3822 = vmatpush.msra.mxu0 0.0
    %3823 = vmatpush.msra.mxu0 0.0
    %3824 = vmatpush.msra.mxu0 0.0
    %3825 = vmatpush.msra.mxu0 0.0
    %3826 = vmatpush.msra.mxu0 0.0
    %v3827 = vand.u32 %v3326, 4294901760
    %3828 = vmatpush.msra.mxu0 %v3827
    %v3829 = vand.u32 %v3324, 4294901760
    %3830 = vmatpush.msra.mxu0 %v3829
    %v3831 = vand.u32 %v3652, 4294901760
    %v3832 = vsub.f32 %v3652, %v3831
    %v3833 = vand.u32 %v3832, 4294901760
    %v3834 = vsub.f32 %v3832, %v3833
    %v3835 = vand.u32 %v3834, 4294901760
    %3836 = vmatmul.f32.gmra.mxu0 %v3835
    %v3837 = vpop.f32.mrf.mxu0
    %v3838 = vadd.f32 0.0, %v3837
    %3839 = vdwg.mxu0
    %3840 = vmatpush.msra.mxu0 0.0
    %3841 = vmatpush.msra.mxu0 0.0
    %3842 = vmatpush.msra.mxu0 0.0
    %3843 = vmatpush.msra.mxu0 0.0
    %3844 = vmatpush.msra.mxu0 0.0
    %3845 = vmatpush.msra.mxu0 0.0
    %3846 = vmatpush.msra.mxu0 0.0
    %3847 = vmatpush.msra.mxu0 0.0
    %3848 = vmatpush.msra.mxu0 0.0
    %3849 = vmatpush.msra.mxu0 0.0
    %3850 = vmatpush.msra.mxu0 0.0
    %3851 = vmatpush.msra.mxu0 0.0
    %3852 = vmatpush.msra.mxu0 0.0
    %3853 = vmatpush.msra.mxu0 0.0
    %v3854 = vand.u32 %v3326, 4294901760
    %v3855 = vsub.f32 %v3326, %v3854
    %v3856 = vand.u32 %v3855, 4294901760
    %v3857 = vsub.f32 %v3855, %v3856
    %v3858 = vand.u32 %v3857, 4294901760
    %3859 = vmatpush.msra.mxu0 %v3858
    %v3860 = vand.u32 %v3324, 4294901760
    %v3861 = vsub.f32 %v3324, %v3860
    %v3862 = vand.u32 %v3861, 4294901760
    %v3863 = vsub.f32 %v3861, %v3862
    %v3864 = vand.u32 %v3863, 4294901760
    %3865 = vmatpush.msra.mxu0 %v3864
    %v3866 = vand.u32 %v3652, 4294901760
    %3867 = vmatmul.f32.gmra.mxu0 %v3866
    %v3868 = vpop.f32.mrf.mxu0
    %v3869 = vadd.f32 %v3838, %v3868
    %3870 = vdwg.mxu0
    %3871 = vmatpush.msra.mxu0 0.0
    %3872 = vmatpush.msra.mxu0 0.0
    %3873 = vmatpush.msra.mxu0 0.0
    %3874 = vmatpush.msra.mxu0 0.0
    %3875 = vmatpush.msra.mxu0 0.0
    %3876 = vmatpush.msra.mxu0 0.0
    %3877 = vmatpush.msra.mxu0 0.0
    %3878 = vmatpush.msra.mxu0 0.0
    %3879 = vmatpush.msra.mxu0 0.0
    %3880 = vmatpush.msra.mxu0 0.0
    %3881 = vmatpush.msra.mxu0 0.0
    %3882 = vmatpush.msra.mxu0 0.0
    %3883 = vmatpush.msra.mxu0 0.0
    %3884 = vmatpush.msra.mxu0 0.0
    %v3885 = vand.u32 %v3326, 4294901760
    %v3886 = vsub.f32 %v3326, %v3885
    %3887 = vmatpush.msra.mxu0 %v3886
    %v3888 = vand.u32 %v3324, 4294901760
    %v3889 = vsub.f32 %v3324, %v3888
    %3890 = vmatpush.msra.mxu0 %v3889
    %v3891 = vand.u32 %v3652, 4294901760
    %v3892 = vsub.f32 %v3652, %v3891
    %3893 = vmatmul.f32.gmra.mxu0 %v3892
    %v3894 = vpop.f32.mrf.mxu0
    %v3895 = vadd.f32 %v3869, %v3894
    %3896 = vdwg.mxu0
    %3897 = vmatpush.msra.mxu0 0.0
    %3898 = vmatpush.msra.mxu0 0.0
    %3899 = vmatpush.msra.mxu0 0.0
    %3900 = vmatpush.msra.mxu0 0.0
    %3901 = vmatpush.msra.mxu0 0.0
    %3902 = vmatpush.msra.mxu0 0.0
    %3903 = vmatpush.msra.mxu0 0.0
    %3904 = vmatpush.msra.mxu0 0.0
    %3905 = vmatpush.msra.mxu0 0.0
    %3906 = vmatpush.msra.mxu0 0.0
    %3907 = vmatpush.msra.mxu0 0.0
    %3908 = vmatpush.msra.mxu0 0.0
    %3909 = vmatpush.msra.mxu0 0.0
    %3910 = vmatpush.msra.mxu0 0.0
    %v3911 = vand.u32 %v3326, 4294901760
    %3912 = vmatpush.msra.mxu0 %v3911
    %v3913 = vand.u32 %v3324, 4294901760
    %3914 = vmatpush.msra.mxu0 %v3913
    %v3915 = vand.u32 %v3652, 4294901760
    %v3916 = vsub.f32 %v3652, %v3915
    %v3917 = vand.u32 %v3916, 4294901760
    %3918 = vmatmul.f32.gmra.mxu0 %v3917
    %v3919 = vpop.f32.mrf.mxu0
    %v3920 = vadd.f32 %v3895, %v3919
    %3921 = vdwg.mxu0
    %3922 = vmatpush.msra.mxu0 0.0
    %3923 = vmatpush.msra.mxu0 0.0
    %3924 = vmatpush.msra.mxu0 0.0
    %3925 = vmatpush.msra.mxu0 0.0
    %3926 = vmatpush.msra.mxu0 0.0
    %3927 = vmatpush.msra.mxu0 0.0
    %3928 = vmatpush.msra.mxu0 0.0
    %3929 = vmatpush.msra.mxu0 0.0
    %3930 = vmatpush.msra.mxu0 0.0
    %3931 = vmatpush.msra.mxu0 0.0
    %3932 = vmatpush.msra.mxu0 0.0
    %3933 = vmatpush.msra.mxu0 0.0
    %3934 = vmatpush.msra.mxu0 0.0
    %3935 = vmatpush.msra.mxu0 0.0
    %v3936 = vand.u32 %v3326, 4294901760
    %v3937 = vsub.f32 %v3326, %v3936
    %v3938 = vand.u32 %v3937, 4294901760
    %3939 = vmatpush.msra.mxu0 %v3938
    %v3940 = vand.u32 %v3324, 4294901760
    %v3941 = vsub.f32 %v3324, %v3940
    %v3942 = vand.u32 %v3941, 4294901760
    %3943 = vmatpush.msra.mxu0 %v3942
    %v3944 = vand.u32 %v3652, 4294901760
    %3945 = vmatmul.f32.gmra.mxu0 %v3944
    %v3946 = vpop.f32.mrf.mxu0
    %v3947 = vadd.f32 %v3920, %v3946
    %3948 = vdwg.mxu0
    %3949 = vmatpush.msra.mxu0 0.0
    %3950 = vmatpush.msra.mxu0 0.0
    %3951 = vmatpush.msra.mxu0 0.0
    %3952 = vmatpush.msra.mxu0 0.0
    %3953 = vmatpush.msra.mxu0 0.0
    %3954 = vmatpush.msra.mxu0 0.0
    %3955 = vmatpush.msra.mxu0 0.0
    %3956 = vmatpush.msra.mxu0 0.0
    %3957 = vmatpush.msra.mxu0 0.0
    %3958 = vmatpush.msra.mxu0 0.0
    %3959 = vmatpush.msra.mxu0 0.0
    %3960 = vmatpush.msra.mxu0 0.0
    %3961 = vmatpush.msra.mxu0 0.0
    %3962 = vmatpush.msra.mxu0 0.0
    %v3963 = vand.u32 %v3326, 4294901760
    %3964 = vmatpush.msra.mxu0 %v3963
    %v3965 = vand.u32 %v3324, 4294901760
    %3966 = vmatpush.msra.mxu0 %v3965
    %v3967 = vand.u32 %v3652, 4294901760
    %3968 = vmatmul.f32.gmra.mxu0 %v3967
    %v3969 = vpop.f32.mrf.mxu0
    %v3970 = vadd.f32 %v3947, %v3969
    %3971 = vdwg.mxu0
    %s3972 = scalar_lea.vmem %s10, 16
    %v3973 = vld [vmem:[%s3972] sm:$0xff]
    %v3975 = vsel %vm2936, %v3973, 0
    %3977 = vmatpush.msra.mxu0 0.0
    %3978 = vmatpush.msra.mxu0 0.0
    %3979 = vmatpush.msra.mxu0 0.0
    %3980 = vmatpush.msra.mxu0 0.0
    %3981 = vmatpush.msra.mxu0 0.0
    %3982 = vmatpush.msra.mxu0 0.0
    %3983 = vmatpush.msra.mxu0 0.0
    %3984 = vmatpush.msra.mxu0 0.0
    %3985 = vmatpush.msra.mxu0 0.0
    %3986 = vmatpush.msra.mxu0 0.0
    %3987 = vmatpush.msra.mxu0 0.0
    %3988 = vmatpush.msra.mxu0 0.0
    %3989 = vmatpush.msra.mxu0 0.0
    %3990 = vmatpush.msra.mxu0 0.0
    %v3991 = vand.u32 %v3325, 4294901760
    %3992 = vmatpush.msra.mxu0 %v3991
    %v3993 = vand.u32 %v3323, 4294901760
    %3994 = vmatpush.msra.mxu0 %v3993
    %v3995 = vand.u32 %v3975, 4294901760
    %v3996 = vsub.f32 %v3975, %v3995
    %v3997 = vand.u32 %v3996, 4294901760
    %v3998 = vsub.f32 %v3996, %v3997
    %v3999 = vand.u32 %v3998, 4294901760
    %4000 = vmatmul.f32.gmra.mxu0 %v3999
    %v4001 = vpop.f32.mrf.mxu0
    %v4002 = vadd.f32 0.0, %v4001
    %4003 = vdwg.mxu0
    %4004 = vmatpush.msra.mxu0 0.0
    %4005 = vmatpush.msra.mxu0 0.0
    %4006 = vmatpush.msra.mxu0 0.0
    %4007 = vmatpush.msra.mxu0 0.0
    %4008 = vmatpush.msra.mxu0 0.0
    %4009 = vmatpush.msra.mxu0 0.0
    %4010 = vmatpush.msra.mxu0 0.0
    %4011 = vmatpush.msra.mxu0 0.0
    %4012 = vmatpush.msra.mxu0 0.0
    %4013 = vmatpush.msra.mxu0 0.0
    %4014 = vmatpush.msra.mxu0 0.0
    %4015 = vmatpush.msra.mxu0 0.0
    %4016 = vmatpush.msra.mxu0 0.0
    %4017 = vmatpush.msra.mxu0 0.0
    %v4018 = vand.u32 %v3325, 4294901760
    %v4019 = vsub.f32 %v3325, %v4018
    %v4020 = vand.u32 %v4019, 4294901760
    %v4021 = vsub.f32 %v4019, %v4020
    %v4022 = vand.u32 %v4021, 4294901760
    %4023 = vmatpush.msra.mxu0 %v4022
    %v4024 = vand.u32 %v3323, 4294901760
    %v4025 = vsub.f32 %v3323, %v4024
    %v4026 = vand.u32 %v4025, 4294901760
    %v4027 = vsub.f32 %v4025, %v4026
    %v4028 = vand.u32 %v4027, 4294901760
    %4029 = vmatpush.msra.mxu0 %v4028
    %v4030 = vand.u32 %v3975, 4294901760
    %4031 = vmatmul.f32.gmra.mxu0 %v4030
    %v4032 = vpop.f32.mrf.mxu0
    %v4033 = vadd.f32 %v4002, %v4032
    %4034 = vdwg.mxu0
    %4035 = vmatpush.msra.mxu0 0.0
    %4036 = vmatpush.msra.mxu0 0.0
    %4037 = vmatpush.msra.mxu0 0.0
    %4038 = vmatpush.msra.mxu0 0.0
    %4039 = vmatpush.msra.mxu0 0.0
    %4040 = vmatpush.msra.mxu0 0.0
    %4041 = vmatpush.msra.mxu0 0.0
    %4042 = vmatpush.msra.mxu0 0.0
    %4043 = vmatpush.msra.mxu0 0.0
    %4044 = vmatpush.msra.mxu0 0.0
    %4045 = vmatpush.msra.mxu0 0.0
    %4046 = vmatpush.msra.mxu0 0.0
    %4047 = vmatpush.msra.mxu0 0.0
    %4048 = vmatpush.msra.mxu0 0.0
    %v4049 = vand.u32 %v3325, 4294901760
    %v4050 = vsub.f32 %v3325, %v4049
    %4051 = vmatpush.msra.mxu0 %v4050
    %v4052 = vand.u32 %v3323, 4294901760
    %v4053 = vsub.f32 %v3323, %v4052
    %4054 = vmatpush.msra.mxu0 %v4053
    %v4055 = vand.u32 %v3975, 4294901760
    %v4056 = vsub.f32 %v3975, %v4055
    %4057 = vmatmul.f32.gmra.mxu0 %v4056
    %v4058 = vpop.f32.mrf.mxu0
    %v4059 = vadd.f32 %v4033, %v4058
    %4060 = vdwg.mxu0
    %4061 = vmatpush.msra.mxu0 0.0
    %4062 = vmatpush.msra.mxu0 0.0
    %4063 = vmatpush.msra.mxu0 0.0
    %4064 = vmatpush.msra.mxu0 0.0
    %4065 = vmatpush.msra.mxu0 0.0
    %4066 = vmatpush.msra.mxu0 0.0
    %4067 = vmatpush.msra.mxu0 0.0
    %4068 = vmatpush.msra.mxu0 0.0
    %4069 = vmatpush.msra.mxu0 0.0
    %4070 = vmatpush.msra.mxu0 0.0
    %4071 = vmatpush.msra.mxu0 0.0
    %4072 = vmatpush.msra.mxu0 0.0
    %4073 = vmatpush.msra.mxu0 0.0
    %4074 = vmatpush.msra.mxu0 0.0
    %v4075 = vand.u32 %v3325, 4294901760
    %4076 = vmatpush.msra.mxu0 %v4075
    %v4077 = vand.u32 %v3323, 4294901760
    %4078 = vmatpush.msra.mxu0 %v4077
    %v4079 = vand.u32 %v3975, 4294901760
    %v4080 = vsub.f32 %v3975, %v4079
    %v4081 = vand.u32 %v4080, 4294901760
    %4082 = vmatmul.f32.gmra.mxu0 %v4081
    %v4083 = vpop.f32.mrf.mxu0
    %v4084 = vadd.f32 %v4059, %v4083
    %4085 = vdwg.mxu0
    %4086 = vmatpush.msra.mxu0 0.0
    %4087 = vmatpush.msra.mxu0 0.0
    %4088 = vmatpush.msra.mxu0 0.0
    %4089 = vmatpush.msra.mxu0 0.0
    %4090 = vmatpush.msra.mxu0 0.0
    %4091 = vmatpush.msra.mxu0 0.0
    %4092 = vmatpush.msra.mxu0 0.0
    %4093 = vmatpush.msra.mxu0 0.0
    %4094 = vmatpush.msra.mxu0 0.0
    %4095 = vmatpush.msra.mxu0 0.0
    %4096 = vmatpush.msra.mxu0 0.0
    %4097 = vmatpush.msra.mxu0 0.0
    %4098 = vmatpush.msra.mxu0 0.0
    %4099 = vmatpush.msra.mxu0 0.0
    %v4100 = vand.u32 %v3325, 4294901760
    %v4101 = vsub.f32 %v3325, %v4100
    %v4102 = vand.u32 %v4101, 4294901760
    %4103 = vmatpush.msra.mxu0 %v4102
    %v4104 = vand.u32 %v3323, 4294901760
    %v4105 = vsub.f32 %v3323, %v4104
    %v4106 = vand.u32 %v4105, 4294901760
    %4107 = vmatpush.msra.mxu0 %v4106
    %v4108 = vand.u32 %v3975, 4294901760
    %4109 = vmatmul.f32.gmra.mxu0 %v4108
    %v4110 = vpop.f32.mrf.mxu0
    %v4111 = vadd.f32 %v4084, %v4110
    %4112 = vdwg.mxu0
    %4113 = vmatpush.msra.mxu0 0.0
    %4114 = vmatpush.msra.mxu0 0.0
    %4115 = vmatpush.msra.mxu0 0.0
    %4116 = vmatpush.msra.mxu0 0.0
    %4117 = vmatpush.msra.mxu0 0.0
    %4118 = vmatpush.msra.mxu0 0.0
    %4119 = vmatpush.msra.mxu0 0.0
    %4120 = vmatpush.msra.mxu0 0.0
    %4121 = vmatpush.msra.mxu0 0.0
    %4122 = vmatpush.msra.mxu0 0.0
    %4123 = vmatpush.msra.mxu0 0.0
    %4124 = vmatpush.msra.mxu0 0.0
    %4125 = vmatpush.msra.mxu0 0.0
    %4126 = vmatpush.msra.mxu0 0.0
    %v4127 = vand.u32 %v3325, 4294901760
    %4128 = vmatpush.msra.mxu0 %v4127
    %v4129 = vand.u32 %v3323, 4294901760
    %4130 = vmatpush.msra.mxu0 %v4129
    %v4131 = vand.u32 %v3975, 4294901760
    %4132 = vmatmul.f32.gmra.mxu0 %v4131
    %v4133 = vpop.f32.mrf.mxu0
    %v4134 = vadd.f32 %v4111, %v4133
    %4135 = vdwg.mxu0
    %4136 = vmatpush.msra.mxu0 0.0
    %4137 = vmatpush.msra.mxu0 0.0
    %4138 = vmatpush.msra.mxu0 0.0
    %4139 = vmatpush.msra.mxu0 0.0
    %4140 = vmatpush.msra.mxu0 0.0
    %4141 = vmatpush.msra.mxu0 0.0
    %4142 = vmatpush.msra.mxu0 0.0
    %4143 = vmatpush.msra.mxu0 0.0
    %4144 = vmatpush.msra.mxu0 0.0
    %4145 = vmatpush.msra.mxu0 0.0
    %4146 = vmatpush.msra.mxu0 0.0
    %4147 = vmatpush.msra.mxu0 0.0
    %4148 = vmatpush.msra.mxu0 0.0
    %4149 = vmatpush.msra.mxu0 0.0
    %v4150 = vand.u32 %v3326, 4294901760
    %4151 = vmatpush.msra.mxu0 %v4150
    %v4152 = vand.u32 %v3324, 4294901760
    %4153 = vmatpush.msra.mxu0 %v4152
    %v4154 = vand.u32 %v3975, 4294901760
    %v4155 = vsub.f32 %v3975, %v4154
    %v4156 = vand.u32 %v4155, 4294901760
    %v4157 = vsub.f32 %v4155, %v4156
    %v4158 = vand.u32 %v4157, 4294901760
    %4159 = vmatmul.f32.gmra.mxu0 %v4158
    %v4160 = vpop.f32.mrf.mxu0
    %v4161 = vadd.f32 0.0, %v4160
    %4162 = vdwg.mxu0
    %4163 = vmatpush.msra.mxu0 0.0
    %4164 = vmatpush.msra.mxu0 0.0
    %4165 = vmatpush.msra.mxu0 0.0
    %4166 = vmatpush.msra.mxu0 0.0
    %4167 = vmatpush.msra.mxu0 0.0
    %4168 = vmatpush.msra.mxu0 0.0
    %4169 = vmatpush.msra.mxu0 0.0
    %4170 = vmatpush.msra.mxu0 0.0
    %4171 = vmatpush.msra.mxu0 0.0
    %4172 = vmatpush.msra.mxu0 0.0
    %4173 = vmatpush.msra.mxu0 0.0
    %4174 = vmatpush.msra.mxu0 0.0
    %4175 = vmatpush.msra.mxu0 0.0
    %4176 = vmatpush.msra.mxu0 0.0
    %v4177 = vand.u32 %v3326, 4294901760
    %v4178 = vsub.f32 %v3326, %v4177
    %v4179 = vand.u32 %v4178, 4294901760
    %v4180 = vsub.f32 %v4178, %v4179
    %v4181 = vand.u32 %v4180, 4294901760
    %4182 = vmatpush.msra.mxu0 %v4181
    %v4183 = vand.u32 %v3324, 4294901760
    %v4184 = vsub.f32 %v3324, %v4183
    %v4185 = vand.u32 %v4184, 4294901760
    %v4186 = vsub.f32 %v4184, %v4185
    %v4187 = vand.u32 %v4186, 4294901760
    %4188 = vmatpush.msra.mxu0 %v4187
    %v4189 = vand.u32 %v3975, 4294901760
    %4190 = vmatmul.f32.gmra.mxu0 %v4189
    %v4191 = vpop.f32.mrf.mxu0
    %v4192 = vadd.f32 %v4161, %v4191
    %4193 = vdwg.mxu0
    %4194 = vmatpush.msra.mxu0 0.0
    %4195 = vmatpush.msra.mxu0 0.0
    %4196 = vmatpush.msra.mxu0 0.0
    %4197 = vmatpush.msra.mxu0 0.0
    %4198 = vmatpush.msra.mxu0 0.0
    %4199 = vmatpush.msra.mxu0 0.0
    %4200 = vmatpush.msra.mxu0 0.0
    %4201 = vmatpush.msra.mxu0 0.0
    %4202 = vmatpush.msra.mxu0 0.0
    %4203 = vmatpush.msra.mxu0 0.0
    %4204 = vmatpush.msra.mxu0 0.0
    %4205 = vmatpush.msra.mxu0 0.0
    %4206 = vmatpush.msra.mxu0 0.0
    %4207 = vmatpush.msra.mxu0 0.0
    %v4208 = vand.u32 %v3326, 4294901760
    %v4209 = vsub.f32 %v3326, %v4208
    %4210 = vmatpush.msra.mxu0 %v4209
    %v4211 = vand.u32 %v3324, 4294901760
    %v4212 = vsub.f32 %v3324, %v4211
    %4213 = vmatpush.msra.mxu0 %v4212
    %v4214 = vand.u32 %v3975, 4294901760
    %v4215 = vsub.f32 %v3975, %v4214
    %4216 = vmatmul.f32.gmra.mxu0 %v4215
    %v4217 = vpop.f32.mrf.mxu0
    %v4218 = vadd.f32 %v4192, %v4217
    %4219 = vdwg.mxu0
    %4220 = vmatpush.msra.mxu0 0.0
    %4221 = vmatpush.msra.mxu0 0.0
    %4222 = vmatpush.msra.mxu0 0.0
    %4223 = vmatpush.msra.mxu0 0.0
    %4224 = vmatpush.msra.mxu0 0.0
    %4225 = vmatpush.msra.mxu0 0.0
    %4226 = vmatpush.msra.mxu0 0.0
    %4227 = vmatpush.msra.mxu0 0.0
    %4228 = vmatpush.msra.mxu0 0.0
    %4229 = vmatpush.msra.mxu0 0.0
    %4230 = vmatpush.msra.mxu0 0.0
    %4231 = vmatpush.msra.mxu0 0.0
    %4232 = vmatpush.msra.mxu0 0.0
    %4233 = vmatpush.msra.mxu0 0.0
    %v4234 = vand.u32 %v3326, 4294901760
    %4235 = vmatpush.msra.mxu0 %v4234
    %v4236 = vand.u32 %v3324, 4294901760
    %4237 = vmatpush.msra.mxu0 %v4236
    %v4238 = vand.u32 %v3975, 4294901760
    %v4239 = vsub.f32 %v3975, %v4238
    %v4240 = vand.u32 %v4239, 4294901760
    %4241 = vmatmul.f32.gmra.mxu0 %v4240
    %v4242 = vpop.f32.mrf.mxu0
    %v4243 = vadd.f32 %v4218, %v4242
    %4244 = vdwg.mxu0
    %4245 = vmatpush.msra.mxu0 0.0
    %4246 = vmatpush.msra.mxu0 0.0
    %4247 = vmatpush.msra.mxu0 0.0
    %4248 = vmatpush.msra.mxu0 0.0
    %4249 = vmatpush.msra.mxu0 0.0
    %4250 = vmatpush.msra.mxu0 0.0
    %4251 = vmatpush.msra.mxu0 0.0
    %4252 = vmatpush.msra.mxu0 0.0
    %4253 = vmatpush.msra.mxu0 0.0
    %4254 = vmatpush.msra.mxu0 0.0
    %4255 = vmatpush.msra.mxu0 0.0
    %4256 = vmatpush.msra.mxu0 0.0
    %4257 = vmatpush.msra.mxu0 0.0
    %4258 = vmatpush.msra.mxu0 0.0
    %v4259 = vand.u32 %v3326, 4294901760
    %v4260 = vsub.f32 %v3326, %v4259
    %v4261 = vand.u32 %v4260, 4294901760
    %4262 = vmatpush.msra.mxu0 %v4261
    %v4263 = vand.u32 %v3324, 4294901760
    %v4264 = vsub.f32 %v3324, %v4263
    %v4265 = vand.u32 %v4264, 4294901760
    %4266 = vmatpush.msra.mxu0 %v4265
    %v4267 = vand.u32 %v3975, 4294901760
    %4268 = vmatmul.f32.gmra.mxu0 %v4267
    %v4269 = vpop.f32.mrf.mxu0
    %v4270 = vadd.f32 %v4243, %v4269
    %4271 = vdwg.mxu0
    %4272 = vmatpush.msra.mxu0 0.0
    %4273 = vmatpush.msra.mxu0 0.0
    %4274 = vmatpush.msra.mxu0 0.0
    %4275 = vmatpush.msra.mxu0 0.0
    %4276 = vmatpush.msra.mxu0 0.0
    %4277 = vmatpush.msra.mxu0 0.0
    %4278 = vmatpush.msra.mxu0 0.0
    %4279 = vmatpush.msra.mxu0 0.0
    %4280 = vmatpush.msra.mxu0 0.0
    %4281 = vmatpush.msra.mxu0 0.0
    %4282 = vmatpush.msra.mxu0 0.0
    %4283 = vmatpush.msra.mxu0 0.0
    %4284 = vmatpush.msra.mxu0 0.0
    %4285 = vmatpush.msra.mxu0 0.0
    %v4286 = vand.u32 %v3326, 4294901760
    %4287 = vmatpush.msra.mxu0 %v4286
    %v4288 = vand.u32 %v3324, 4294901760
    %4289 = vmatpush.msra.mxu0 %v4288
    %v4290 = vand.u32 %v3975, 4294901760
    %4291 = vmatmul.f32.gmra.mxu0 %v4290
    %v4292 = vpop.f32.mrf.mxu0
    %v4293 = vadd.f32 %v4270, %v4292
    %4294 = vdwg.mxu0
    %v4295 = vld [vmem:[%s11] sm:$0xff]
    %4296 = vrot.lane.b32.xlu0 %v3488, 1
    %v4297 = vpop.permute.xlu0 %4296
    %4298 = vrot.lane.b32.xlu0 %v3647, 1
    %v4299 = vpop.permute.xlu0 %4298
    %v4300 = vsel %vm2516, %v4297, %v4299
    %v4301 = vsel %vm2516, %v4299, %v4297
    %v4302 = vsel %vm2521, 0.0, %v4301
    %v4303 = vsel %vm2522, 0.0, %v4300
    %4305 = vset.pattern.permute.xlu0 0
    %4306 = vperm.xlu0 %4305, %v4295
    %v4307 = vpop.permute.xlu0 %4306
    %v4309 = vadd.f32 %v4307, %v4302
    %v4310 = vadd.f32 %v4307, %v4303
    %v4311 = vadd.f32 %v4309, %v3811
    %v4312 = vadd.f32 %v4310, %v3970
    %4313 = vrot.lane.b32.xlu0 %v4134, 127
    %v4314 = vpop.permute.xlu0 %4313
    %4315 = vrot.lane.b32.xlu0 %v4293, 127
    %v4316 = vpop.permute.xlu0 %4315
    %v4317 = vsel %vm2901, %v4314, %v4316
    %v4318 = vsel %vm2901, %v4316, %v4314
    %v4319 = vsel %vm2906, 0.0, %v4317
    %v4320 = vsel %vm2907, 0.0, %v4318
    %v4321 = vadd.f32 %v4311, %v4319
    %v4322 = vadd.f32 %v4312, %v4320
    %v4323 = vadd.f32 %v4321, 2.0
    %v4324 = vadd.f32 %v4322, 2.0
    %v4325 = vxor.u32 %v4323, 2147483648
    %v4326 = vxor.u32 %v4324, 2147483648
    %v4327 = vmul.f32 %v4325, 1.442695
    %v4328 = vpow.pop %v4327
    %v4329 = vmul.f32 %v4326, 1.442695
    %v4330 = vpow.pop %v4329
    %v4331 = vadd.f32 %v4328, 1.0
    %v4332 = vadd.f32 %v4330, 1.0
    %v4333 = vrcp.pop %v4331
    %v4334 = vmul.f32 %v4331, %v4333
    %v4335 = vsub.f32 1.0, %v4334
    %v4336 = vmul.f32 %v4333, %v4335
    %v4337 = vadd.f32 %v4333, %v4336
    %vm4338 = vweird.f32 %v4331
    %vm4339 = vweird.f32 %v4333
    %vm4340 = vmor %vm4338, %vm4339
    %v4341 = vsel %vm4340, %v4333, %v4337
    %v4342 = vand.u32 2147483647, %v4331
    %vm4343 = vcmp.eq.f32.partialorder %v4342, 8.507059e+37
    %v4344 = vand.u32 %v4331, 2147483648
    %v4345 = vor.u32 1.1754944e-38, %v4344
    %v4346 = vsel %vm4343, %v4345, %v4341
    %v4347 = vmul.f32 1.0, %v4346
    %v4348 = vrcp.pop %v4332
    %v4349 = vmul.f32 %v4332, %v4348
    %v4350 = vsub.f32 1.0, %v4349
    %v4351 = vmul.f32 %v4348, %v4350
    %v4352 = vadd.f32 %v4348, %v4351
    %vm4353 = vweird.f32 %v4332
    %vm4354 = vweird.f32 %v4348
    %vm4355 = vmor %vm4353, %vm4354
    %v4356 = vsel %vm4355, %v4348, %v4352
    %v4357 = vand.u32 2147483647, %v4332
    %vm4358 = vcmp.eq.f32.partialorder %v4357, 8.507059e+37
    %v4359 = vand.u32 %v4332, 2147483648
    %v4360 = vor.u32 1.1754944e-38, %v4359
    %v4361 = vsel %vm4358, %v4360, %v4356
    %v4362 = vmul.f32 1.0, %v4361
    %v4363 = vadd.f32 %v4347, 1e-07
    %v4364 = vadd.f32 %v4362, 1e-07
    %v4365 = vadd.f32 %v2487, %v4321
    %v4366 = vadd.f32 %v2488, %v4322
    %v4369 = vrot.slane %v4365, 4
    %v4370 = vrot.slane %v4366, 4
    %v4373 = vmul.f32 %v4363, %v4369
    %v4374 = vmul.f32 %v4364, %v4370
    %4375 = vst [vmem:[#allocation5] sm:$0xf] %v2487
    %4376 = vst [vmem:[#allocation5 + $0x8] sm:$0xf] %v2488
    %v4379 = vrot.slane %v4373, 4
    %v4380 = vrot.slane %v4374, 4
    %4383 = vst [vmem:[#allocation5] sm:$0xf0] %v4379
    %4384 = vst [vmem:[#allocation5 + $0x8] sm:$0xf0] %v4380
    %v4385 = vlog2.pop %v4363
    %v4386 = vmul.f32 %v4385, 0.6931472
    %v4387 = vlog2.pop %v4364
    %v4388 = vmul.f32 %v4387, 0.6931472
    %v4389 = vsel %vm2509, %v4386, 0.0
    %4390 = vadd.xlane.f32.xlu0 %v4389
    %v4391 = vpop.xlane.xlu0 %4390
    %v4392 = vrot.slane %v4391, 4
    %v4393 = vadd.f32 %v4391, %v4392
    %v4394 = vrot.slane %v4393, 2
    %v4395 = vadd.f32 %v4393, %v4394
    %v4396 = vrot.slane %v4395, 1
    %v4397 = vadd.f32 %v4395, %v4396
    %s4398 = vtos %v4397
    %v4399 = vstv %s4398
    %v4400 = vadd.f32 %v2502, %v4399
    %v4401 = vsel %vm2509, %v4388, 0.0
    %4402 = vadd.xlane.f32.xlu0 %v4401
    %v4403 = vpop.xlane.xlu0 %4402
    %v4404 = vrot.slane %v4403, 4
    %v4405 = vadd.f32 %v4403, %v4404
    %v4406 = vrot.slane %v4405, 2
    %v4407 = vadd.f32 %v4405, %v4406
    %v4408 = vrot.slane %v4407, 1
    %v4409 = vadd.f32 %v4407, %v4408
    %s4410 = vtos %v4409
    %v4411 = vstv %s4410
    %v4412 = vadd.f32 %v2502, %v4411
    %vm4413 = vcmask 1040384
    %v4414 = vsel %vm4413, %v4400, %v4412
    %4415 = vst [vmem:[#allocation6] sm:$0x3] %v4414
    // Predicated region
    $region54: #{tpu_custom_call.1} parent=1 // pred_check
      _
    $region55: #{tpu_custom_call.1} parent=1 // pred_check_branch
      %4417 = sbr.rel (0) target = $region57
    $region56: #{tpu_custom_call.1} parent=1 // pred_region
      %4419 = vsyncadd [#allocation4], 0
      %s4421 = sshll.u32 [#allocation5], 4
      %s4422 = int_to_ptr.vmem [resolvable:$true] %s4421
      %s4423 = sshll.u32 %s12, 4
      %s4424 = int_to_ptr.hbm [resolvable:$true] %s4423
      %4426 = dma.vmem_to_hbm [thread:$0]  %s4422, 256, %s4424, [#allocation4]
    $region57: #{tpu_custom_call.1} parent=1 // pred_fallthru
      _
    // Predicated region
    $region58: #{tpu_custom_call.1} parent=1 // pred_check
      _
    $region59: #{tpu_custom_call.1} parent=1 // pred_check_branch
      %4428 = sbr.rel (0) target = $region61
    $region60: #{tpu_custom_call.1} parent=1 // pred_region
      %4430 = vsyncadd [#allocation7], 0
      %s4432 = sshll.u32 [#allocation6], 4
      %s4433 = int_to_ptr.vmem [resolvable:$true] %s4432
      %s4434 = sshll.u32 %s13, 4
      %s4435 = int_to_ptr.hbm [resolvable:$true] %s4434
      %4437 = dma.vmem_to_hbm [thread:$0]  %s4433, 32, %s4435, [#allocation7]
    $region61: #{tpu_custom_call.1} parent=1 // pred_fallthru
      _
    // Predicated region
    $region62: #{tpu_custom_call.1} parent=1 // pred_check
      _
    $region63: #{tpu_custom_call.1} parent=1 // pred_check_branch
      %4439 = sbr.rel (0) target = $region65
    $region64: #{tpu_custom_call.1} parent=1 // pred_region
      %4441 = dma.done [#allocation4], 256
    $region65: #{tpu_custom_call.1} parent=1 // pred_fallthru
      _
    // Predicated region
    $region66: #{tpu_custom_call.1} parent=1 // pred_check
      _
    $region67: #{tpu_custom_call.1} parent=1 // pred_check_branch
      %4443 = sbr.rel (0) target = $region69
    $region68: #{tpu_custom_call.1} parent=1 // pred_region
      %4445 = dma.done [#allocation7], 32
    $region69: #{tpu_custom_call.1} parent=1 // pred_fallthru
      _
    %4446 = vsyncpa [#allocation3], 1
    %4447 = vsyncpa [#allocation4], 1
    %4448 = vsyncpa [#allocation7], 1

</llo_original>
